<compile_context>
chip_gen: v7x
topology: tpu7x:2x2x1
jax: 0.10.0
libtpu: 0.0.40
codegen_flags: <defaults>
</compile_context>

<pallas_src>
import numpy as np
import jax
import jax.numpy as jnp
from jax.experimental import pallas as pl
from jax.experimental.pallas import tpu as pltpu


# -----------------------------------------------------------------------------
# Deterministic "parameter" construction (what __init__ does via sympy/scipy),
# implemented with plain numpy: spherical-Bessel zeros, normalizers, prefactors.
# -----------------------------------------------------------------------------
def _sph_jn_np(order, x):
    x = np.asarray(x, dtype=np.float64)
    j0 = np.sin(x) / x
    if order == 0:
        return j0
    j1 = np.sin(x) / x ** 2 - np.cos(x) / x
    jm, jc = j0, j1
    for m in range(2, order + 1):
        jn = (2 * m - 1) / x * jc - jm
        jm, jc = jc, jn
    return jc


def _bisect_root(order, lo, hi, iters=80):
    flo = _sph_jn_np(order, lo)
    for _ in range(iters):
        mid = 0.5 * (lo + hi)
        fm = _sph_jn_np(order, mid)
        if flo * fm <= 0.0:
            hi = mid
        else:
            lo, flo = mid, fm
    return 0.5 * (lo + hi)


def _bessel_zeros(n, k):
    zerosj = np.zeros((n, k), dtype=np.float64)
    zerosj[0] = np.arange(1, k + 1) * np.pi
    points = np.arange(1, k + n, dtype=np.float64) * np.pi
    for i in range(1, n):
        racines = np.zeros(k + n - 1 - i, dtype=np.float64)
        for j in range(k + n - 1 - i):
            racines[j] = _bisect_root(i, points[j], points[j + 1])
        points = racines
        zerosj[i, :k] = racines[:k]
    return zerosj


def make_spherical_basis_params(num_spherical, num_radial):
    n, k = num_spherical, num_radial
    zeros = _bessel_zeros(n, k)
    norm = np.zeros((n, k), dtype=np.float64)
    for i in range(n):
        for j in range(k):
            norm[i, j] = 1.0 / np.sqrt(0.5 * _sph_jn_np(i + 1, zeros[i, j]) ** 2)
    pref = np.array(
        [np.sqrt((2 * i + 1) / (4.0 * np.pi)) for i in range(n)], dtype=np.float64
    )
    return zeros.astype(np.float32), norm.astype(np.float32), pref.astype(np.float32)


# -----------------------------------------------------------------------------
# Pallas kernel: per-EDGE radial basis (envelope * prefnorm * j_i(z*x)),
# lane-dense (edges on the 128-lane axis), one (k, Et) store per order.
# -----------------------------------------------------------------------------
def make_rbf_edge_kernel(num_spherical, num_radial, cutoff, exponent):
    n, k = num_spherical, num_radial
    p = int(exponent)
    a = -(p + 1) * (p + 2) / 2.0
    b = float(p * (p + 2))
    c = -p * (p + 1) / 2.0
    inv_cutoff = 1.0 / float(cutoff)

    def kernel(zeros_ref, inv_zeros_ref, prefnorm_ref, dist_ref, out_ref):
        # zeros_ref / inv_zeros_ref / prefnorm_ref : (n, k, 1) constants (VMEM)
        # dist_ref : (1, Et)     out_ref : (n, k, Et)
        et = dist_ref.shape[1]
        x = dist_ref[...] * inv_cutoff                         # (1, Et)

        # Envelope u(x) = 1/x + a x^p + b x^{p+1} + c x^{p+2}, zeroed for x >= 1.
        # NOTE: x == 0 would produce inf, exactly as in the PyTorch module.
        inv_x = 1.0 / x                                        # the only divide left; kept exact
        x_p = x ** p
        env = inv_x + a * x_p + b * x_p * x + c * x_p * x * x
        env = jnp.where(x < 1.0, env, jnp.zeros_like(env))     # (1, Et)

        # Hoisted sublane broadcasts (JAX does not CSE broadcast_in_dim).
        x_b = jnp.broadcast_to(x, (k, et))                     # (k, Et)
        inv_x_b = jnp.broadcast_to(inv_x, (k, et))             # (k, Et)
        env_b = jnp.broadcast_to(env, (k, et))                 # (k, Et)

        for i in range(n):
            z = zeros_ref[i]                                   # (k, 1)
            arg = x_b * z                                      # (k, Et)
            # Divide-free reciprocal of the Bessel argument: 1/(z*x) = (1/z)*(1/x)
            inv = inv_x_b * inv_zeros_ref[i]                   # (k, Et)
            sin_a = jnp.sin(arg)
            j_lo = sin_a * inv                                 # j_0
            if i == 0:
                j_i = j_lo
            else:
                cos_a = jnp.cos(arg)
                j_hi = (sin_a * inv - cos_a) * inv             # j_1
                for m in range(2, i + 1):                      # upward recursion
                    j_lo, j_hi = j_hi, (2 * m - 1) * inv * j_hi - j_lo
                j_i = j_hi
            # Spherical-harmonic prefactor pref_i is pre-folded into prefnorm.
            out_ref[i] = (j_i * prefnorm_ref[i]) * env_b       # lane-dense (k, Et) store

    return kernel


def spherical_basis_forward(dist, angle, idx_kj, zeros_np, norm_np, pref_np,
                            cutoff=5.0, envelope_exponent=5, tile_e=512):
    """SphericalBasisLayer.forward.

    Heavy radial part computed once per edge in Pallas; the cheap per-triplet
    angular factor, the rbf[idx_kj] gather and the final (T, n*k) assembly are
    left to XLA (fused gather + multiply), as in the original module.
    """
    n, k = zeros_np.shape
    E = int(dist.shape[0])
    T = int(angle.shape[0])
    assert tile_e % 128 == 0, "tile_e must be a multiple of the 128-lane width"

    # Constants prepared in float64, cast once to f32 (correctly-rounded 1/z).
    zeros64 = zeros_np.astype(np.float64)
    prefnorm64 = pref_np.astype(np.float64)[:, None] * norm_np.astype(np.float64)
    zeros_in = jnp.asarray(zeros64.astype(np.float32).reshape(n, k, 1))
    inv_zeros_in = jnp.asarray((1.0 / zeros64).astype(np.float32).reshape(n, k, 1))
    prefnorm_in = jnp.asarray(prefnorm64.astype(np.float32).reshape(n, k, 1))

    # Pad the edge axis; padding with `cutoff` keeps 1/x finite and the envelope
    # zero (padded rows are also dropped before the gather, so never consumed).
    dist_f = jnp.asarray(dist, jnp.float32)
    Ep = ((E + tile_e - 1) // tile_e) * tile_e
    pad = Ep - E
    if pad:
        dist_f = jnp.concatenate(
            [dist_f, jnp.full((pad,), float(cutoff), jnp.float32)])
    dist_row = dist_f.reshape(1, Ep)

    kernel = make_rbf_edge_kernel(n, k, cutoff, envelope_exponent)
    const_spec = pl.BlockSpec((n, k, 1), lambda e: (0, 0, 0))

    rbf_nke = pl.pallas_call(
        kernel,
        out_shape=jax.ShapeDtypeStruct((n, k, Ep), jnp.float32),
        grid_spec=pltpu.PrefetchScalarGridSpec(
            num_scalar_prefetch=0,
            grid=(Ep // tile_e,),
            in_specs=[
                const_spec,                                     # zeros   (n,k,1)
                const_spec,                                     # 1/zeros (n,k,1)
                const_spec,                                     # pref*norm (n,k,1)
                pl.BlockSpec((1, tile_e), lambda e: (0, e)),    # dist row
            ],
            out_specs=pl.BlockSpec((n, k, tile_e), lambda e: (0, 0, e)),
        ),
        compiler_params=pltpu.CompilerParams(
            dimension_semantics=("parallel",),
        ),
    )(zeros_in, inv_zeros_in, prefnorm_in, dist_row)

    # Edge-sized layout fix-up (T/E cheaper than the old triplet-sized transpose).
    rbf_e = jnp.transpose(rbf_nke, (2, 0, 1)).reshape(Ep, n * k)[:E]   # (E, n*k)

    # Per-triplet angular factor: one cos + rolled Legendre recursion (pref_i is
    # already folded into the kernel's prefnorm constant). Cheap; XLA fuses it.
    ct = jnp.cos(jnp.asarray(angle, jnp.float32))
    P = [jnp.ones_like(ct), ct]
    for l in range(2, n):
        P.append(((2 * l - 1) * ct * P[l - 1] - (l - 1) * P[l - 2]) / l)
    cbf = jnp.stack(P[:n], axis=1)                                     # (T, n)

    # rbf[idx_kj] gather + broadcast multiply + reshape to (T, n*k).
    out = (jnp.take(rbf_e, idx_kj, axis=0).reshape(T, n, k)
           * cbf[:, :, None]).reshape(T, n * k)
    return out


# -----------------------------------------------------------------------------
# Float64 numpy reference (truth for the module's math, same f32 constants)
# -----------------------------------------------------------------------------
def reference_forward_np(dist, angle, idx_kj, zeros_f32, norm_f32, pref_f32,
                         cutoff=5.0, p=5):
    n, k = zeros_f32.shape
    zeros = zeros_f32.astype(np.float64)
    norm = norm_f32.astype(np.float64)
    pref = pref_f32.astype(np.float64)
    dist = np.asarray(dist, np.float64)
    angle = np.asarray(angle, np.float64)
    idx_kj = np.asarray(idx_kj)

    x = dist / cutoff
    a = -(p + 1) * (p + 2) / 2.0
    b = float(p * (p + 2))
    c = -p * (p + 1) / 2.0
    xp = x ** p
    env = np.where(x < 1.0, 1.0 / x + a * xp + b * xp * x + c * xp * x * x, 0.0)

    rbf = np.zeros((dist.shape[0], n, k), np.float64)
    for i in range(n):
        arg = zeros[i][None, :] * x[:, None]                   # (E, k)
        inv = 1.0 / arg
        s, co = np.sin(arg), np.cos(arg)
        j_lo = s * inv
        if i == 0:
            j_i = j_lo
        else:
            j_hi = (s * inv - co) * inv
            for m in range(2, i + 1):
                j_lo, j_hi = j_hi, (2 * m - 1) * inv * j_hi - j_lo
            j_i = j_hi
        rbf[:, i, :] = norm[i][None, :] * j_i
    rbf = env[:, None, None] * rbf

    ct = np.cos(angle)
    P = [np.ones_like(ct), ct]
    for l in range(2, n):
        P.append(((2 * l - 1) * ct * P[l - 1] - (l - 1) * P[l - 2]) / l)
    cbf = np.stack([pref[i] * P[i] for i in range(n)], axis=1)  # (T, n)

    out = (rbf[idx_kj] * cbf[:, :, None]).reshape(-1, n * k)
    return out


if __name__ == "__main__":
    num_spherical, num_radial = 7, 6
    cutoff, envelope_exponent = 5.0, 5
    E, T = 512, 2048                     # small demo shapes

    zeros_np, norm_np, pref_np = make_spherical_basis_params(num_spherical, num_radial)

    key = jax.random.PRNGKey(0)
    k1, k2, k3 = jax.random.split(key, 3)
    # Distances kept away from 0 so the (inherently unstable-in-f32) upward
    # Bessel recursion — present in the original module as well — stays
    # well-conditioned for the tolerance check below.
    dist = jax.random.uniform(k1, (E,), dtype=jnp.float32, minval=1.5, maxval=6.0)
    angle = jax.random.uniform(k2, (T,), dtype=jnp.float32,
                               minval=0.0, maxval=float(np.pi))
    idx_kj = jax.random.randint(k3, (T,), 0, E, dtype=jnp.int32)

    # tile_e=256 keeps the edge grid at 2 steps (both v7x TensorCores busy).
    out = spherical_basis_forward(dist, angle, idx_kj, zeros_np, norm_np, pref_np,
                                  cutoff=cutoff, envelope_exponent=envelope_exponent,
                                  tile_e=256)
    out = jax.block_until_ready(out)

    ref = reference_forward_np(np.asarray(dist), np.asarray(angle),
                               np.asarray(idx_kj), zeros_np, norm_np, pref_np,
                               cutoff=cutoff, p=envelope_exponent)

    np.testing.assert_allclose(np.asarray(out), ref, rtol=5e-3, atol=5e-3)
    print("KERNEL_OK")
</pallas_src>

<mosaic_0001>
module attributes {stable_mosaic.version = 11 : i64} {
  func.func @kernel(%arg0: i32, %arg1: memref<7x6x1xf32, #tpu.memory_space<vmem>>, %arg2: memref<7x6x1xf32, #tpu.memory_space<vmem>>, %arg3: memref<7x6x1xf32, #tpu.memory_space<vmem>>, %arg4: memref<1x256xf32, #tpu.memory_space<vmem>>, %arg5: memref<7x6x256xf32, #tpu.memory_space<vmem>>) attributes {dimension_semantics = [#tpu.dimension_semantics<parallel>], iteration_bounds = array<i64: 2>, scalar_prefetch = 0 : i64, scratch_operands = 0 : i64, tpu.core_type = #tpu.core_type<tc>, window_params = [{pipeline_mode = #tpu.pipeline_mode<synchronous>, transform_indices = @transform_0, window_bounds = array<i64: 7, 6, 1>}, {pipeline_mode = #tpu.pipeline_mode<synchronous>, transform_indices = @transform_1, window_bounds = array<i64: 7, 6, 1>}, {pipeline_mode = #tpu.pipeline_mode<synchronous>, transform_indices = @transform_2, window_bounds = array<i64: 7, 6, 1>}, {transform_indices = @transform_3, window_bounds = array<i64: 1, 256>}, {transform_indices = @transform_4, window_bounds = array<i64: 7, 6, 256>}]} {
    %c0 = arith.constant 0 : index
    %c0_0 = arith.constant 0 : index
    %0 = vector.load %arg4[%c0, %c0_0] : memref<1x256xf32, #tpu.memory_space<vmem>>, vector<1x256xf32>
    %cst = arith.constant 2.000000e-01 : f32
    %1 = vector.broadcast %cst : f32 to vector<1x256xf32>
    %2 = arith.mulf %0, %1 : vector<1x256xf32>
    %cst_1 = arith.constant 1.000000e+00 : f32
    %3 = vector.broadcast %cst_1 : f32 to vector<1x256xf32>
    %4 = arith.divf %3, %2 : vector<1x256xf32>
    %5 = arith.mulf %2, %2 : vector<1x256xf32>
    %6 = arith.mulf %5, %5 : vector<1x256xf32>
    %7 = arith.mulf %2, %6 : vector<1x256xf32>
    %cst_2 = arith.constant -2.100000e+01 : f32
    %8 = vector.broadcast %cst_2 : f32 to vector<1x256xf32>
    %9 = arith.mulf %8, %7 : vector<1x256xf32>
    %10 = arith.addf %4, %9 : vector<1x256xf32>
    %cst_3 = arith.constant 3.500000e+01 : f32
    %11 = vector.broadcast %cst_3 : f32 to vector<1x256xf32>
    %12 = arith.mulf %11, %7 : vector<1x256xf32>
    %13 = arith.mulf %12, %2 : vector<1x256xf32>
    %14 = arith.addf %10, %13 : vector<1x256xf32>
    %cst_4 = arith.constant -1.500000e+01 : f32
    %15 = vector.broadcast %cst_4 : f32 to vector<1x256xf32>
    %16 = arith.mulf %15, %7 : vector<1x256xf32>
    %17 = arith.mulf %16, %2 : vector<1x256xf32>
    %18 = arith.mulf %17, %2 : vector<1x256xf32>
    %19 = arith.addf %14, %18 : vector<1x256xf32>
    %cst_5 = arith.constant 1.000000e+00 : f32
    %20 = vector.broadcast %cst_5 : f32 to vector<1x256xf32>
    %21 = arith.cmpf olt, %2, %20 : vector<1x256xf32>
    %cst_6 = arith.constant 0.000000e+00 : f32
    %22 = vector.broadcast %cst_6 : f32 to vector<1x256xf32>
    %23 = arith.select %21, %19, %22 : vector<1x256xi1>, vector<1x256xf32>
    %24 = vector.shape_cast %2 : vector<1x256xf32> to vector<1x256xf32>
    %25 = vector.broadcast %24 : vector<1x256xf32> to vector<6x256xf32>
    %26 = vector.shape_cast %4 : vector<1x256xf32> to vector<1x256xf32>
    %27 = vector.broadcast %26 : vector<1x256xf32> to vector<6x256xf32>
    %28 = vector.shape_cast %23 : vector<1x256xf32> to vector<1x256xf32>
    %29 = vector.broadcast %28 : vector<1x256xf32> to vector<6x256xf32>
    %c0_7 = arith.constant 0 : index
    %c0_8 = arith.constant 0 : index
    %c0_9 = arith.constant 0 : index
    %30 = vector.load %arg1[%c0_7, %c0_8, %c0_9] : memref<7x6x1xf32, #tpu.memory_space<vmem>>, vector<1x6x1xf32>
    %31 = vector.shape_cast %30 : vector<1x6x1xf32> to vector<6x1xf32>
    %32 = vector.broadcast %31 : vector<6x1xf32> to vector<6x256xf32>
    %33 = arith.mulf %25, %32 : vector<6x256xf32>
    %c0_10 = arith.constant 0 : index
    %c0_11 = arith.constant 0 : index
    %c0_12 = arith.constant 0 : index
    %34 = vector.load %arg2[%c0_10, %c0_11, %c0_12] : memref<7x6x1xf32, #tpu.memory_space<vmem>>, vector<1x6x1xf32>
    %35 = vector.shape_cast %34 : vector<1x6x1xf32> to vector<6x1xf32>
    %36 = vector.broadcast %35 : vector<6x1xf32> to vector<6x256xf32>
    %37 = arith.mulf %27, %36 : vector<6x256xf32>
    %38 = math.sin %33 : vector<6x256xf32>
    %39 = arith.mulf %38, %37 : vector<6x256xf32>
    %c0_13 = arith.constant 0 : index
    %c0_14 = arith.constant 0 : index
    %c0_15 = arith.constant 0 : index
    %40 = vector.load %arg3[%c0_13, %c0_14, %c0_15] : memref<7x6x1xf32, #tpu.memory_space<vmem>>, vector<1x6x1xf32>
    %41 = vector.shape_cast %40 : vector<1x6x1xf32> to vector<6x1xf32>
    %42 = vector.broadcast %41 : vector<6x1xf32> to vector<6x256xf32>
    %43 = arith.mulf %39, %42 : vector<6x256xf32>
    %44 = arith.mulf %43, %29 : vector<6x256xf32>
    %c0_16 = arith.constant 0 : index
    %c0_17 = arith.constant 0 : index
    %c0_18 = arith.constant 0 : index
    %45 = vector.load %arg5[%c0_16, %c0_17, %c0_18] : memref<7x6x256xf32, #tpu.memory_space<vmem>>, vector<1x6x256xf32>
    %46 = vector.shape_cast %45 : vector<1x6x256xf32> to vector<6x256xf32>
    %47 = vector.shape_cast %44 : vector<6x256xf32> to vector<1x6x256xf32>
    tpu.vector_store %arg5[%c0_16, %c0_17, %c0_18], %47 {strides = array<i32>} : memref<7x6x256xf32, #tpu.memory_space<vmem>>, vector<1x6x256xf32>,
    %c1 = arith.constant 1 : index
    %c0_19 = arith.constant 0 : index
    %c0_20 = arith.constant 0 : index
    %48 = vector.load %arg1[%c1, %c0_19, %c0_20] : memref<7x6x1xf32, #tpu.memory_space<vmem>>, vector<1x6x1xf32>
    %49 = vector.shape_cast %48 : vector<1x6x1xf32> to vector<6x1xf32>
    %50 = vector.broadcast %49 : vector<6x1xf32> to vector<6x256xf32>
    %51 = arith.mulf %25, %50 : vector<6x256xf32>
    %c1_21 = arith.constant 1 : index
    %c0_22 = arith.constant 0 : index
    %c0_23 = arith.constant 0 : index
    %52 = vector.load %arg2[%c1_21, %c0_22, %c0_23] : memref<7x6x1xf32, #tpu.memory_space<vmem>>, vector<1x6x1xf32>
    %53 = vector.shape_cast %52 : vector<1x6x1xf32> to vector<6x1xf32>
    %54 = vector.broadcast %53 : vector<6x1xf32> to vector<6x256xf32>
    %55 = arith.mulf %27, %54 : vector<6x256xf32>
    %56 = math.sin %51 : vector<6x256xf32>
    %57 = math.cos %51 : vector<6x256xf32>
    %58 = arith.mulf %56, %55 : vector<6x256xf32>
    %59 = arith.subf %58, %57 : vector<6x256xf32>
    %60 = arith.mulf %59, %55 : vector<6x256xf32>
    %c1_24 = arith.constant 1 : index
    %c0_25 = arith.constant 0 : index
    %c0_26 = arith.constant 0 : index
    %61 = vector.load %arg3[%c1_24, %c0_25, %c0_26] : memref<7x6x1xf32, #tpu.memory_space<vmem>>, vector<1x6x1xf32>
    %62 = vector.shape_cast %61 : vector<1x6x1xf32> to vector<6x1xf32>
    %63 = vector.broadcast %62 : vector<6x1xf32> to vector<6x256xf32>
    %64 = arith.mulf %60, %63 : vector<6x256xf32>
    %65 = arith.mulf %64, %29 : vector<6x256xf32>
    %c1_27 = arith.constant 1 : index
    %c0_28 = arith.constant 0 : index
    %c0_29 = arith.constant 0 : index
    %66 = vector.load %arg5[%c1_27, %c0_28, %c0_29] : memref<7x6x256xf32, #tpu.memory_space<vmem>>, vector<1x6x256xf32>
    %67 = vector.shape_cast %66 : vector<1x6x256xf32> to vector<6x256xf32>
    %68 = vector.shape_cast %65 : vector<6x256xf32> to vector<1x6x256xf32>
    tpu.vector_store %arg5[%c1_27, %c0_28, %c0_29], %68 {strides = array<i32>} : memref<7x6x256xf32, #tpu.memory_space<vmem>>, vector<1x6x256xf32>,
    %c2 = arith.constant 2 : index
    %c0_30 = arith.constant 0 : index
    %c0_31 = arith.constant 0 : index
    %69 = vector.load %arg1[%c2, %c0_30, %c0_31] : memref<7x6x1xf32, #tpu.memory_space<vmem>>, vector<1x6x1xf32>
    %70 = vector.shape_cast %69 : vector<1x6x1xf32> to vector<6x1xf32>
    %71 = vector.broadcast %70 : vector<6x1xf32> to vector<6x256xf32>
    %72 = arith.mulf %25, %71 : vector<6x256xf32>
    %c2_32 = arith.constant 2 : index
    %c0_33 = arith.constant 0 : index
    %c0_34 = arith.constant 0 : index
    %73 = vector.load %arg2[%c2_32, %c0_33, %c0_34] : memref<7x6x1xf32, #tpu.memory_space<vmem>>, vector<1x6x1xf32>
    %74 = vector.shape_cast %73 : vector<1x6x1xf32> to vector<6x1xf32>
    %75 = vector.broadcast %74 : vector<6x1xf32> to vector<6x256xf32>
    %76 = arith.mulf %27, %75 : vector<6x256xf32>
    %77 = math.sin %72 : vector<6x256xf32>
    %78 = arith.mulf %77, %76 : vector<6x256xf32>
    %79 = math.cos %72 : vector<6x256xf32>
    %80 = arith.mulf %77, %76 : vector<6x256xf32>
    %81 = arith.subf %80, %79 : vector<6x256xf32>
    %82 = arith.mulf %81, %76 : vector<6x256xf32>
    %cst_35 = arith.constant 3.000000e+00 : f32
    %83 = vector.broadcast %cst_35 : f32 to vector<6x256xf32>
    %84 = arith.mulf %83, %76 : vector<6x256xf32>
    %85 = arith.mulf %84, %82 : vector<6x256xf32>
    %86 = arith.subf %85, %78 : vector<6x256xf32>
    %c2_36 = arith.constant 2 : index
    %c0_37 = arith.constant 0 : index
    %c0_38 = arith.constant 0 : index
    %87 = vector.load %arg3[%c2_36, %c0_37, %c0_38] : memref<7x6x1xf32, #tpu.memory_space<vmem>>, vector<1x6x1xf32>
    %88 = vector.shape_cast %87 : vector<1x6x1xf32> to vector<6x1xf32>
    %89 = vector.broadcast %88 : vector<6x1xf32> to vector<6x256xf32>
    %90 = arith.mulf %86, %89 : vector<6x256xf32>
    %91 = arith.mulf %90, %29 : vector<6x256xf32>
    %c2_39 = arith.constant 2 : index
    %c0_40 = arith.constant 0 : index
    %c0_41 = arith.constant 0 : index
    %92 = vector.load %arg5[%c2_39, %c0_40, %c0_41] : memref<7x6x256xf32, #tpu.memory_space<vmem>>, vector<1x6x256xf32>
    %93 = vector.shape_cast %92 : vector<1x6x256xf32> to vector<6x256xf32>
    %94 = vector.shape_cast %91 : vector<6x256xf32> to vector<1x6x256xf32>
    tpu.vector_store %arg5[%c2_39, %c0_40, %c0_41], %94 {strides = array<i32>} : memref<7x6x256xf32, #tpu.memory_space<vmem>>, vector<1x6x256xf32>,
    %c3 = arith.constant 3 : index
    %c0_42 = arith.constant 0 : index
    %c0_43 = arith.constant 0 : index
    %95 = vector.load %arg1[%c3, %c0_42, %c0_43] : memref<7x6x1xf32, #tpu.memory_space<vmem>>, vector<1x6x1xf32>
    %96 = vector.shape_cast %95 : vector<1x6x1xf32> to vector<6x1xf32>
    %97 = vector.broadcast %96 : vector<6x1xf32> to vector<6x256xf32>
    %98 = arith.mulf %25, %97 : vector<6x256xf32>
    %c3_44 = arith.constant 3 : index
    %c0_45 = arith.constant 0 : index
    %c0_46 = arith.constant 0 : index
    %99 = vector.load %arg2[%c3_44, %c0_45, %c0_46] : memref<7x6x1xf32, #tpu.memory_space<vmem>>, vector<1x6x1xf32>
    %100 = vector.shape_cast %99 : vector<1x6x1xf32> to vector<6x1xf32>
    %101 = vector.broadcast %100 : vector<6x1xf32> to vector<6x256xf32>
    %102 = arith.mulf %27, %101 : vector<6x256xf32>
    %103 = math.sin %98 : vector<6x256xf32>
    %104 = arith.mulf %103, %102 : vector<6x256xf32>
    %105 = math.cos %98 : vector<6x256xf32>
    %106 = arith.mulf %103, %102 : vector<6x256xf32>
    %107 = arith.subf %106, %105 : vector<6x256xf32>
    %108 = arith.mulf %107, %102 : vector<6x256xf32>
    %cst_47 = arith.constant 3.000000e+00 : f32
    %109 = vector.broadcast %cst_47 : f32 to vector<6x256xf32>
    %110 = arith.mulf %109, %102 : vector<6x256xf32>
    %111 = arith.mulf %110, %108 : vector<6x256xf32>
    %112 = arith.subf %111, %104 : vector<6x256xf32>
    %cst_48 = arith.constant 5.000000e+00 : f32
    %113 = vector.broadcast %cst_48 : f32 to vector<6x256xf32>
    %114 = arith.mulf %113, %102 : vector<6x256xf32>
    %115 = arith.mulf %114, %112 : vector<6x256xf32>
    %116 = arith.subf %115, %108 : vector<6x256xf32>
    %c3_49 = arith.constant 3 : index
    %c0_50 = arith.constant 0 : index
    %c0_51 = arith.constant 0 : index
    %117 = vector.load %arg3[%c3_49, %c0_50, %c0_51] : memref<7x6x1xf32, #tpu.memory_space<vmem>>, vector<1x6x1xf32>
    %118 = vector.shape_cast %117 : vector<1x6x1xf32> to vector<6x1xf32>
    %119 = vector.broadcast %118 : vector<6x1xf32> to vector<6x256xf32>
    %120 = arith.mulf %116, %119 : vector<6x256xf32>
    %121 = arith.mulf %120, %29 : vector<6x256xf32>
    %c3_52 = arith.constant 3 : index
    %c0_53 = arith.constant 0 : index
    %c0_54 = arith.constant 0 : index
    %122 = vector.load %arg5[%c3_52, %c0_53, %c0_54] : memref<7x6x256xf32, #tpu.memory_space<vmem>>, vector<1x6x256xf32>
    %123 = vector.shape_cast %122 : vector<1x6x256xf32> to vector<6x256xf32>
    %124 = vector.shape_cast %121 : vector<6x256xf32> to vector<1x6x256xf32>
    tpu.vector_store %arg5[%c3_52, %c0_53, %c0_54], %124 {strides = array<i32>} : memref<7x6x256xf32, #tpu.memory_space<vmem>>, vector<1x6x256xf32>,
    %c4 = arith.constant 4 : index
    %c0_55 = arith.constant 0 : index
    %c0_56 = arith.constant 0 : index
    %125 = vector.load %arg1[%c4, %c0_55, %c0_56] : memref<7x6x1xf32, #tpu.memory_space<vmem>>, vector<1x6x1xf32>
    %126 = vector.shape_cast %125 : vector<1x6x1xf32> to vector<6x1xf32>
    %127 = vector.broadcast %126 : vector<6x1xf32> to vector<6x256xf32>
    %128 = arith.mulf %25, %127 : vector<6x256xf32>
    %c4_57 = arith.constant 4 : index
    %c0_58 = arith.constant 0 : index
    %c0_59 = arith.constant 0 : index
    %129 = vector.load %arg2[%c4_57, %c0_58, %c0_59] : memref<7x6x1xf32, #tpu.memory_space<vmem>>, vector<1x6x1xf32>
    %130 = vector.shape_cast %129 : vector<1x6x1xf32> to vector<6x1xf32>
    %131 = vector.broadcast %130 : vector<6x1xf32> to vector<6x256xf32>
    %132 = arith.mulf %27, %131 : vector<6x256xf32>
    %133 = math.sin %128 : vector<6x256xf32>
    %134 = arith.mulf %133, %132 : vector<6x256xf32>
    %135 = math.cos %128 : vector<6x256xf32>
    %136 = arith.mulf %133, %132 : vector<6x256xf32>
    %137 = arith.subf %136, %135 : vector<6x256xf32>
    %138 = arith.mulf %137, %132 : vector<6x256xf32>
    %cst_60 = arith.constant 3.000000e+00 : f32
    %139 = vector.broadcast %cst_60 : f32 to vector<6x256xf32>
    %140 = arith.mulf %139, %132 : vector<6x256xf32>
    %141 = arith.mulf %140, %138 : vector<6x256xf32>
    %142 = arith.subf %141, %134 : vector<6x256xf32>
    %cst_61 = arith.constant 5.000000e+00 : f32
    %143 = vector.broadcast %cst_61 : f32 to vector<6x256xf32>
    %144 = arith.mulf %143, %132 : vector<6x256xf32>
    %145 = arith.mulf %144, %142 : vector<6x256xf32>
    %146 = arith.subf %145, %138 : vector<6x256xf32>
    %cst_62 = arith.constant 7.000000e+00 : f32
    %147 = vector.broadcast %cst_62 : f32 to vector<6x256xf32>
    %148 = arith.mulf %147, %132 : vector<6x256xf32>
    %149 = arith.mulf %148, %146 : vector<6x256xf32>
    %150 = arith.subf %149, %142 : vector<6x256xf32>
    %c4_63 = arith.constant 4 : index
    %c0_64 = arith.constant 0 : index
    %c0_65 = arith.constant 0 : index
    %151 = vector.load %arg3[%c4_63, %c0_64, %c0_65] : memref<7x6x1xf32, #tpu.memory_space<vmem>>, vector<1x6x1xf32>
    %152 = vector.shape_cast %151 : vector<1x6x1xf32> to vector<6x1xf32>
    %153 = vector.broadcast %152 : vector<6x1xf32> to vector<6x256xf32>
    %154 = arith.mulf %150, %153 : vector<6x256xf32>
    %155 = arith.mulf %154, %29 : vector<6x256xf32>
    %c4_66 = arith.constant 4 : index
    %c0_67 = arith.constant 0 : index
    %c0_68 = arith.constant 0 : index
    %156 = vector.load %arg5[%c4_66, %c0_67, %c0_68] : memref<7x6x256xf32, #tpu.memory_space<vmem>>, vector<1x6x256xf32>
    %157 = vector.shape_cast %156 : vector<1x6x256xf32> to vector<6x256xf32>
    %158 = vector.shape_cast %155 : vector<6x256xf32> to vector<1x6x256xf32>
    tpu.vector_store %arg5[%c4_66, %c0_67, %c0_68], %158 {strides = array<i32>} : memref<7x6x256xf32, #tpu.memory_space<vmem>>, vector<1x6x256xf32>,
    %c5 = arith.constant 5 : index
    %c0_69 = arith.constant 0 : index
    %c0_70 = arith.constant 0 : index
    %159 = vector.load %arg1[%c5, %c0_69, %c0_70] : memref<7x6x1xf32, #tpu.memory_space<vmem>>, vector<1x6x1xf32>
    %160 = vector.shape_cast %159 : vector<1x6x1xf32> to vector<6x1xf32>
    %161 = vector.broadcast %160 : vector<6x1xf32> to vector<6x256xf32>
    %162 = arith.mulf %25, %161 : vector<6x256xf32>
    %c5_71 = arith.constant 5 : index
    %c0_72 = arith.constant 0 : index
    %c0_73 = arith.constant 0 : index
    %163 = vector.load %arg2[%c5_71, %c0_72, %c0_73] : memref<7x6x1xf32, #tpu.memory_space<vmem>>, vector<1x6x1xf32>
    %164 = vector.shape_cast %163 : vector<1x6x1xf32> to vector<6x1xf32>
    %165 = vector.broadcast %164 : vector<6x1xf32> to vector<6x256xf32>
    %166 = arith.mulf %27, %165 : vector<6x256xf32>
    %167 = math.sin %162 : vector<6x256xf32>
    %168 = arith.mulf %167, %166 : vector<6x256xf32>
    %169 = math.cos %162 : vector<6x256xf32>
    %170 = arith.mulf %167, %166 : vector<6x256xf32>
    %171 = arith.subf %170, %169 : vector<6x256xf32>
    %172 = arith.mulf %171, %166 : vector<6x256xf32>
    %cst_74 = arith.constant 3.000000e+00 : f32
    %173 = vector.broadcast %cst_74 : f32 to vector<6x256xf32>
    %174 = arith.mulf %173, %166 : vector<6x256xf32>
    %175 = arith.mulf %174, %172 : vector<6x256xf32>
    %176 = arith.subf %175, %168 : vector<6x256xf32>
    %cst_75 = arith.constant 5.000000e+00 : f32
    %177 = vector.broadcast %cst_75 : f32 to vector<6x256xf32>
    %178 = arith.mulf %177, %166 : vector<6x256xf32>
    %179 = arith.mulf %178, %176 : vector<6x256xf32>
    %180 = arith.subf %179, %172 : vector<6x256xf32>
    %cst_76 = arith.constant 7.000000e+00 : f32
    %181 = vector.broadcast %cst_76 : f32 to vector<6x256xf32>
    %182 = arith.mulf %181, %166 : vector<6x256xf32>
    %183 = arith.mulf %182, %180 : vector<6x256xf32>
    %184 = arith.subf %183, %176 : vector<6x256xf32>
    %cst_77 = arith.constant 9.000000e+00 : f32
    %185 = vector.broadcast %cst_77 : f32 to vector<6x256xf32>
    %186 = arith.mulf %185, %166 : vector<6x256xf32>
    %187 = arith.mulf %186, %184 : vector<6x256xf32>
    %188 = arith.subf %187, %180 : vector<6x256xf32>
    %c5_78 = arith.constant 5 : index
    %c0_79 = arith.constant 0 : index
    %c0_80 = arith.constant 0 : index
    %189 = vector.load %arg3[%c5_78, %c0_79, %c0_80] : memref<7x6x1xf32, #tpu.memory_space<vmem>>, vector<1x6x1xf32>
    %190 = vector.shape_cast %189 : vector<1x6x1xf32> to vector<6x1xf32>
    %191 = vector.broadcast %190 : vector<6x1xf32> to vector<6x256xf32>
    %192 = arith.mulf %188, %191 : vector<6x256xf32>
    %193 = arith.mulf %192, %29 : vector<6x256xf32>
    %c5_81 = arith.constant 5 : index
    %c0_82 = arith.constant 0 : index
    %c0_83 = arith.constant 0 : index
    %194 = vector.load %arg5[%c5_81, %c0_82, %c0_83] : memref<7x6x256xf32, #tpu.memory_space<vmem>>, vector<1x6x256xf32>
    %195 = vector.shape_cast %194 : vector<1x6x256xf32> to vector<6x256xf32>
    %196 = vector.shape_cast %193 : vector<6x256xf32> to vector<1x6x256xf32>
    tpu.vector_store %arg5[%c5_81, %c0_82, %c0_83], %196 {strides = array<i32>} : memref<7x6x256xf32, #tpu.memory_space<vmem>>, vector<1x6x256xf32>,
    %c6 = arith.constant 6 : index
    %c0_84 = arith.constant 0 : index
    %c0_85 = arith.constant 0 : index
    %197 = vector.load %arg1[%c6, %c0_84, %c0_85] : memref<7x6x1xf32, #tpu.memory_space<vmem>>, vector<1x6x1xf32>
    %198 = vector.shape_cast %197 : vector<1x6x1xf32> to vector<6x1xf32>
    %199 = vector.broadcast %198 : vector<6x1xf32> to vector<6x256xf32>
    %200 = arith.mulf %25, %199 : vector<6x256xf32>
    %c6_86 = arith.constant 6 : index
    %c0_87 = arith.constant 0 : index
    %c0_88 = arith.constant 0 : index
    %201 = vector.load %arg2[%c6_86, %c0_87, %c0_88] : memref<7x6x1xf32, #tpu.memory_space<vmem>>, vector<1x6x1xf32>
    %202 = vector.shape_cast %201 : vector<1x6x1xf32> to vector<6x1xf32>
    %203 = vector.broadcast %202 : vector<6x1xf32> to vector<6x256xf32>
    %204 = arith.mulf %27, %203 : vector<6x256xf32>
    %205 = math.sin %200 : vector<6x256xf32>
    %206 = arith.mulf %205, %204 : vector<6x256xf32>
    %207 = math.cos %200 : vector<6x256xf32>
    %208 = arith.mulf %205, %204 : vector<6x256xf32>
    %209 = arith.subf %208, %207 : vector<6x256xf32>
    %210 = arith.mulf %209, %204 : vector<6x256xf32>
    %cst_89 = arith.constant 3.000000e+00 : f32
    %211 = vector.broadcast %cst_89 : f32 to vector<6x256xf32>
    %212 = arith.mulf %211, %204 : vector<6x256xf32>
    %213 = arith.mulf %212, %210 : vector<6x256xf32>
    %214 = arith.subf %213, %206 : vector<6x256xf32>
    %cst_90 = arith.constant 5.000000e+00 : f32
    %215 = vector.broadcast %cst_90 : f32 to vector<6x256xf32>
    %216 = arith.mulf %215, %204 : vector<6x256xf32>
    %217 = arith.mulf %216, %214 : vector<6x256xf32>
    %218 = arith.subf %217, %210 : vector<6x256xf32>
    %cst_91 = arith.constant 7.000000e+00 : f32
    %219 = vector.broadcast %cst_91 : f32 to vector<6x256xf32>
    %220 = arith.mulf %219, %204 : vector<6x256xf32>
    %221 = arith.mulf %220, %218 : vector<6x256xf32>
    %222 = arith.subf %221, %214 : vector<6x256xf32>
    %cst_92 = arith.constant 9.000000e+00 : f32
    %223 = vector.broadcast %cst_92 : f32 to vector<6x256xf32>
    %224 = arith.mulf %223, %204 : vector<6x256xf32>
    %225 = arith.mulf %224, %222 : vector<6x256xf32>
    %226 = arith.subf %225, %218 : vector<6x256xf32>
    %cst_93 = arith.constant 1.100000e+01 : f32
    %227 = vector.broadcast %cst_93 : f32 to vector<6x256xf32>
    %228 = arith.mulf %227, %204 : vector<6x256xf32>
    %229 = arith.mulf %228, %226 : vector<6x256xf32>
    %230 = arith.subf %229, %222 : vector<6x256xf32>
    %c6_94 = arith.constant 6 : index
    %c0_95 = arith.constant 0 : index
    %c0_96 = arith.constant 0 : index
    %231 = vector.load %arg3[%c6_94, %c0_95, %c0_96] : memref<7x6x1xf32, #tpu.memory_space<vmem>>, vector<1x6x1xf32>
    %232 = vector.shape_cast %231 : vector<1x6x1xf32> to vector<6x1xf32>
    %233 = vector.broadcast %232 : vector<6x1xf32> to vector<6x256xf32>
    %234 = arith.mulf %230, %233 : vector<6x256xf32>
    %235 = arith.mulf %234, %29 : vector<6x256xf32>
    %c6_97 = arith.constant 6 : index
    %c0_98 = arith.constant 0 : index
    %c0_99 = arith.constant 0 : index
    %236 = vector.load %arg5[%c6_97, %c0_98, %c0_99] : memref<7x6x256xf32, #tpu.memory_space<vmem>>, vector<1x6x256xf32>
    %237 = vector.shape_cast %236 : vector<1x6x256xf32> to vector<6x256xf32>
    %238 = vector.shape_cast %235 : vector<6x256xf32> to vector<1x6x256xf32>
    tpu.vector_store %arg5[%c6_97, %c0_98, %c0_99], %238 {strides = array<i32>} : memref<7x6x256xf32, #tpu.memory_space<vmem>>, vector<1x6x256xf32>,
    return
  }
  func.func @transform_0(%arg0: i32) -> (i32, i32, i32) {
    %c0_i32 = arith.constant 0 : i32
    %c0_i32_0 = arith.constant 0 : i32
    %c0_i32_1 = arith.constant 0 : i32
    %c0_i32_2 = arith.constant 0 : i32
    return %c0_i32, %c0_i32_0, %c0_i32_1 : i32, i32, i32
  }
  func.func @transform_1(%arg0: i32) -> (i32, i32, i32) {
    %c0_i32 = arith.constant 0 : i32
    %c0_i32_0 = arith.constant 0 : i32
    %c0_i32_1 = arith.constant 0 : i32
    %c0_i32_2 = arith.constant 0 : i32
    return %c0_i32, %c0_i32_0, %c0_i32_1 : i32, i32, i32
  }
  func.func @transform_2(%arg0: i32) -> (i32, i32, i32) {
    %c0_i32 = arith.constant 0 : i32
    %c0_i32_0 = arith.constant 0 : i32
    %c0_i32_1 = arith.constant 0 : i32
    %c0_i32_2 = arith.constant 0 : i32
    return %c0_i32, %c0_i32_0, %c0_i32_1 : i32, i32, i32
  }
  func.func @transform_3(%arg0: i32) -> (i32, i32) {
    %c0_i32 = arith.constant 0 : i32
    %c0_i32_0 = arith.constant 0 : i32
    return %c0_i32, %arg0 : i32, i32
  }
  func.func @transform_4(%arg0: i32) -> (i32, i32, i32) {
    %c0_i32 = arith.constant 0 : i32
    %c0_i32_0 = arith.constant 0 : i32
    %c0_i32_1 = arith.constant 0 : i32
    return %c0_i32, %c0_i32_0, %arg0 : i32, i32, i32
  }
}

</mosaic_0001>

<llo_original>
// kernel: tpu_custom_call.1
$region0: #{tpu_custom_call.1}
  #allocation0 [shape = 'u32[]', space=smem, size = 0x4, offset = 0x4, fixed_abs, tag = 'smem constant byte address 0x4 - core index']
  #allocation1 [shape = 'u32[144,128]{1,0:T(1,128)}', space=vmem, size = 0x12000, scoped, tag = 'internal scratch']
  %s0 = inlined_call_operand.vmem [shape: f32[7,6,1], index: 0, kind: input, shape index: {}]
  %s1 = inlined_call_operand.vmem [shape: f32[7,6,1], index: 1, kind: input, shape index: {}]
  %s2 = inlined_call_operand.vmem [shape: f32[7,6,1], index: 2, kind: input, shape index: {}]
  %s3 = inlined_call_operand.vmem [shape: f32[1,512], index: 3, kind: input, shape index: {}]
  %s4 = inlined_call_operand.vmem [shape: f32[7,6,512], index: 4, kind: output, shape index: {}]
  %s5 = sld [smem:[#allocation0]]
  $region68: #{tpu_custom_call.1} parent=0
    _
  %s7 = ssub.s32 1, %s5
  %s8 = scalar_select 0, %s7, %s5
  $region1: #{tpu_custom_call.1} parent=0
    #allocation2 [shape = 'u8[114688]{0}', space=vmem, size = 0x1c000, scoped, tag = 'output window, operand 0']
    loop: start=0, step=1, limit=4
    $region2: #{tpu_custom_call.1} parent=1 // loop_pre_header
      _
    $region3: #{tpu_custom_call.1} parent=1 // loop_header
      %s10 = sphi 0, %s14
      %p11 = scmp.ge.s32.totalorder %s10, 4
      %s18 = sphi 0, %s18
      %s20 = sphi 0, %s18
      %s21 = sphi 0, %s20
      %s35 = sphi 0, %s21
      %s39 = sphi 0, %s39
      %s41 = sphi 0, %s39
      %s42 = sphi 0, %s41
      %s56 = sphi 0, %s42
      %s60 = sphi 0, %s60
      %s62 = sphi 0, %s60
      %s63 = sphi 0, %s62
      %s77 = sphi 0, %s63
      %s83 = sphi 0, %s85
      %s86 = sphi 0, %s83
      %s87 = sphi 0, %s86
      %s103 = sphi 0, %s87
      %s109 = sphi 0, %s111
      %s112 = sphi 0, %s109
      %s113 = sphi 0, %s112
      %s129 = sphi 0, %s113
    $region4: #{tpu_custom_call.1} parent=1 // loop_header_branch
      %13 = sbr.rel (%p11) target = $region8
    $region5: #{tpu_custom_call.1} parent=1 // loop_body
      %s15 = ssub.s32 %s10, 1
      %s16 = ssub.s32 %s10, 2
      %s17 = sadd.s32 %s10, 1
      %s19 = sadd.s32 %s18, 1
      %p22 = scmp.eq.s32.totalorder %s10, 1
      %p23 = scmp.ne.s32.totalorder %s18, %s20
      %p24 = scmp.eq.s32.totalorder %s10, 0
      %p25 = por %p23, %p24
      %p26 = scmp.ne.s32.totalorder %s18, %s20
      %p27 = scmp.eq.s32.totalorder %s15, 1
      %p28 = por %p26, %p27
      %p29 = scmp.ne.s32.totalorder %s20, %s21
      %p30 = scmp.eq.s32.totalorder %s15, 0
      %p31 = por %p29, %p30
      %p32 = scmp.ne.s32.totalorder %s20, %s21
      %p33 = scmp.eq.s32.totalorder %s16, 1
      %p34 = por %p32, %p33
      %p36 = scmp.ne.s32.totalorder %s21, %s35
      %p37 = scmp.eq.s32.totalorder %s16, 0
      %p38 = por %p36, %p37
      %s40 = sadd.s32 %s39, 1
      %p43 = scmp.eq.s32.totalorder %s10, 1
      %p44 = scmp.ne.s32.totalorder %s39, %s41
      %p45 = scmp.eq.s32.totalorder %s10, 0
      %p46 = por %p44, %p45
      %p47 = scmp.ne.s32.totalorder %s39, %s41
      %p48 = scmp.eq.s32.totalorder %s15, 1
      %p49 = por %p47, %p48
      %p50 = scmp.ne.s32.totalorder %s41, %s42
      %p51 = scmp.eq.s32.totalorder %s15, 0
      %p52 = por %p50, %p51
      %p53 = scmp.ne.s32.totalorder %s41, %s42
      %p54 = scmp.eq.s32.totalorder %s16, 1
      %p55 = por %p53, %p54
      %p57 = scmp.ne.s32.totalorder %s42, %s56
      %p58 = scmp.eq.s32.totalorder %s16, 0
      %p59 = por %p57, %p58
      %s61 = sadd.s32 %s60, 1
      %p64 = scmp.eq.s32.totalorder %s10, 1
      %p65 = scmp.ne.s32.totalorder %s60, %s62
      %p66 = scmp.eq.s32.totalorder %s10, 0
      %p67 = por %p65, %p66
      %p68 = scmp.ne.s32.totalorder %s60, %s62
      %p69 = scmp.eq.s32.totalorder %s15, 1
      %p70 = por %p68, %p69
      %p71 = scmp.ne.s32.totalorder %s62, %s63
      %p72 = scmp.eq.s32.totalorder %s15, 0
      %p73 = por %p71, %p72
      %p74 = scmp.ne.s32.totalorder %s62, %s63
      %p75 = scmp.eq.s32.totalorder %s16, 1
      %p76 = por %p74, %p75
      %p78 = scmp.ne.s32.totalorder %s63, %s77
      %p79 = scmp.eq.s32.totalorder %s16, 0
      %p80 = por %p78, %p79
      %s81 = ssub.s32 %s10, %s17
      %p82 = scmp.eq.s32.totalorder %s81, 0
      %s84 = sadd.s32 %s83, 1
      %s85 = scalar_select %p82, %s83, %s84
      %p88 = pneg %p82
      %p89 = scmp.eq.s32.totalorder %s10, 1
      %p90 = por %p88, %p89
      %p91 = scmp.ne.s32.totalorder %s83, %s86
      %p92 = scmp.eq.s32.totalorder %s10, 0
      %p93 = por %p91, %p92
      %p94 = scmp.ne.s32.totalorder %s83, %s86
      %p95 = scmp.eq.s32.totalorder %s15, 1
      %p96 = por %p94, %p95
      %p97 = scmp.ne.s32.totalorder %s86, %s87
      %p98 = scmp.eq.s32.totalorder %s15, 0
      %p99 = por %p97, %p98
      %p100 = scmp.ne.s32.totalorder %s86, %s87
      %p101 = scmp.eq.s32.totalorder %s16, 1
      %p102 = por %p100, %p101
      %p104 = scmp.ne.s32.totalorder %s87, %s103
      %p105 = scmp.eq.s32.totalorder %s16, 0
      %p106 = por %p104, %p105
      %s107 = ssub.s32 %s10, %s17
      %p108 = scmp.eq.s32.totalorder %s107, 0
      %s110 = sadd.s32 %s109, 1
      %s111 = scalar_select %p108, %s109, %s110
      %p114 = pneg %p108
      %p115 = scmp.eq.s32.totalorder %s10, 1
      %p116 = por %p114, %p115
      %p117 = scmp.ne.s32.totalorder %s109, %s112
      %p118 = scmp.eq.s32.totalorder %s10, 0
      %p119 = por %p117, %p118
      %p120 = scmp.ne.s32.totalorder %s109, %s112
      %p121 = scmp.eq.s32.totalorder %s15, 1
      %p122 = por %p120, %p121
      %p123 = scmp.ne.s32.totalorder %s112, %s113
      %p124 = scmp.eq.s32.totalorder %s15, 0
      %p125 = por %p123, %p124
      %p126 = scmp.ne.s32.totalorder %s112, %s113
      %p127 = scmp.eq.s32.totalorder %s16, 1
      %p128 = por %p126, %p127
      %p130 = scmp.ne.s32.totalorder %s113, %s129
      %p131 = scmp.eq.s32.totalorder %s16, 0
      %p132 = por %p130, %p131
      %p133 = scmp.le.s32.totalorder 1, %s10
      %p134 = scmp.lt.s32.totalorder %s10, 3
      %p135 = pnand %p133, %p134
      %p136 = pneg %p135
      // Predicated region
      $region9: #{tpu_custom_call.1} parent=5 // pred_check
        _
      $region10: #{tpu_custom_call.1} parent=5 // pred_check_branch
        %138 = sbr.rel (%p135) target = $region12
      $region11: #{tpu_custom_call.1} parent=5 // pred_region
        %s139 = ssub.s32 %s10, 1
        // Predicated region
        $region13: #{tpu_custom_call.1} parent=11 // pred_check
          %p140 = pneg %p31
        $region14: #{tpu_custom_call.1} parent=11 // pred_check_branch
          %142 = sbr.rel (%p140) target = $region16
        $region15: #{tpu_custom_call.1} parent=11 // pred_region
          _
        $region16: #{tpu_custom_call.1} parent=11 // pred_fallthru
          _
        // Predicated region
        $region17: #{tpu_custom_call.1} parent=11 // pred_check
          %p143 = pneg %p52
        $region18: #{tpu_custom_call.1} parent=11 // pred_check_branch
          %145 = sbr.rel (%p143) target = $region20
        $region19: #{tpu_custom_call.1} parent=11 // pred_region
          _
        $region20: #{tpu_custom_call.1} parent=11 // pred_fallthru
          _
        // Predicated region
        $region21: #{tpu_custom_call.1} parent=11 // pred_check
          %p146 = pneg %p73
        $region22: #{tpu_custom_call.1} parent=11 // pred_check_branch
          %148 = sbr.rel (%p146) target = $region24
        $region23: #{tpu_custom_call.1} parent=11 // pred_region
          _
        $region24: #{tpu_custom_call.1} parent=11 // pred_fallthru
          _
      $region12: #{tpu_custom_call.1} parent=5 // pred_fallthru
        _
      %p149 = scmp.lt.s32.totalorder %s10, 2
      // Predicated region
      $region25: #{tpu_custom_call.1} parent=5 // pred_check
        %p150 = pneg %p149
      $region26: #{tpu_custom_call.1} parent=5 // pred_check_branch
        %152 = sbr.rel (%p150) target = $region28
      $region27: #{tpu_custom_call.1} parent=5 // pred_region
        // Predicated region
        $region29: #{tpu_custom_call.1} parent=27 // pred_check
          %p153 = pneg %p93
        $region30: #{tpu_custom_call.1} parent=27 // pred_check_branch
          %155 = sbr.rel (%p153) target = $region32
        $region31: #{tpu_custom_call.1} parent=27 // pred_region
          %s156 = smul.u32 2, %s10
          %p157 = scmp.lt.s32.totalorder %s156, 3
          %s158 = scalar_select %p157, %s156, 3
          %s159 = scalar_lea.vmem %s3, %s158
          %s160 = smul.u32 2, %s10
        $region32: #{tpu_custom_call.1} parent=27 // pred_fallthru
          _
      $region28: #{tpu_custom_call.1} parent=5 // pred_fallthru
        _
      %p161 = scmp.le.s32.totalorder 1, %s10
      %p162 = scmp.lt.s32.totalorder %s10, 3
      %p163 = pnand %p161, %p162
      %p164 = pneg %p163
      // Predicated region
      $region33: #{tpu_custom_call.1} parent=5 // pred_check
        _
      $region34: #{tpu_custom_call.1} parent=5 // pred_check_branch
        %166 = sbr.rel (%p163) target = $region36
      $region35: #{tpu_custom_call.1} parent=5 // pred_region
        %s167 = ssub.s32 %s10, 1
        %p168 = pneg %p31
        %p169 = pneg %p28
        %p170 = pneg %p52
        %p171 = pneg %p49
        %p172 = pneg %p73
        %p173 = pneg %p70
        %s174 = smul.u32 2, %s15
        %p175 = scmp.lt.s32.totalorder %s174, 3
        %s176 = scalar_select %p175, %s174, 3
        %s177 = scalar_lea.vmem %s3, %s176
        %p178 = pneg %p99
        %p179 = pneg %p96
        %p180 = pneg %p125
        %p181 = pneg %p122
        %s182 = sand.u32 %s112, 1
        %s183 = sand.u32 %s112, 1
        %s184 = smul.addr %s183, 112
        %s185 = scalar_lea.vmem [#allocation2], %s184
        %s186 = smul.u32 2, %s15
        %p187 = scmp.lt.s32.totalorder %s186, 3
        %s188 = scalar_select %p187, %s186, 3
        %s189 = scalar_lea.vmem %s3, %s188
        %s190 = smul.u32 2, %s15
        %s191 = smul.u32 2, %s15
        %v192 = vld [vmem:[%s189] sm:$0x3]
        %v193 = vmul.f32 %v192, 0.2
        %v194 = vrcp.pop %v193
        %v195 = vmul.f32 1.0, %v194
        %v196 = vmul.f32 %v193, %v193
        %v197 = vmul.f32 %v196, %v196
        %v198 = vmul.f32 %v193, %v197
        %v199 = vmul.f32 %v198, -21.0
        %v200 = vadd.f32 %v195, %v199
        %v201 = vmul.f32 %v198, 35.0
        %v202 = vmul.f32 %v201, %v193
        %v203 = vadd.f32 %v200, %v202
        %v204 = vmul.f32 %v198, -15.0
        %v205 = vmul.f32 %v204, %v193
        %v206 = vmul.f32 %v205, %v193
        %v207 = vadd.f32 %v203, %v206
        %vm208 = vcmp.lt.f32.partialorder %v193, 1.0
        %v209 = vsel %vm208, %v207, 0.0
        %v211 = vlaneseq
        %v212 = vshrl.u32 %v211, 7
        %v213 = vsub.s32 0, %v212
        %v214 = vrot.slane %v193, %v213
        %v215 = vlaneseq
        %v216 = vshrl.u32 %v215, 7
        %v217 = vsub.s32 1, %v216
        %v218 = vrot.slane %v193, %v217
        %v222 = vlaneseq
        %v223 = vshrl.u32 %v222, 7
        %v224 = vsub.s32 0, %v223
        %v225 = vrot.slane %v195, %v224
        %v226 = vlaneseq
        %v227 = vshrl.u32 %v226, 7
        %v228 = vsub.s32 1, %v227
        %v229 = vrot.slane %v195, %v228
        %v233 = vlaneseq
        %v234 = vshrl.u32 %v233, 7
        %v235 = vsub.s32 0, %v234
        %v236 = vrot.slane %v209, %v235
        %v237 = vlaneseq
        %v238 = vshrl.u32 %v237, 7
        %v239 = vsub.s32 1, %v238
        %v240 = vrot.slane %v209, %v239
        %v243 = vld [vmem:[%s0] sm:$0x3f]
        %245 = vset.pattern.permute.xlu0 0
        %246 = vperm.xlu0 %245, %v243
        %v247 = vpop.permute.xlu0 %246
        %v249 = vmul.f32 %v214, %v247
        %v250 = vmul.f32 %v218, %v247
        %v251 = vld [vmem:[%s1] sm:$0x3f]
        %253 = vset.pattern.permute.xlu0 0
        %254 = vperm.xlu0 %253, %v251
        %v255 = vpop.permute.xlu0 %254
        %v257 = vmul.f32 %v225, %v255
        %v258 = vmul.f32 %v229, %v255
        %v259 = vand.u32 2147483647, %v249
        %vm260 = vcmp.le.f32.partialorder %v259, 0.7853982
        %vm261 = vcmp.lt.s32.totalorder %v249, 0
        %v262 = vand.u32 %v249, 2139095040
        %v263 = vshrl.u32 %v262, 23
        %v264 = vsub.s32 %v263, 127
        %v265 = vand.u32 2147483647, %v249
        %v266 = vand.u32 %v265, 8388607
        %v267 = vor.u32 %v266, 8388608
        %v268 = vsub.s32 0, %v267
        %v269 = vadd.s32 %v264, 1
        %vm270 = vcmp.gt.s32.totalorder %v269, 0
        %v271 = vsel %vm270, %v269, 0
        %v272 = vshrl.u32 %v271, 5
        %v273 = vand.u32 %v271, 31
        %v274 = vsub.s32 32, %v273
        %v275 = vshrl.u32 683565275, %v274
        %v276 = vshll.u32 683565275, %v273
        %v277 = vshrl.u32 2475754826, %v274
        %v278 = vor.u32 %v276, %v277
        %v279 = vshll.u32 2475754826, %v273
        %v280 = vshrl.u32 2131351028, %v274
        %v281 = vor.u32 %v279, %v280
        %v282 = vshll.u32 2131351028, %v273
        %v283 = vshrl.u32 2102212464, %v274
        %v284 = vor.u32 %v282, %v283
        %v285 = vshll.u32 2102212464, %v273
        %v286 = vshrl.u32 920167782, %v274
        %v287 = vor.u32 %v285, %v286
        %v288 = vshll.u32 920167782, %v273
        %v289 = vshrl.u32 1326507024, %v274
        %v290 = vor.u32 %v288, %v289
        %vm291 = vcmp.lt.s32.totalorder %v272, 1
        %vm292 = vcmp.lt.s32.totalorder %v272, 2
        %vm293 = vcmp.lt.s32.totalorder %v272, 3
        %vm294 = vcmp.lt.s32.totalorder %v272, 4
        %v295 = vsel %vm291, %v275, %v278
        %v296 = vsel %vm294, %v284, 2102212464
        %v297 = vsel %vm293, %v281, %v296
        %v298 = vsel %vm292, %v295, %v297
        %v299 = vsel %vm291, %v278, %v281
        %v300 = vsel %vm294, %v287, 920167782
        %v301 = vsel %vm293, %v284, %v300
        %v302 = vsel %vm292, %v299, %v301
        %v303 = vsel %vm291, %v281, %v284
        %v304 = vsel %vm294, %v290, 1326507024
        %v305 = vsel %vm293, %v287, %v304
        %v306 = vsel %vm292, %v303, %v305
        %v307 = vshll.u32 %v267, 8
        %v308 = vmul.u32.u64.compose %v307, %v306
        %v309 = vextract.low.u32 %v308
        %v310 = vextract.high.u32 %v308
        %v311 = vmul.u32.u64.compose %v307, %v302
        %v312 = vextract.low.u32 %v311
        %v313 = vextract.high.u32 %v311
        %v314 = vmul.u32 %v307, %v298
        %v315 = vadd.s32 %v310, %v312
        %vm316 = vc.u32 %v310, %v312
        %v317 = vadd.s32 %v313, 1
        %v318 = vsel %vm316, %v317, %v313
        %v319 = vadd.s32 %v314, %v318
        %v320 = vadd.s32 %v319, 536870912
        %v321 = vshrl.u32 %v320, 30
        %v322 = vshll.u32 %v321, 30
        %v323 = vsub.s32 %v319, %v322
        %vm324 = vcmp.lt.s32.totalorder %v323, 0
        %v325 = vsub.s32 0, %v323
        %v326 = vsel %vm324, %v325, %v323
        %v327 = vclz %v326
        %v328 = vsub.s32 %v327, 2
        %vm329 = vcmp.gt.s32.totalorder 0, %v328
        %v330 = vsel %vm329, 0, %v328
        %v331 = vsub.s32 32, %v330
        %v332 = vshll.u32 %v323, %v330
        %v333 = vshrl.u32 %v315, %v331
        %v334 = vor.u32 %v332, %v333
        %v335 = vsub.s32 4294967266, %v330
        %v336 = vadd.s32 %v335, 127
        %v337 = vshll.u32 %v336, 23
        %v338 = vor.u32 4788187, %v337
        %v339 = vand.u32 2147483647, %v338
        %v341 = vcvt.s32.f32 %v334
        %v342 = vmul.f32 %v341, %v339
        %v343 = vxor.u32 %v342, 2147483648
        %v344 = vsel %vm261, %v343, %v342
        %v345 = vsub.s32 4, %v321
        %v346 = vsel %vm261, %v345, %v321
        %v347 = vsel %vm260, %v249, %v344
        %v348 = vsel %vm260, 0, %v346
        %v349 = vcosq.f32.pop %v347
        %v350 = vsinq.f32.pop %v347
        %vm351 = vweird.f32 %v249
        %v352 = vadd.s32 %v348, 3
        %v353 = vand.u32 %v352, 3
        %vm354 = vcmp.lt.s32.totalorder %v353, 2
        %vm355 = vcmp.eq.s32.totalorder %v353, 0
        %v356 = vxor.u32 %v350, 2147483648
        %v357 = vsel %vm355, %v349, %v356
        %vm358 = vcmp.eq.s32.totalorder %v353, 2
        %v359 = vxor.u32 %v349, 2147483648
        %v360 = vsel %vm358, %v359, %v350
        %v361 = vsel %vm354, %v357, %v360
        %v362 = vsel %vm351, nan, %v361
        %v363 = vand.u32 2147483647, %v250
        %vm364 = vcmp.le.f32.partialorder %v363, 0.7853982
        %vm365 = vcmp.lt.s32.totalorder %v250, 0
        %v366 = vand.u32 %v250, 2139095040
        %v367 = vshrl.u32 %v366, 23
        %v368 = vsub.s32 %v367, 127
        %v369 = vand.u32 2147483647, %v250
        %v370 = vand.u32 %v369, 8388607
        %v371 = vor.u32 %v370, 8388608
        %v372 = vsub.s32 0, %v371
        %v373 = vadd.s32 %v368, 1
        %vm374 = vcmp.gt.s32.totalorder %v373, 0
        %v375 = vsel %vm374, %v373, 0
        %v376 = vshrl.u32 %v375, 5
        %v377 = vand.u32 %v375, 31
        %v378 = vsub.s32 32, %v377
        %v379 = vshrl.u32 683565275, %v378
        %v380 = vshll.u32 683565275, %v377
        %v381 = vshrl.u32 2475754826, %v378
        %v382 = vor.u32 %v380, %v381
        %v383 = vshll.u32 2475754826, %v377
        %v384 = vshrl.u32 2131351028, %v378
        %v385 = vor.u32 %v383, %v384
        %v386 = vshll.u32 2131351028, %v377
        %v387 = vshrl.u32 2102212464, %v378
        %v388 = vor.u32 %v386, %v387
        %v389 = vshll.u32 2102212464, %v377
        %v390 = vshrl.u32 920167782, %v378
        %v391 = vor.u32 %v389, %v390
        %v392 = vshll.u32 920167782, %v377
        %v393 = vshrl.u32 1326507024, %v378
        %v394 = vor.u32 %v392, %v393
        %vm395 = vcmp.lt.s32.totalorder %v376, 1
        %vm396 = vcmp.lt.s32.totalorder %v376, 2
        %vm397 = vcmp.lt.s32.totalorder %v376, 3
        %vm398 = vcmp.lt.s32.totalorder %v376, 4
        %v399 = vsel %vm395, %v379, %v382
        %v400 = vsel %vm398, %v388, 2102212464
        %v401 = vsel %vm397, %v385, %v400
        %v402 = vsel %vm396, %v399, %v401
        %v403 = vsel %vm395, %v382, %v385
        %v404 = vsel %vm398, %v391, 920167782
        %v405 = vsel %vm397, %v388, %v404
        %v406 = vsel %vm396, %v403, %v405
        %v407 = vsel %vm395, %v385, %v388
        %v408 = vsel %vm398, %v394, 1326507024
        %v409 = vsel %vm397, %v391, %v408
        %v410 = vsel %vm396, %v407, %v409
        %v411 = vshll.u32 %v371, 8
        %v412 = vmul.u32.u64.compose %v411, %v410
        %v413 = vextract.low.u32 %v412
        %v414 = vextract.high.u32 %v412
        %v415 = vmul.u32.u64.compose %v411, %v406
        %v416 = vextract.low.u32 %v415
        %v417 = vextract.high.u32 %v415
        %v418 = vmul.u32 %v411, %v402
        %v419 = vadd.s32 %v414, %v416
        %vm420 = vc.u32 %v414, %v416
        %v421 = vadd.s32 %v417, 1
        %v422 = vsel %vm420, %v421, %v417
        %v423 = vadd.s32 %v418, %v422
        %v424 = vadd.s32 %v423, 536870912
        %v425 = vshrl.u32 %v424, 30
        %v426 = vshll.u32 %v425, 30
        %v427 = vsub.s32 %v423, %v426
        %vm428 = vcmp.lt.s32.totalorder %v427, 0
        %v429 = vsub.s32 0, %v427
        %v430 = vsel %vm428, %v429, %v427
        %v431 = vclz %v430
        %v432 = vsub.s32 %v431, 2
        %vm433 = vcmp.gt.s32.totalorder 0, %v432
        %v434 = vsel %vm433, 0, %v432
        %v435 = vsub.s32 32, %v434
        %v436 = vshll.u32 %v427, %v434
        %v437 = vshrl.u32 %v419, %v435
        %v438 = vor.u32 %v436, %v437
        %v439 = vsub.s32 4294967266, %v434
        %v440 = vadd.s32 %v439, 127
        %v441 = vshll.u32 %v440, 23
        %v442 = vor.u32 4788187, %v441
        %v443 = vand.u32 2147483647, %v442
        %v445 = vcvt.s32.f32 %v438
        %v446 = vmul.f32 %v445, %v443
        %v447 = vxor.u32 %v446, 2147483648
        %v448 = vsel %vm365, %v447, %v446
        %v449 = vsub.s32 4, %v425
        %v450 = vsel %vm365, %v449, %v425
        %v451 = vsel %vm364, %v250, %v448
        %v452 = vsel %vm364, 0, %v450
        %v453 = vcosq.f32.pop %v451
        %v454 = vsinq.f32.pop %v451
        %vm455 = vweird.f32 %v250
        %v456 = vadd.s32 %v452, 3
        %v457 = vand.u32 %v456, 3
        %vm458 = vcmp.lt.s32.totalorder %v457, 2
        %vm459 = vcmp.eq.s32.totalorder %v457, 0
        %v460 = vxor.u32 %v454, 2147483648
        %v461 = vsel %vm459, %v453, %v460
        %vm462 = vcmp.eq.s32.totalorder %v457, 2
        %v463 = vxor.u32 %v453, 2147483648
        %v464 = vsel %vm462, %v463, %v454
        %v465 = vsel %vm458, %v461, %v464
        %v466 = vsel %vm455, nan, %v465
        %v467 = vmul.f32 %v362, %v257
        %v468 = vmul.f32 %v466, %v258
        %v469 = vld [vmem:[%s2] sm:$0x3f]
        %471 = vset.pattern.permute.xlu0 0
        %472 = vperm.xlu0 %471, %v469
        %v473 = vpop.permute.xlu0 %472
        %v475 = vmul.f32 %v467, %v473
        %v476 = vmul.f32 %v468, %v473
        %v477 = vmul.f32 %v475, %v236
        %v478 = vmul.f32 %v476, %v240
        %479 = vst [vmem:[%s185] sm:$0x3f] %v477
        %480 = vst [vmem:[%s185 + $0x8] sm:$0x3f] %v478
        %s481 = scalar_lea.vmem %s0, 8
        %v482 = vld [vmem:[%s481] sm:$0x3f]
        %484 = vset.pattern.permute.xlu0 0
        %485 = vperm.xlu0 %484, %v482
        %v486 = vpop.permute.xlu0 %485
        %v488 = vmul.f32 %v214, %v486
        %v489 = vmul.f32 %v218, %v486
        %s490 = scalar_lea.vmem %s1, 8
        %v491 = vld [vmem:[%s490] sm:$0x3f]
        %493 = vset.pattern.permute.xlu0 0
        %494 = vperm.xlu0 %493, %v491
        %v495 = vpop.permute.xlu0 %494
        %v497 = vmul.f32 %v225, %v495
        %v498 = vmul.f32 %v229, %v495
        %v499 = vand.u32 2147483647, %v488
        %vm500 = vcmp.le.f32.partialorder %v499, 0.7853982
        %vm501 = vcmp.lt.s32.totalorder %v488, 0
        %v502 = vand.u32 %v488, 2139095040
        %v503 = vshrl.u32 %v502, 23
        %v504 = vsub.s32 %v503, 127
        %v505 = vand.u32 2147483647, %v488
        %v506 = vand.u32 %v505, 8388607
        %v507 = vor.u32 %v506, 8388608
        %v508 = vsub.s32 0, %v507
        %v509 = vadd.s32 %v504, 1
        %vm510 = vcmp.gt.s32.totalorder %v509, 0
        %v511 = vsel %vm510, %v509, 0
        %v512 = vshrl.u32 %v511, 5
        %v513 = vand.u32 %v511, 31
        %v514 = vsub.s32 32, %v513
        %v515 = vshrl.u32 683565275, %v514
        %v516 = vshll.u32 683565275, %v513
        %v517 = vshrl.u32 2475754826, %v514
        %v518 = vor.u32 %v516, %v517
        %v519 = vshll.u32 2475754826, %v513
        %v520 = vshrl.u32 2131351028, %v514
        %v521 = vor.u32 %v519, %v520
        %v522 = vshll.u32 2131351028, %v513
        %v523 = vshrl.u32 2102212464, %v514
        %v524 = vor.u32 %v522, %v523
        %v525 = vshll.u32 2102212464, %v513
        %v526 = vshrl.u32 920167782, %v514
        %v527 = vor.u32 %v525, %v526
        %v528 = vshll.u32 920167782, %v513
        %v529 = vshrl.u32 1326507024, %v514
        %v530 = vor.u32 %v528, %v529
        %vm531 = vcmp.lt.s32.totalorder %v512, 1
        %vm532 = vcmp.lt.s32.totalorder %v512, 2
        %vm533 = vcmp.lt.s32.totalorder %v512, 3
        %vm534 = vcmp.lt.s32.totalorder %v512, 4
        %v535 = vsel %vm531, %v515, %v518
        %v536 = vsel %vm534, %v524, 2102212464
        %v537 = vsel %vm533, %v521, %v536
        %v538 = vsel %vm532, %v535, %v537
        %v539 = vsel %vm531, %v518, %v521
        %v540 = vsel %vm534, %v527, 920167782
        %v541 = vsel %vm533, %v524, %v540
        %v542 = vsel %vm532, %v539, %v541
        %v543 = vsel %vm531, %v521, %v524
        %v544 = vsel %vm534, %v530, 1326507024
        %v545 = vsel %vm533, %v527, %v544
        %v546 = vsel %vm532, %v543, %v545
        %v547 = vshll.u32 %v507, 8
        %v548 = vmul.u32.u64.compose %v547, %v546
        %v549 = vextract.low.u32 %v548
        %v550 = vextract.high.u32 %v548
        %v551 = vmul.u32.u64.compose %v547, %v542
        %v552 = vextract.low.u32 %v551
        %v553 = vextract.high.u32 %v551
        %v554 = vmul.u32 %v547, %v538
        %v555 = vadd.s32 %v550, %v552
        %vm556 = vc.u32 %v550, %v552
        %v557 = vadd.s32 %v553, 1
        %v558 = vsel %vm556, %v557, %v553
        %v559 = vadd.s32 %v554, %v558
        %v560 = vadd.s32 %v559, 536870912
        %v561 = vshrl.u32 %v560, 30
        %v562 = vshll.u32 %v561, 30
        %v563 = vsub.s32 %v559, %v562
        %vm564 = vcmp.lt.s32.totalorder %v563, 0
        %v565 = vsub.s32 0, %v563
        %v566 = vsel %vm564, %v565, %v563
        %v567 = vclz %v566
        %v568 = vsub.s32 %v567, 2
        %vm569 = vcmp.gt.s32.totalorder 0, %v568
        %v570 = vsel %vm569, 0, %v568
        %v571 = vsub.s32 32, %v570
        %v572 = vshll.u32 %v563, %v570
        %v573 = vshrl.u32 %v555, %v571
        %v574 = vor.u32 %v572, %v573
        %v575 = vsub.s32 4294967266, %v570
        %v576 = vadd.s32 %v575, 127
        %v577 = vshll.u32 %v576, 23
        %v578 = vor.u32 4788187, %v577
        %v579 = vand.u32 2147483647, %v578
        %v581 = vcvt.s32.f32 %v574
        %v582 = vmul.f32 %v581, %v579
        %v583 = vxor.u32 %v582, 2147483648
        %v584 = vsel %vm501, %v583, %v582
        %v585 = vsub.s32 4, %v561
        %v586 = vsel %vm501, %v585, %v561
        %v587 = vsel %vm500, %v488, %v584
        %v588 = vsel %vm500, 0, %v586
        %v589 = vcosq.f32.pop %v587
        %v590 = vsinq.f32.pop %v587
        %vm591 = vweird.f32 %v488
        %v592 = vadd.s32 %v588, 3
        %v593 = vand.u32 %v592, 3
        %vm594 = vcmp.lt.s32.totalorder %v593, 2
        %vm595 = vcmp.eq.s32.totalorder %v593, 0
        %v596 = vxor.u32 %v590, 2147483648
        %v597 = vsel %vm595, %v589, %v596
        %vm598 = vcmp.eq.s32.totalorder %v593, 2
        %v599 = vxor.u32 %v589, 2147483648
        %v600 = vsel %vm598, %v599, %v590
        %v601 = vsel %vm594, %v597, %v600
        %v602 = vsel %vm591, nan, %v601
        %v603 = vand.u32 2147483647, %v489
        %vm604 = vcmp.le.f32.partialorder %v603, 0.7853982
        %vm605 = vcmp.lt.s32.totalorder %v489, 0
        %v606 = vand.u32 %v489, 2139095040
        %v607 = vshrl.u32 %v606, 23
        %v608 = vsub.s32 %v607, 127
        %v609 = vand.u32 2147483647, %v489
        %v610 = vand.u32 %v609, 8388607
        %v611 = vor.u32 %v610, 8388608
        %v612 = vsub.s32 0, %v611
        %v613 = vadd.s32 %v608, 1
        %vm614 = vcmp.gt.s32.totalorder %v613, 0
        %v615 = vsel %vm614, %v613, 0
        %v616 = vshrl.u32 %v615, 5
        %v617 = vand.u32 %v615, 31
        %v618 = vsub.s32 32, %v617
        %v619 = vshrl.u32 683565275, %v618
        %v620 = vshll.u32 683565275, %v617
        %v621 = vshrl.u32 2475754826, %v618
        %v622 = vor.u32 %v620, %v621
        %v623 = vshll.u32 2475754826, %v617
        %v624 = vshrl.u32 2131351028, %v618
        %v625 = vor.u32 %v623, %v624
        %v626 = vshll.u32 2131351028, %v617
        %v627 = vshrl.u32 2102212464, %v618
        %v628 = vor.u32 %v626, %v627
        %v629 = vshll.u32 2102212464, %v617
        %v630 = vshrl.u32 920167782, %v618
        %v631 = vor.u32 %v629, %v630
        %v632 = vshll.u32 920167782, %v617
        %v633 = vshrl.u32 1326507024, %v618
        %v634 = vor.u32 %v632, %v633
        %vm635 = vcmp.lt.s32.totalorder %v616, 1
        %vm636 = vcmp.lt.s32.totalorder %v616, 2
        %vm637 = vcmp.lt.s32.totalorder %v616, 3
        %vm638 = vcmp.lt.s32.totalorder %v616, 4
        %v639 = vsel %vm635, %v619, %v622
        %v640 = vsel %vm638, %v628, 2102212464
        %v641 = vsel %vm637, %v625, %v640
        %v642 = vsel %vm636, %v639, %v641
        %v643 = vsel %vm635, %v622, %v625
        %v644 = vsel %vm638, %v631, 920167782
        %v645 = vsel %vm637, %v628, %v644
        %v646 = vsel %vm636, %v643, %v645
        %v647 = vsel %vm635, %v625, %v628
        %v648 = vsel %vm638, %v634, 1326507024
        %v649 = vsel %vm637, %v631, %v648
        %v650 = vsel %vm636, %v647, %v649
        %v651 = vshll.u32 %v611, 8
        %v652 = vmul.u32.u64.compose %v651, %v650
        %v653 = vextract.low.u32 %v652
        %v654 = vextract.high.u32 %v652
        %v655 = vmul.u32.u64.compose %v651, %v646
        %v656 = vextract.low.u32 %v655
        %v657 = vextract.high.u32 %v655
        %v658 = vmul.u32 %v651, %v642
        %v659 = vadd.s32 %v654, %v656
        %vm660 = vc.u32 %v654, %v656
        %v661 = vadd.s32 %v657, 1
        %v662 = vsel %vm660, %v661, %v657
        %v663 = vadd.s32 %v658, %v662
        %v664 = vadd.s32 %v663, 536870912
        %v665 = vshrl.u32 %v664, 30
        %v666 = vshll.u32 %v665, 30
        %v667 = vsub.s32 %v663, %v666
        %vm668 = vcmp.lt.s32.totalorder %v667, 0
        %v669 = vsub.s32 0, %v667
        %v670 = vsel %vm668, %v669, %v667
        %v671 = vclz %v670
        %v672 = vsub.s32 %v671, 2
        %vm673 = vcmp.gt.s32.totalorder 0, %v672
        %v674 = vsel %vm673, 0, %v672
        %v675 = vsub.s32 32, %v674
        %v676 = vshll.u32 %v667, %v674
        %v677 = vshrl.u32 %v659, %v675
        %v678 = vor.u32 %v676, %v677
        %v679 = vsub.s32 4294967266, %v674
        %v680 = vadd.s32 %v679, 127
        %v681 = vshll.u32 %v680, 23
        %v682 = vor.u32 4788187, %v681
        %v683 = vand.u32 2147483647, %v682
        %v685 = vcvt.s32.f32 %v678
        %v686 = vmul.f32 %v685, %v683
        %v687 = vxor.u32 %v686, 2147483648
        %v688 = vsel %vm605, %v687, %v686
        %v689 = vsub.s32 4, %v665
        %v690 = vsel %vm605, %v689, %v665
        %v691 = vsel %vm604, %v489, %v688
        %v692 = vsel %vm604, 0, %v690
        %v693 = vcosq.f32.pop %v691
        %v694 = vsinq.f32.pop %v691
        %vm695 = vweird.f32 %v489
        %v696 = vadd.s32 %v692, 3
        %v697 = vand.u32 %v696, 3
        %vm698 = vcmp.lt.s32.totalorder %v697, 2
        %vm699 = vcmp.eq.s32.totalorder %v697, 0
        %v700 = vxor.u32 %v694, 2147483648
        %v701 = vsel %vm699, %v693, %v700
        %vm702 = vcmp.eq.s32.totalorder %v697, 2
        %v703 = vxor.u32 %v693, 2147483648
        %v704 = vsel %vm702, %v703, %v694
        %v705 = vsel %vm698, %v701, %v704
        %v706 = vsel %vm695, nan, %v705
        %v707 = vand.u32 2147483647, %v488
        %vm708 = vcmp.le.f32.partialorder %v707, 0.7853982
        %vm709 = vcmp.lt.s32.totalorder %v488, 0
        %v710 = vand.u32 %v488, 2139095040
        %v711 = vshrl.u32 %v710, 23
        %v712 = vsub.s32 %v711, 127
        %v713 = vand.u32 2147483647, %v488
        %v714 = vand.u32 %v713, 8388607
        %v715 = vor.u32 %v714, 8388608
        %v716 = vsub.s32 0, %v715
        %v717 = vadd.s32 %v712, 1
        %vm718 = vcmp.gt.s32.totalorder %v717, 0
        %v719 = vsel %vm718, %v717, 0
        %v720 = vshrl.u32 %v719, 5
        %v721 = vand.u32 %v719, 31
        %v722 = vsub.s32 32, %v721
        %v723 = vshrl.u32 683565275, %v722
        %v724 = vshll.u32 683565275, %v721
        %v725 = vshrl.u32 2475754826, %v722
        %v726 = vor.u32 %v724, %v725
        %v727 = vshll.u32 2475754826, %v721
        %v728 = vshrl.u32 2131351028, %v722
        %v729 = vor.u32 %v727, %v728
        %v730 = vshll.u32 2131351028, %v721
        %v731 = vshrl.u32 2102212464, %v722
        %v732 = vor.u32 %v730, %v731
        %v733 = vshll.u32 2102212464, %v721
        %v734 = vshrl.u32 920167782, %v722
        %v735 = vor.u32 %v733, %v734
        %v736 = vshll.u32 920167782, %v721
        %v737 = vshrl.u32 1326507024, %v722
        %v738 = vor.u32 %v736, %v737
        %vm739 = vcmp.lt.s32.totalorder %v720, 1
        %vm740 = vcmp.lt.s32.totalorder %v720, 2
        %vm741 = vcmp.lt.s32.totalorder %v720, 3
        %vm742 = vcmp.lt.s32.totalorder %v720, 4
        %v743 = vsel %vm739, %v723, %v726
        %v744 = vsel %vm742, %v732, 2102212464
        %v745 = vsel %vm741, %v729, %v744
        %v746 = vsel %vm740, %v743, %v745
        %v747 = vsel %vm739, %v726, %v729
        %v748 = vsel %vm742, %v735, 920167782
        %v749 = vsel %vm741, %v732, %v748
        %v750 = vsel %vm740, %v747, %v749
        %v751 = vsel %vm739, %v729, %v732
        %v752 = vsel %vm742, %v738, 1326507024
        %v753 = vsel %vm741, %v735, %v752
        %v754 = vsel %vm740, %v751, %v753
        %v755 = vshll.u32 %v715, 8
        %v756 = vmul.u32.u64.compose %v755, %v754
        %v757 = vextract.low.u32 %v756
        %v758 = vextract.high.u32 %v756
        %v759 = vmul.u32.u64.compose %v755, %v750
        %v760 = vextract.low.u32 %v759
        %v761 = vextract.high.u32 %v759
        %v762 = vmul.u32 %v755, %v746
        %v763 = vadd.s32 %v758, %v760
        %vm764 = vc.u32 %v758, %v760
        %v765 = vadd.s32 %v761, 1
        %v766 = vsel %vm764, %v765, %v761
        %v767 = vadd.s32 %v762, %v766
        %v768 = vadd.s32 %v767, 536870912
        %v769 = vshrl.u32 %v768, 30
        %v770 = vshll.u32 %v769, 30
        %v771 = vsub.s32 %v767, %v770
        %vm772 = vcmp.lt.s32.totalorder %v771, 0
        %v773 = vsub.s32 0, %v771
        %v774 = vsel %vm772, %v773, %v771
        %v775 = vclz %v774
        %v776 = vsub.s32 %v775, 2
        %vm777 = vcmp.gt.s32.totalorder 0, %v776
        %v778 = vsel %vm777, 0, %v776
        %v779 = vsub.s32 32, %v778
        %v780 = vshll.u32 %v771, %v778
        %v781 = vshrl.u32 %v763, %v779
        %v782 = vor.u32 %v780, %v781
        %v783 = vsub.s32 4294967266, %v778
        %v784 = vadd.s32 %v783, 127
        %v785 = vshll.u32 %v784, 23
        %v786 = vor.u32 4788187, %v785
        %v787 = vand.u32 2147483647, %v786
        %v789 = vcvt.s32.f32 %v782
        %v790 = vmul.f32 %v789, %v787
        %v791 = vxor.u32 %v790, 2147483648
        %v792 = vsel %vm709, %v791, %v790
        %v793 = vsub.s32 4, %v769
        %v794 = vsel %vm709, %v793, %v769
        %v795 = vsel %vm708, %v488, %v792
        %v796 = vsel %vm708, 0, %v794
        %v797 = vcosq.f32.pop %v795
        %v798 = vsinq.f32.pop %v795
        %vm799 = vweird.f32 %v488
        %v800 = vand.u32 %v796, 3
        %vm801 = vcmp.lt.s32.totalorder %v800, 2
        %vm802 = vcmp.eq.s32.totalorder %v800, 0
        %v803 = vxor.u32 %v798, 2147483648
        %v804 = vsel %vm802, %v797, %v803
        %vm805 = vcmp.eq.s32.totalorder %v800, 2
        %v806 = vxor.u32 %v797, 2147483648
        %v807 = vsel %vm805, %v806, %v798
        %v808 = vsel %vm801, %v804, %v807
        %v809 = vsel %vm799, nan, %v808
        %v810 = vand.u32 2147483647, %v489
        %vm811 = vcmp.le.f32.partialorder %v810, 0.7853982
        %vm812 = vcmp.lt.s32.totalorder %v489, 0
        %v813 = vand.u32 %v489, 2139095040
        %v814 = vshrl.u32 %v813, 23
        %v815 = vsub.s32 %v814, 127
        %v816 = vand.u32 2147483647, %v489
        %v817 = vand.u32 %v816, 8388607
        %v818 = vor.u32 %v817, 8388608
        %v819 = vsub.s32 0, %v818
        %v820 = vadd.s32 %v815, 1
        %vm821 = vcmp.gt.s32.totalorder %v820, 0
        %v822 = vsel %vm821, %v820, 0
        %v823 = vshrl.u32 %v822, 5
        %v824 = vand.u32 %v822, 31
        %v825 = vsub.s32 32, %v824
        %v826 = vshrl.u32 683565275, %v825
        %v827 = vshll.u32 683565275, %v824
        %v828 = vshrl.u32 2475754826, %v825
        %v829 = vor.u32 %v827, %v828
        %v830 = vshll.u32 2475754826, %v824
        %v831 = vshrl.u32 2131351028, %v825
        %v832 = vor.u32 %v830, %v831
        %v833 = vshll.u32 2131351028, %v824
        %v834 = vshrl.u32 2102212464, %v825
        %v835 = vor.u32 %v833, %v834
        %v836 = vshll.u32 2102212464, %v824
        %v837 = vshrl.u32 920167782, %v825
        %v838 = vor.u32 %v836, %v837
        %v839 = vshll.u32 920167782, %v824
        %v840 = vshrl.u32 1326507024, %v825
        %v841 = vor.u32 %v839, %v840
        %vm842 = vcmp.lt.s32.totalorder %v823, 1
        %vm843 = vcmp.lt.s32.totalorder %v823, 2
        %vm844 = vcmp.lt.s32.totalorder %v823, 3
        %vm845 = vcmp.lt.s32.totalorder %v823, 4
        %v846 = vsel %vm842, %v826, %v829
        %v847 = vsel %vm845, %v835, 2102212464
        %v848 = vsel %vm844, %v832, %v847
        %v849 = vsel %vm843, %v846, %v848
        %v850 = vsel %vm842, %v829, %v832
        %v851 = vsel %vm845, %v838, 920167782
        %v852 = vsel %vm844, %v835, %v851
        %v853 = vsel %vm843, %v850, %v852
        %v854 = vsel %vm842, %v832, %v835
        %v855 = vsel %vm845, %v841, 1326507024
        %v856 = vsel %vm844, %v838, %v855
        %v857 = vsel %vm843, %v854, %v856
        %v858 = vshll.u32 %v818, 8
        %v859 = vmul.u32.u64.compose %v858, %v857
        %v860 = vextract.low.u32 %v859
        %v861 = vextract.high.u32 %v859
        %v862 = vmul.u32.u64.compose %v858, %v853
        %v863 = vextract.low.u32 %v862
        %v864 = vextract.high.u32 %v862
        %v865 = vmul.u32 %v858, %v849
        %v866 = vadd.s32 %v861, %v863
        %vm867 = vc.u32 %v861, %v863
        %v868 = vadd.s32 %v864, 1
        %v869 = vsel %vm867, %v868, %v864
        %v870 = vadd.s32 %v865, %v869
        %v871 = vadd.s32 %v870, 536870912
        %v872 = vshrl.u32 %v871, 30
        %v873 = vshll.u32 %v872, 30
        %v874 = vsub.s32 %v870, %v873
        %vm875 = vcmp.lt.s32.totalorder %v874, 0
        %v876 = vsub.s32 0, %v874
        %v877 = vsel %vm875, %v876, %v874
        %v878 = vclz %v877
        %v879 = vsub.s32 %v878, 2
        %vm880 = vcmp.gt.s32.totalorder 0, %v879
        %v881 = vsel %vm880, 0, %v879
        %v882 = vsub.s32 32, %v881
        %v883 = vshll.u32 %v874, %v881
        %v884 = vshrl.u32 %v866, %v882
        %v885 = vor.u32 %v883, %v884
        %v886 = vsub.s32 4294967266, %v881
        %v887 = vadd.s32 %v886, 127
        %v888 = vshll.u32 %v887, 23
        %v889 = vor.u32 4788187, %v888
        %v890 = vand.u32 2147483647, %v889
        %v892 = vcvt.s32.f32 %v885
        %v893 = vmul.f32 %v892, %v890
        %v894 = vxor.u32 %v893, 2147483648
        %v895 = vsel %vm812, %v894, %v893
        %v896 = vsub.s32 4, %v872
        %v897 = vsel %vm812, %v896, %v872
        %v898 = vsel %vm811, %v489, %v895
        %v899 = vsel %vm811, 0, %v897
        %v900 = vcosq.f32.pop %v898
        %v901 = vsinq.f32.pop %v898
        %vm902 = vweird.f32 %v489
        %v903 = vand.u32 %v899, 3
        %vm904 = vcmp.lt.s32.totalorder %v903, 2
        %vm905 = vcmp.eq.s32.totalorder %v903, 0
        %v906 = vxor.u32 %v901, 2147483648
        %v907 = vsel %vm905, %v900, %v906
        %vm908 = vcmp.eq.s32.totalorder %v903, 2
        %v909 = vxor.u32 %v900, 2147483648
        %v910 = vsel %vm908, %v909, %v901
        %v911 = vsel %vm904, %v907, %v910
        %v912 = vsel %vm902, nan, %v911
        %v913 = vmul.f32 %v602, %v497
        %v914 = vmul.f32 %v706, %v498
        %v915 = vsub.f32 %v913, %v809
        %v916 = vsub.f32 %v914, %v912
        %v917 = vmul.f32 %v915, %v497
        %v918 = vmul.f32 %v916, %v498
        %s919 = scalar_lea.vmem %s2, 8
        %v920 = vld [vmem:[%s919] sm:$0x3f]
        %922 = vset.pattern.permute.xlu0 0
        %923 = vperm.xlu0 %922, %v920
        %v924 = vpop.permute.xlu0 %923
        %v926 = vmul.f32 %v917, %v924
        %v927 = vmul.f32 %v918, %v924
        %v928 = vmul.f32 %v926, %v236
        %v929 = vmul.f32 %v927, %v240
        %s930 = scalar_lea.vmem %s185, 16 [#allocation2]
        %931 = vst [vmem:[%s930] sm:$0x3f] %v928
        %932 = vst [vmem:[%s930 + $0x8] sm:$0x3f] %v929
        %s933 = scalar_lea.vmem %s0, 16
        %v934 = vld [vmem:[%s933] sm:$0x3f]
        %936 = vset.pattern.permute.xlu0 0
        %937 = vperm.xlu0 %936, %v934
        %v938 = vpop.permute.xlu0 %937
        %v940 = vmul.f32 %v214, %v938
        %v941 = vmul.f32 %v218, %v938
        %s942 = scalar_lea.vmem %s1, 16
        %v943 = vld [vmem:[%s942] sm:$0x3f]
        %945 = vset.pattern.permute.xlu0 0
        %946 = vperm.xlu0 %945, %v943
        %v947 = vpop.permute.xlu0 %946
        %v949 = vmul.f32 %v225, %v947
        %v950 = vmul.f32 %v229, %v947
        %v951 = vand.u32 2147483647, %v940
        %vm952 = vcmp.le.f32.partialorder %v951, 0.7853982
        %vm953 = vcmp.lt.s32.totalorder %v940, 0
        %v954 = vand.u32 %v940, 2139095040
        %v955 = vshrl.u32 %v954, 23
        %v956 = vsub.s32 %v955, 127
        %v957 = vand.u32 2147483647, %v940
        %v958 = vand.u32 %v957, 8388607
        %v959 = vor.u32 %v958, 8388608
        %v960 = vsub.s32 0, %v959
        %v961 = vadd.s32 %v956, 1
        %vm962 = vcmp.gt.s32.totalorder %v961, 0
        %v963 = vsel %vm962, %v961, 0
        %v964 = vshrl.u32 %v963, 5
        %v965 = vand.u32 %v963, 31
        %v966 = vsub.s32 32, %v965
        %v967 = vshrl.u32 683565275, %v966
        %v968 = vshll.u32 683565275, %v965
        %v969 = vshrl.u32 2475754826, %v966
        %v970 = vor.u32 %v968, %v969
        %v971 = vshll.u32 2475754826, %v965
        %v972 = vshrl.u32 2131351028, %v966
        %v973 = vor.u32 %v971, %v972
        %v974 = vshll.u32 2131351028, %v965
        %v975 = vshrl.u32 2102212464, %v966
        %v976 = vor.u32 %v974, %v975
        %v977 = vshll.u32 2102212464, %v965
        %v978 = vshrl.u32 920167782, %v966
        %v979 = vor.u32 %v977, %v978
        %v980 = vshll.u32 920167782, %v965
        %v981 = vshrl.u32 1326507024, %v966
        %v982 = vor.u32 %v980, %v981
        %vm983 = vcmp.lt.s32.totalorder %v964, 1
        %vm984 = vcmp.lt.s32.totalorder %v964, 2
        %vm985 = vcmp.lt.s32.totalorder %v964, 3
        %vm986 = vcmp.lt.s32.totalorder %v964, 4
        %v987 = vsel %vm983, %v967, %v970
        %v988 = vsel %vm986, %v976, 2102212464
        %v989 = vsel %vm985, %v973, %v988
        %v990 = vsel %vm984, %v987, %v989
        %v991 = vsel %vm983, %v970, %v973
        %v992 = vsel %vm986, %v979, 920167782
        %v993 = vsel %vm985, %v976, %v992
        %v994 = vsel %vm984, %v991, %v993
        %v995 = vsel %vm983, %v973, %v976
        %v996 = vsel %vm986, %v982, 1326507024
        %v997 = vsel %vm985, %v979, %v996
        %v998 = vsel %vm984, %v995, %v997
        %v999 = vshll.u32 %v959, 8
        %v1000 = vmul.u32.u64.compose %v999, %v998
        %v1001 = vextract.low.u32 %v1000
        %v1002 = vextract.high.u32 %v1000
        %v1003 = vmul.u32.u64.compose %v999, %v994
        %v1004 = vextract.low.u32 %v1003
        %v1005 = vextract.high.u32 %v1003
        %v1006 = vmul.u32 %v999, %v990
        %v1007 = vadd.s32 %v1002, %v1004
        %vm1008 = vc.u32 %v1002, %v1004
        %v1009 = vadd.s32 %v1005, 1
        %v1010 = vsel %vm1008, %v1009, %v1005
        %v1011 = vadd.s32 %v1006, %v1010
        %v1012 = vadd.s32 %v1011, 536870912
        %v1013 = vshrl.u32 %v1012, 30
        %v1014 = vshll.u32 %v1013, 30
        %v1015 = vsub.s32 %v1011, %v1014
        %vm1016 = vcmp.lt.s32.totalorder %v1015, 0
        %v1017 = vsub.s32 0, %v1015
        %v1018 = vsel %vm1016, %v1017, %v1015
        %v1019 = vclz %v1018
        %v1020 = vsub.s32 %v1019, 2
        %vm1021 = vcmp.gt.s32.totalorder 0, %v1020
        %v1022 = vsel %vm1021, 0, %v1020
        %v1023 = vsub.s32 32, %v1022
        %v1024 = vshll.u32 %v1015, %v1022
        %v1025 = vshrl.u32 %v1007, %v1023
        %v1026 = vor.u32 %v1024, %v1025
        %v1027 = vsub.s32 4294967266, %v1022
        %v1028 = vadd.s32 %v1027, 127
        %v1029 = vshll.u32 %v1028, 23
        %v1030 = vor.u32 4788187, %v1029
        %v1031 = vand.u32 2147483647, %v1030
        %v1033 = vcvt.s32.f32 %v1026
        %v1034 = vmul.f32 %v1033, %v1031
        %v1035 = vxor.u32 %v1034, 2147483648
        %v1036 = vsel %vm953, %v1035, %v1034
        %v1037 = vsub.s32 4, %v1013
        %v1038 = vsel %vm953, %v1037, %v1013
        %v1039 = vsel %vm952, %v940, %v1036
        %v1040 = vsel %vm952, 0, %v1038
        %v1041 = vcosq.f32.pop %v1039
        %v1042 = vsinq.f32.pop %v1039
        %vm1043 = vweird.f32 %v940
        %v1044 = vadd.s32 %v1040, 3
        %v1045 = vand.u32 %v1044, 3
        %vm1046 = vcmp.lt.s32.totalorder %v1045, 2
        %vm1047 = vcmp.eq.s32.totalorder %v1045, 0
        %v1048 = vxor.u32 %v1042, 2147483648
        %v1049 = vsel %vm1047, %v1041, %v1048
        %vm1050 = vcmp.eq.s32.totalorder %v1045, 2
        %v1051 = vxor.u32 %v1041, 2147483648
        %v1052 = vsel %vm1050, %v1051, %v1042
        %v1053 = vsel %vm1046, %v1049, %v1052
        %v1054 = vsel %vm1043, nan, %v1053
        %v1055 = vand.u32 2147483647, %v941
        %vm1056 = vcmp.le.f32.partialorder %v1055, 0.7853982
        %vm1057 = vcmp.lt.s32.totalorder %v941, 0
        %v1058 = vand.u32 %v941, 2139095040
        %v1059 = vshrl.u32 %v1058, 23
        %v1060 = vsub.s32 %v1059, 127
        %v1061 = vand.u32 2147483647, %v941
        %v1062 = vand.u32 %v1061, 8388607
        %v1063 = vor.u32 %v1062, 8388608
        %v1064 = vsub.s32 0, %v1063
        %v1065 = vadd.s32 %v1060, 1
        %vm1066 = vcmp.gt.s32.totalorder %v1065, 0
        %v1067 = vsel %vm1066, %v1065, 0
        %v1068 = vshrl.u32 %v1067, 5
        %v1069 = vand.u32 %v1067, 31
        %v1070 = vsub.s32 32, %v1069
        %v1071 = vshrl.u32 683565275, %v1070
        %v1072 = vshll.u32 683565275, %v1069
        %v1073 = vshrl.u32 2475754826, %v1070
        %v1074 = vor.u32 %v1072, %v1073
        %v1075 = vshll.u32 2475754826, %v1069
        %v1076 = vshrl.u32 2131351028, %v1070
        %v1077 = vor.u32 %v1075, %v1076
        %v1078 = vshll.u32 2131351028, %v1069
        %v1079 = vshrl.u32 2102212464, %v1070
        %v1080 = vor.u32 %v1078, %v1079
        %v1081 = vshll.u32 2102212464, %v1069
        %v1082 = vshrl.u32 920167782, %v1070
        %v1083 = vor.u32 %v1081, %v1082
        %v1084 = vshll.u32 920167782, %v1069
        %v1085 = vshrl.u32 1326507024, %v1070
        %v1086 = vor.u32 %v1084, %v1085
        %vm1087 = vcmp.lt.s32.totalorder %v1068, 1
        %vm1088 = vcmp.lt.s32.totalorder %v1068, 2
        %vm1089 = vcmp.lt.s32.totalorder %v1068, 3
        %vm1090 = vcmp.lt.s32.totalorder %v1068, 4
        %v1091 = vsel %vm1087, %v1071, %v1074
        %v1092 = vsel %vm1090, %v1080, 2102212464
        %v1093 = vsel %vm1089, %v1077, %v1092
        %v1094 = vsel %vm1088, %v1091, %v1093
        %v1095 = vsel %vm1087, %v1074, %v1077
        %v1096 = vsel %vm1090, %v1083, 920167782
        %v1097 = vsel %vm1089, %v1080, %v1096
        %v1098 = vsel %vm1088, %v1095, %v1097
        %v1099 = vsel %vm1087, %v1077, %v1080
        %v1100 = vsel %vm1090, %v1086, 1326507024
        %v1101 = vsel %vm1089, %v1083, %v1100
        %v1102 = vsel %vm1088, %v1099, %v1101
        %v1103 = vshll.u32 %v1063, 8
        %v1104 = vmul.u32.u64.compose %v1103, %v1102
        %v1105 = vextract.low.u32 %v1104
        %v1106 = vextract.high.u32 %v1104
        %v1107 = vmul.u32.u64.compose %v1103, %v1098
        %v1108 = vextract.low.u32 %v1107
        %v1109 = vextract.high.u32 %v1107
        %v1110 = vmul.u32 %v1103, %v1094
        %v1111 = vadd.s32 %v1106, %v1108
        %vm1112 = vc.u32 %v1106, %v1108
        %v1113 = vadd.s32 %v1109, 1
        %v1114 = vsel %vm1112, %v1113, %v1109
        %v1115 = vadd.s32 %v1110, %v1114
        %v1116 = vadd.s32 %v1115, 536870912
        %v1117 = vshrl.u32 %v1116, 30
        %v1118 = vshll.u32 %v1117, 30
        %v1119 = vsub.s32 %v1115, %v1118
        %vm1120 = vcmp.lt.s32.totalorder %v1119, 0
        %v1121 = vsub.s32 0, %v1119
        %v1122 = vsel %vm1120, %v1121, %v1119
        %v1123 = vclz %v1122
        %v1124 = vsub.s32 %v1123, 2
        %vm1125 = vcmp.gt.s32.totalorder 0, %v1124
        %v1126 = vsel %vm1125, 0, %v1124
        %v1127 = vsub.s32 32, %v1126
        %v1128 = vshll.u32 %v1119, %v1126
        %v1129 = vshrl.u32 %v1111, %v1127
        %v1130 = vor.u32 %v1128, %v1129
        %v1131 = vsub.s32 4294967266, %v1126
        %v1132 = vadd.s32 %v1131, 127
        %v1133 = vshll.u32 %v1132, 23
        %v1134 = vor.u32 4788187, %v1133
        %v1135 = vand.u32 2147483647, %v1134
        %v1137 = vcvt.s32.f32 %v1130
        %v1138 = vmul.f32 %v1137, %v1135
        %v1139 = vxor.u32 %v1138, 2147483648
        %v1140 = vsel %vm1057, %v1139, %v1138
        %v1141 = vsub.s32 4, %v1117
        %v1142 = vsel %vm1057, %v1141, %v1117
        %v1143 = vsel %vm1056, %v941, %v1140
        %v1144 = vsel %vm1056, 0, %v1142
        %v1145 = vcosq.f32.pop %v1143
        %v1146 = vsinq.f32.pop %v1143
        %vm1147 = vweird.f32 %v941
        %v1148 = vadd.s32 %v1144, 3
        %v1149 = vand.u32 %v1148, 3
        %vm1150 = vcmp.lt.s32.totalorder %v1149, 2
        %vm1151 = vcmp.eq.s32.totalorder %v1149, 0
        %v1152 = vxor.u32 %v1146, 2147483648
        %v1153 = vsel %vm1151, %v1145, %v1152
        %vm1154 = vcmp.eq.s32.totalorder %v1149, 2
        %v1155 = vxor.u32 %v1145, 2147483648
        %v1156 = vsel %vm1154, %v1155, %v1146
        %v1157 = vsel %vm1150, %v1153, %v1156
        %v1158 = vsel %vm1147, nan, %v1157
        %v1159 = vmul.f32 %v1054, %v949
        %v1160 = vmul.f32 %v1158, %v950
        %v1161 = vand.u32 2147483647, %v940
        %vm1162 = vcmp.le.f32.partialorder %v1161, 0.7853982
        %vm1163 = vcmp.lt.s32.totalorder %v940, 0
        %v1164 = vand.u32 %v940, 2139095040
        %v1165 = vshrl.u32 %v1164, 23
        %v1166 = vsub.s32 %v1165, 127
        %v1167 = vand.u32 2147483647, %v940
        %v1168 = vand.u32 %v1167, 8388607
        %v1169 = vor.u32 %v1168, 8388608
        %v1170 = vsub.s32 0, %v1169
        %v1171 = vadd.s32 %v1166, 1
        %vm1172 = vcmp.gt.s32.totalorder %v1171, 0
        %v1173 = vsel %vm1172, %v1171, 0
        %v1174 = vshrl.u32 %v1173, 5
        %v1175 = vand.u32 %v1173, 31
        %v1176 = vsub.s32 32, %v1175
        %v1177 = vshrl.u32 683565275, %v1176
        %v1178 = vshll.u32 683565275, %v1175
        %v1179 = vshrl.u32 2475754826, %v1176
        %v1180 = vor.u32 %v1178, %v1179
        %v1181 = vshll.u32 2475754826, %v1175
        %v1182 = vshrl.u32 2131351028, %v1176
        %v1183 = vor.u32 %v1181, %v1182
        %v1184 = vshll.u32 2131351028, %v1175
        %v1185 = vshrl.u32 2102212464, %v1176
        %v1186 = vor.u32 %v1184, %v1185
        %v1187 = vshll.u32 2102212464, %v1175
        %v1188 = vshrl.u32 920167782, %v1176
        %v1189 = vor.u32 %v1187, %v1188
        %v1190 = vshll.u32 920167782, %v1175
        %v1191 = vshrl.u32 1326507024, %v1176
        %v1192 = vor.u32 %v1190, %v1191
        %vm1193 = vcmp.lt.s32.totalorder %v1174, 1
        %vm1194 = vcmp.lt.s32.totalorder %v1174, 2
        %vm1195 = vcmp.lt.s32.totalorder %v1174, 3
        %vm1196 = vcmp.lt.s32.totalorder %v1174, 4
        %v1197 = vsel %vm1193, %v1177, %v1180
        %v1198 = vsel %vm1196, %v1186, 2102212464
        %v1199 = vsel %vm1195, %v1183, %v1198
        %v1200 = vsel %vm1194, %v1197, %v1199
        %v1201 = vsel %vm1193, %v1180, %v1183
        %v1202 = vsel %vm1196, %v1189, 920167782
        %v1203 = vsel %vm1195, %v1186, %v1202
        %v1204 = vsel %vm1194, %v1201, %v1203
        %v1205 = vsel %vm1193, %v1183, %v1186
        %v1206 = vsel %vm1196, %v1192, 1326507024
        %v1207 = vsel %vm1195, %v1189, %v1206
        %v1208 = vsel %vm1194, %v1205, %v1207
        %v1209 = vshll.u32 %v1169, 8
        %v1210 = vmul.u32.u64.compose %v1209, %v1208
        %v1211 = vextract.low.u32 %v1210
        %v1212 = vextract.high.u32 %v1210
        %v1213 = vmul.u32.u64.compose %v1209, %v1204
        %v1214 = vextract.low.u32 %v1213
        %v1215 = vextract.high.u32 %v1213
        %v1216 = vmul.u32 %v1209, %v1200
        %v1217 = vadd.s32 %v1212, %v1214
        %vm1218 = vc.u32 %v1212, %v1214
        %v1219 = vadd.s32 %v1215, 1
        %v1220 = vsel %vm1218, %v1219, %v1215
        %v1221 = vadd.s32 %v1216, %v1220
        %v1222 = vadd.s32 %v1221, 536870912
        %v1223 = vshrl.u32 %v1222, 30
        %v1224 = vshll.u32 %v1223, 30
        %v1225 = vsub.s32 %v1221, %v1224
        %vm1226 = vcmp.lt.s32.totalorder %v1225, 0
        %v1227 = vsub.s32 0, %v1225
        %v1228 = vsel %vm1226, %v1227, %v1225
        %v1229 = vclz %v1228
        %v1230 = vsub.s32 %v1229, 2
        %vm1231 = vcmp.gt.s32.totalorder 0, %v1230
        %v1232 = vsel %vm1231, 0, %v1230
        %v1233 = vsub.s32 32, %v1232
        %v1234 = vshll.u32 %v1225, %v1232
        %v1235 = vshrl.u32 %v1217, %v1233
        %v1236 = vor.u32 %v1234, %v1235
        %v1237 = vsub.s32 4294967266, %v1232
        %v1238 = vadd.s32 %v1237, 127
        %v1239 = vshll.u32 %v1238, 23
        %v1240 = vor.u32 4788187, %v1239
        %v1241 = vand.u32 2147483647, %v1240
        %v1243 = vcvt.s32.f32 %v1236
        %v1244 = vmul.f32 %v1243, %v1241
        %v1245 = vxor.u32 %v1244, 2147483648
        %v1246 = vsel %vm1163, %v1245, %v1244
        %v1247 = vsub.s32 4, %v1223
        %v1248 = vsel %vm1163, %v1247, %v1223
        %v1249 = vsel %vm1162, %v940, %v1246
        %v1250 = vsel %vm1162, 0, %v1248
        %v1251 = vcosq.f32.pop %v1249
        %v1252 = vsinq.f32.pop %v1249
        %vm1253 = vweird.f32 %v940
        %v1254 = vand.u32 %v1250, 3
        %vm1255 = vcmp.lt.s32.totalorder %v1254, 2
        %vm1256 = vcmp.eq.s32.totalorder %v1254, 0
        %v1257 = vxor.u32 %v1252, 2147483648
        %v1258 = vsel %vm1256, %v1251, %v1257
        %vm1259 = vcmp.eq.s32.totalorder %v1254, 2
        %v1260 = vxor.u32 %v1251, 2147483648
        %v1261 = vsel %vm1259, %v1260, %v1252
        %v1262 = vsel %vm1255, %v1258, %v1261
        %v1263 = vsel %vm1253, nan, %v1262
        %v1264 = vand.u32 2147483647, %v941
        %vm1265 = vcmp.le.f32.partialorder %v1264, 0.7853982
        %vm1266 = vcmp.lt.s32.totalorder %v941, 0
        %v1267 = vand.u32 %v941, 2139095040
        %v1268 = vshrl.u32 %v1267, 23
        %v1269 = vsub.s32 %v1268, 127
        %v1270 = vand.u32 2147483647, %v941
        %v1271 = vand.u32 %v1270, 8388607
        %v1272 = vor.u32 %v1271, 8388608
        %v1273 = vsub.s32 0, %v1272
        %v1274 = vadd.s32 %v1269, 1
        %vm1275 = vcmp.gt.s32.totalorder %v1274, 0
        %v1276 = vsel %vm1275, %v1274, 0
        %v1277 = vshrl.u32 %v1276, 5
        %v1278 = vand.u32 %v1276, 31
        %v1279 = vsub.s32 32, %v1278
        %v1280 = vshrl.u32 683565275, %v1279
        %v1281 = vshll.u32 683565275, %v1278
        %v1282 = vshrl.u32 2475754826, %v1279
        %v1283 = vor.u32 %v1281, %v1282
        %v1284 = vshll.u32 2475754826, %v1278
        %v1285 = vshrl.u32 2131351028, %v1279
        %v1286 = vor.u32 %v1284, %v1285
        %v1287 = vshll.u32 2131351028, %v1278
        %v1288 = vshrl.u32 2102212464, %v1279
        %v1289 = vor.u32 %v1287, %v1288
        %v1290 = vshll.u32 2102212464, %v1278
        %v1291 = vshrl.u32 920167782, %v1279
        %v1292 = vor.u32 %v1290, %v1291
        %v1293 = vshll.u32 920167782, %v1278
        %v1294 = vshrl.u32 1326507024, %v1279
        %v1295 = vor.u32 %v1293, %v1294
        %vm1296 = vcmp.lt.s32.totalorder %v1277, 1
        %vm1297 = vcmp.lt.s32.totalorder %v1277, 2
        %vm1298 = vcmp.lt.s32.totalorder %v1277, 3
        %vm1299 = vcmp.lt.s32.totalorder %v1277, 4
        %v1300 = vsel %vm1296, %v1280, %v1283
        %v1301 = vsel %vm1299, %v1289, 2102212464
        %v1302 = vsel %vm1298, %v1286, %v1301
        %v1303 = vsel %vm1297, %v1300, %v1302
        %v1304 = vsel %vm1296, %v1283, %v1286
        %v1305 = vsel %vm1299, %v1292, 920167782
        %v1306 = vsel %vm1298, %v1289, %v1305
        %v1307 = vsel %vm1297, %v1304, %v1306
        %v1308 = vsel %vm1296, %v1286, %v1289
        %v1309 = vsel %vm1299, %v1295, 1326507024
        %v1310 = vsel %vm1298, %v1292, %v1309
        %v1311 = vsel %vm1297, %v1308, %v1310
        %v1312 = vshll.u32 %v1272, 8
        %v1313 = vmul.u32.u64.compose %v1312, %v1311
        %v1314 = vextract.low.u32 %v1313
        %v1315 = vextract.high.u32 %v1313
        %v1316 = vmul.u32.u64.compose %v1312, %v1307
        %v1317 = vextract.low.u32 %v1316
        %v1318 = vextract.high.u32 %v1316
        %v1319 = vmul.u32 %v1312, %v1303
        %v1320 = vadd.s32 %v1315, %v1317
        %vm1321 = vc.u32 %v1315, %v1317
        %v1322 = vadd.s32 %v1318, 1
        %v1323 = vsel %vm1321, %v1322, %v1318
        %v1324 = vadd.s32 %v1319, %v1323
        %v1325 = vadd.s32 %v1324, 536870912
        %v1326 = vshrl.u32 %v1325, 30
        %v1327 = vshll.u32 %v1326, 30
        %v1328 = vsub.s32 %v1324, %v1327
        %vm1329 = vcmp.lt.s32.totalorder %v1328, 0
        %v1330 = vsub.s32 0, %v1328
        %v1331 = vsel %vm1329, %v1330, %v1328
        %v1332 = vclz %v1331
        %v1333 = vsub.s32 %v1332, 2
        %vm1334 = vcmp.gt.s32.totalorder 0, %v1333
        %v1335 = vsel %vm1334, 0, %v1333
        %v1336 = vsub.s32 32, %v1335
        %v1337 = vshll.u32 %v1328, %v1335
        %v1338 = vshrl.u32 %v1320, %v1336
        %v1339 = vor.u32 %v1337, %v1338
        %v1340 = vsub.s32 4294967266, %v1335
        %v1341 = vadd.s32 %v1340, 127
        %v1342 = vshll.u32 %v1341, 23
        %v1343 = vor.u32 4788187, %v1342
        %v1344 = vand.u32 2147483647, %v1343
        %v1346 = vcvt.s32.f32 %v1339
        %v1347 = vmul.f32 %v1346, %v1344
        %v1348 = vxor.u32 %v1347, 2147483648
        %v1349 = vsel %vm1266, %v1348, %v1347
        %v1350 = vsub.s32 4, %v1326
        %v1351 = vsel %vm1266, %v1350, %v1326
        %v1352 = vsel %vm1265, %v941, %v1349
        %v1353 = vsel %vm1265, 0, %v1351
        %v1354 = vcosq.f32.pop %v1352
        %v1355 = vsinq.f32.pop %v1352
        %vm1356 = vweird.f32 %v941
        %v1357 = vand.u32 %v1353, 3
        %vm1358 = vcmp.lt.s32.totalorder %v1357, 2
        %vm1359 = vcmp.eq.s32.totalorder %v1357, 0
        %v1360 = vxor.u32 %v1355, 2147483648
        %v1361 = vsel %vm1359, %v1354, %v1360
        %vm1362 = vcmp.eq.s32.totalorder %v1357, 2
        %v1363 = vxor.u32 %v1354, 2147483648
        %v1364 = vsel %vm1362, %v1363, %v1355
        %v1365 = vsel %vm1358, %v1361, %v1364
        %v1366 = vsel %vm1356, nan, %v1365
        %v1367 = vsub.f32 %v1159, %v1263
        %v1368 = vsub.f32 %v1160, %v1366
        %v1369 = vmul.f32 %v1367, %v949
        %v1370 = vmul.f32 %v1368, %v950
        %v1371 = vmul.f32 %v949, 3.0
        %v1372 = vmul.f32 %v950, 3.0
        %v1373 = vmul.f32 %v1371, %v1369
        %v1374 = vmul.f32 %v1372, %v1370
        %v1375 = vsub.f32 %v1373, %v1159
        %v1376 = vsub.f32 %v1374, %v1160
        %s1377 = scalar_lea.vmem %s2, 16
        %v1378 = vld [vmem:[%s1377] sm:$0x3f]
        %1380 = vset.pattern.permute.xlu0 0
        %1381 = vperm.xlu0 %1380, %v1378
        %v1382 = vpop.permute.xlu0 %1381
        %v1384 = vmul.f32 %v1375, %v1382
        %v1385 = vmul.f32 %v1376, %v1382
        %v1386 = vmul.f32 %v1384, %v236
        %v1387 = vmul.f32 %v1385, %v240
        %s1388 = scalar_lea.vmem %s185, 32 [#allocation2]
        %1389 = vst [vmem:[%s1388] sm:$0x3f] %v1386
        %1390 = vst [vmem:[%s1388 + $0x8] sm:$0x3f] %v1387
        %s1391 = scalar_lea.vmem %s0, 24
        %v1392 = vld [vmem:[%s1391] sm:$0x3f]
        %1394 = vset.pattern.permute.xlu0 0
        %1395 = vperm.xlu0 %1394, %v1392
        %v1396 = vpop.permute.xlu0 %1395
        %v1398 = vmul.f32 %v214, %v1396
        %v1399 = vmul.f32 %v218, %v1396
        %s1400 = scalar_lea.vmem %s1, 24
        %v1401 = vld [vmem:[%s1400] sm:$0x3f]
        %1403 = vset.pattern.permute.xlu0 0
        %1404 = vperm.xlu0 %1403, %v1401
        %v1405 = vpop.permute.xlu0 %1404
        %v1407 = vmul.f32 %v225, %v1405
        %v1408 = vmul.f32 %v229, %v1405
        %v1409 = vand.u32 2147483647, %v1398
        %vm1410 = vcmp.le.f32.partialorder %v1409, 0.7853982
        %vm1411 = vcmp.lt.s32.totalorder %v1398, 0
        %v1412 = vand.u32 %v1398, 2139095040
        %v1413 = vshrl.u32 %v1412, 23
        %v1414 = vsub.s32 %v1413, 127
        %v1415 = vand.u32 2147483647, %v1398
        %v1416 = vand.u32 %v1415, 8388607
        %v1417 = vor.u32 %v1416, 8388608
        %v1418 = vsub.s32 0, %v1417
        %v1419 = vadd.s32 %v1414, 1
        %vm1420 = vcmp.gt.s32.totalorder %v1419, 0
        %v1421 = vsel %vm1420, %v1419, 0
        %v1422 = vshrl.u32 %v1421, 5
        %v1423 = vand.u32 %v1421, 31
        %v1424 = vsub.s32 32, %v1423
        %v1425 = vshrl.u32 683565275, %v1424
        %v1426 = vshll.u32 683565275, %v1423
        %v1427 = vshrl.u32 2475754826, %v1424
        %v1428 = vor.u32 %v1426, %v1427
        %v1429 = vshll.u32 2475754826, %v1423
        %v1430 = vshrl.u32 2131351028, %v1424
        %v1431 = vor.u32 %v1429, %v1430
        %v1432 = vshll.u32 2131351028, %v1423
        %v1433 = vshrl.u32 2102212464, %v1424
        %v1434 = vor.u32 %v1432, %v1433
        %v1435 = vshll.u32 2102212464, %v1423
        %v1436 = vshrl.u32 920167782, %v1424
        %v1437 = vor.u32 %v1435, %v1436
        %v1438 = vshll.u32 920167782, %v1423
        %v1439 = vshrl.u32 1326507024, %v1424
        %v1440 = vor.u32 %v1438, %v1439
        %vm1441 = vcmp.lt.s32.totalorder %v1422, 1
        %vm1442 = vcmp.lt.s32.totalorder %v1422, 2
        %vm1443 = vcmp.lt.s32.totalorder %v1422, 3
        %vm1444 = vcmp.lt.s32.totalorder %v1422, 4
        %v1445 = vsel %vm1441, %v1425, %v1428
        %v1446 = vsel %vm1444, %v1434, 2102212464
        %v1447 = vsel %vm1443, %v1431, %v1446
        %v1448 = vsel %vm1442, %v1445, %v1447
        %v1449 = vsel %vm1441, %v1428, %v1431
        %v1450 = vsel %vm1444, %v1437, 920167782
        %v1451 = vsel %vm1443, %v1434, %v1450
        %v1452 = vsel %vm1442, %v1449, %v1451
        %v1453 = vsel %vm1441, %v1431, %v1434
        %v1454 = vsel %vm1444, %v1440, 1326507024
        %v1455 = vsel %vm1443, %v1437, %v1454
        %v1456 = vsel %vm1442, %v1453, %v1455
        %v1457 = vshll.u32 %v1417, 8
        %v1458 = vmul.u32.u64.compose %v1457, %v1456
        %v1459 = vextract.low.u32 %v1458
        %v1460 = vextract.high.u32 %v1458
        %v1461 = vmul.u32.u64.compose %v1457, %v1452
        %v1462 = vextract.low.u32 %v1461
        %v1463 = vextract.high.u32 %v1461
        %v1464 = vmul.u32 %v1457, %v1448
        %v1465 = vadd.s32 %v1460, %v1462
        %vm1466 = vc.u32 %v1460, %v1462
        %v1467 = vadd.s32 %v1463, 1
        %v1468 = vsel %vm1466, %v1467, %v1463
        %v1469 = vadd.s32 %v1464, %v1468
        %v1470 = vadd.s32 %v1469, 536870912
        %v1471 = vshrl.u32 %v1470, 30
        %v1472 = vshll.u32 %v1471, 30
        %v1473 = vsub.s32 %v1469, %v1472
        %vm1474 = vcmp.lt.s32.totalorder %v1473, 0
        %v1475 = vsub.s32 0, %v1473
        %v1476 = vsel %vm1474, %v1475, %v1473
        %v1477 = vclz %v1476
        %v1478 = vsub.s32 %v1477, 2
        %vm1479 = vcmp.gt.s32.totalorder 0, %v1478
        %v1480 = vsel %vm1479, 0, %v1478
        %v1481 = vsub.s32 32, %v1480
        %v1482 = vshll.u32 %v1473, %v1480
        %v1483 = vshrl.u32 %v1465, %v1481
        %v1484 = vor.u32 %v1482, %v1483
        %v1485 = vsub.s32 4294967266, %v1480
        %v1486 = vadd.s32 %v1485, 127
        %v1487 = vshll.u32 %v1486, 23
        %v1488 = vor.u32 4788187, %v1487
        %v1489 = vand.u32 2147483647, %v1488
        %v1491 = vcvt.s32.f32 %v1484
        %v1492 = vmul.f32 %v1491, %v1489
        %v1493 = vxor.u32 %v1492, 2147483648
        %v1494 = vsel %vm1411, %v1493, %v1492
        %v1495 = vsub.s32 4, %v1471
        %v1496 = vsel %vm1411, %v1495, %v1471
        %v1497 = vsel %vm1410, %v1398, %v1494
        %v1498 = vsel %vm1410, 0, %v1496
        %v1499 = vcosq.f32.pop %v1497
        %v1500 = vsinq.f32.pop %v1497
        %vm1501 = vweird.f32 %v1398
        %v1502 = vadd.s32 %v1498, 3
        %v1503 = vand.u32 %v1502, 3
        %vm1504 = vcmp.lt.s32.totalorder %v1503, 2
        %vm1505 = vcmp.eq.s32.totalorder %v1503, 0
        %v1506 = vxor.u32 %v1500, 2147483648
        %v1507 = vsel %vm1505, %v1499, %v1506
        %vm1508 = vcmp.eq.s32.totalorder %v1503, 2
        %v1509 = vxor.u32 %v1499, 2147483648
        %v1510 = vsel %vm1508, %v1509, %v1500
        %v1511 = vsel %vm1504, %v1507, %v1510
        %v1512 = vsel %vm1501, nan, %v1511
        %v1513 = vand.u32 2147483647, %v1399
        %vm1514 = vcmp.le.f32.partialorder %v1513, 0.7853982
        %vm1515 = vcmp.lt.s32.totalorder %v1399, 0
        %v1516 = vand.u32 %v1399, 2139095040
        %v1517 = vshrl.u32 %v1516, 23
        %v1518 = vsub.s32 %v1517, 127
        %v1519 = vand.u32 2147483647, %v1399
        %v1520 = vand.u32 %v1519, 8388607
        %v1521 = vor.u32 %v1520, 8388608
        %v1522 = vsub.s32 0, %v1521
        %v1523 = vadd.s32 %v1518, 1
        %vm1524 = vcmp.gt.s32.totalorder %v1523, 0
        %v1525 = vsel %vm1524, %v1523, 0
        %v1526 = vshrl.u32 %v1525, 5
        %v1527 = vand.u32 %v1525, 31
        %v1528 = vsub.s32 32, %v1527
        %v1529 = vshrl.u32 683565275, %v1528
        %v1530 = vshll.u32 683565275, %v1527
        %v1531 = vshrl.u32 2475754826, %v1528
        %v1532 = vor.u32 %v1530, %v1531
        %v1533 = vshll.u32 2475754826, %v1527
        %v1534 = vshrl.u32 2131351028, %v1528
        %v1535 = vor.u32 %v1533, %v1534
        %v1536 = vshll.u32 2131351028, %v1527
        %v1537 = vshrl.u32 2102212464, %v1528
        %v1538 = vor.u32 %v1536, %v1537
        %v1539 = vshll.u32 2102212464, %v1527
        %v1540 = vshrl.u32 920167782, %v1528
        %v1541 = vor.u32 %v1539, %v1540
        %v1542 = vshll.u32 920167782, %v1527
        %v1543 = vshrl.u32 1326507024, %v1528
        %v1544 = vor.u32 %v1542, %v1543
        %vm1545 = vcmp.lt.s32.totalorder %v1526, 1
        %vm1546 = vcmp.lt.s32.totalorder %v1526, 2
        %vm1547 = vcmp.lt.s32.totalorder %v1526, 3
        %vm1548 = vcmp.lt.s32.totalorder %v1526, 4
        %v1549 = vsel %vm1545, %v1529, %v1532
        %v1550 = vsel %vm1548, %v1538, 2102212464
        %v1551 = vsel %vm1547, %v1535, %v1550
        %v1552 = vsel %vm1546, %v1549, %v1551
        %v1553 = vsel %vm1545, %v1532, %v1535
        %v1554 = vsel %vm1548, %v1541, 920167782
        %v1555 = vsel %vm1547, %v1538, %v1554
        %v1556 = vsel %vm1546, %v1553, %v1555
        %v1557 = vsel %vm1545, %v1535, %v1538
        %v1558 = vsel %vm1548, %v1544, 1326507024
        %v1559 = vsel %vm1547, %v1541, %v1558
        %v1560 = vsel %vm1546, %v1557, %v1559
        %v1561 = vshll.u32 %v1521, 8
        %v1562 = vmul.u32.u64.compose %v1561, %v1560
        %v1563 = vextract.low.u32 %v1562
        %v1564 = vextract.high.u32 %v1562
        %v1565 = vmul.u32.u64.compose %v1561, %v1556
        %v1566 = vextract.low.u32 %v1565
        %v1567 = vextract.high.u32 %v1565
        %v1568 = vmul.u32 %v1561, %v1552
        %v1569 = vadd.s32 %v1564, %v1566
        %vm1570 = vc.u32 %v1564, %v1566
        %v1571 = vadd.s32 %v1567, 1
        %v1572 = vsel %vm1570, %v1571, %v1567
        %v1573 = vadd.s32 %v1568, %v1572
        %v1574 = vadd.s32 %v1573, 536870912
        %v1575 = vshrl.u32 %v1574, 30
        %v1576 = vshll.u32 %v1575, 30
        %v1577 = vsub.s32 %v1573, %v1576
        %vm1578 = vcmp.lt.s32.totalorder %v1577, 0
        %v1579 = vsub.s32 0, %v1577
        %v1580 = vsel %vm1578, %v1579, %v1577
        %v1581 = vclz %v1580
        %v1582 = vsub.s32 %v1581, 2
        %vm1583 = vcmp.gt.s32.totalorder 0, %v1582
        %v1584 = vsel %vm1583, 0, %v1582
        %v1585 = vsub.s32 32, %v1584
        %v1586 = vshll.u32 %v1577, %v1584
        %v1587 = vshrl.u32 %v1569, %v1585
        %v1588 = vor.u32 %v1586, %v1587
        %v1589 = vsub.s32 4294967266, %v1584
        %v1590 = vadd.s32 %v1589, 127
        %v1591 = vshll.u32 %v1590, 23
        %v1592 = vor.u32 4788187, %v1591
        %v1593 = vand.u32 2147483647, %v1592
        %v1595 = vcvt.s32.f32 %v1588
        %v1596 = vmul.f32 %v1595, %v1593
        %v1597 = vxor.u32 %v1596, 2147483648
        %v1598 = vsel %vm1515, %v1597, %v1596
        %v1599 = vsub.s32 4, %v1575
        %v1600 = vsel %vm1515, %v1599, %v1575
        %v1601 = vsel %vm1514, %v1399, %v1598
        %v1602 = vsel %vm1514, 0, %v1600
        %v1603 = vcosq.f32.pop %v1601
        %v1604 = vsinq.f32.pop %v1601
        %vm1605 = vweird.f32 %v1399
        %v1606 = vadd.s32 %v1602, 3
        %v1607 = vand.u32 %v1606, 3
        %vm1608 = vcmp.lt.s32.totalorder %v1607, 2
        %vm1609 = vcmp.eq.s32.totalorder %v1607, 0
        %v1610 = vxor.u32 %v1604, 2147483648
        %v1611 = vsel %vm1609, %v1603, %v1610
        %vm1612 = vcmp.eq.s32.totalorder %v1607, 2
        %v1613 = vxor.u32 %v1603, 2147483648
        %v1614 = vsel %vm1612, %v1613, %v1604
        %v1615 = vsel %vm1608, %v1611, %v1614
        %v1616 = vsel %vm1605, nan, %v1615
        %v1617 = vmul.f32 %v1512, %v1407
        %v1618 = vmul.f32 %v1616, %v1408
        %v1619 = vand.u32 2147483647, %v1398
        %vm1620 = vcmp.le.f32.partialorder %v1619, 0.7853982
        %vm1621 = vcmp.lt.s32.totalorder %v1398, 0
        %v1622 = vand.u32 %v1398, 2139095040
        %v1623 = vshrl.u32 %v1622, 23
        %v1624 = vsub.s32 %v1623, 127
        %v1625 = vand.u32 2147483647, %v1398
        %v1626 = vand.u32 %v1625, 8388607
        %v1627 = vor.u32 %v1626, 8388608
        %v1628 = vsub.s32 0, %v1627
        %v1629 = vadd.s32 %v1624, 1
        %vm1630 = vcmp.gt.s32.totalorder %v1629, 0
        %v1631 = vsel %vm1630, %v1629, 0
        %v1632 = vshrl.u32 %v1631, 5
        %v1633 = vand.u32 %v1631, 31
        %v1634 = vsub.s32 32, %v1633
        %v1635 = vshrl.u32 683565275, %v1634
        %v1636 = vshll.u32 683565275, %v1633
        %v1637 = vshrl.u32 2475754826, %v1634
        %v1638 = vor.u32 %v1636, %v1637
        %v1639 = vshll.u32 2475754826, %v1633
        %v1640 = vshrl.u32 2131351028, %v1634
        %v1641 = vor.u32 %v1639, %v1640
        %v1642 = vshll.u32 2131351028, %v1633
        %v1643 = vshrl.u32 2102212464, %v1634
        %v1644 = vor.u32 %v1642, %v1643
        %v1645 = vshll.u32 2102212464, %v1633
        %v1646 = vshrl.u32 920167782, %v1634
        %v1647 = vor.u32 %v1645, %v1646
        %v1648 = vshll.u32 920167782, %v1633
        %v1649 = vshrl.u32 1326507024, %v1634
        %v1650 = vor.u32 %v1648, %v1649
        %vm1651 = vcmp.lt.s32.totalorder %v1632, 1
        %vm1652 = vcmp.lt.s32.totalorder %v1632, 2
        %vm1653 = vcmp.lt.s32.totalorder %v1632, 3
        %vm1654 = vcmp.lt.s32.totalorder %v1632, 4
        %v1655 = vsel %vm1651, %v1635, %v1638
        %v1656 = vsel %vm1654, %v1644, 2102212464
        %v1657 = vsel %vm1653, %v1641, %v1656
        %v1658 = vsel %vm1652, %v1655, %v1657
        %v1659 = vsel %vm1651, %v1638, %v1641
        %v1660 = vsel %vm1654, %v1647, 920167782
        %v1661 = vsel %vm1653, %v1644, %v1660
        %v1662 = vsel %vm1652, %v1659, %v1661
        %v1663 = vsel %vm1651, %v1641, %v1644
        %v1664 = vsel %vm1654, %v1650, 1326507024
        %v1665 = vsel %vm1653, %v1647, %v1664
        %v1666 = vsel %vm1652, %v1663, %v1665
        %v1667 = vshll.u32 %v1627, 8
        %v1668 = vmul.u32.u64.compose %v1667, %v1666
        %v1669 = vextract.low.u32 %v1668
        %v1670 = vextract.high.u32 %v1668
        %v1671 = vmul.u32.u64.compose %v1667, %v1662
        %v1672 = vextract.low.u32 %v1671
        %v1673 = vextract.high.u32 %v1671
        %v1674 = vmul.u32 %v1667, %v1658
        %v1675 = vadd.s32 %v1670, %v1672
        %vm1676 = vc.u32 %v1670, %v1672
        %v1677 = vadd.s32 %v1673, 1
        %v1678 = vsel %vm1676, %v1677, %v1673
        %v1679 = vadd.s32 %v1674, %v1678
        %v1680 = vadd.s32 %v1679, 536870912
        %v1681 = vshrl.u32 %v1680, 30
        %v1682 = vshll.u32 %v1681, 30
        %v1683 = vsub.s32 %v1679, %v1682
        %vm1684 = vcmp.lt.s32.totalorder %v1683, 0
        %v1685 = vsub.s32 0, %v1683
        %v1686 = vsel %vm1684, %v1685, %v1683
        %v1687 = vclz %v1686
        %v1688 = vsub.s32 %v1687, 2
        %vm1689 = vcmp.gt.s32.totalorder 0, %v1688
        %v1690 = vsel %vm1689, 0, %v1688
        %v1691 = vsub.s32 32, %v1690
        %v1692 = vshll.u32 %v1683, %v1690
        %v1693 = vshrl.u32 %v1675, %v1691
        %v1694 = vor.u32 %v1692, %v1693
        %v1695 = vsub.s32 4294967266, %v1690
        %v1696 = vadd.s32 %v1695, 127
        %v1697 = vshll.u32 %v1696, 23
        %v1698 = vor.u32 4788187, %v1697
        %v1699 = vand.u32 2147483647, %v1698
        %v1701 = vcvt.s32.f32 %v1694
        %v1702 = vmul.f32 %v1701, %v1699
        %v1703 = vxor.u32 %v1702, 2147483648
        %v1704 = vsel %vm1621, %v1703, %v1702
        %v1705 = vsub.s32 4, %v1681
        %v1706 = vsel %vm1621, %v1705, %v1681
        %v1707 = vsel %vm1620, %v1398, %v1704
        %v1708 = vsel %vm1620, 0, %v1706
        %v1709 = vcosq.f32.pop %v1707
        %v1710 = vsinq.f32.pop %v1707
        %vm1711 = vweird.f32 %v1398
        %v1712 = vand.u32 %v1708, 3
        %vm1713 = vcmp.lt.s32.totalorder %v1712, 2
        %vm1714 = vcmp.eq.s32.totalorder %v1712, 0
        %v1715 = vxor.u32 %v1710, 2147483648
        %v1716 = vsel %vm1714, %v1709, %v1715
        %vm1717 = vcmp.eq.s32.totalorder %v1712, 2
        %v1718 = vxor.u32 %v1709, 2147483648
        %v1719 = vsel %vm1717, %v1718, %v1710
        %v1720 = vsel %vm1713, %v1716, %v1719
        %v1721 = vsel %vm1711, nan, %v1720
        %v1722 = vand.u32 2147483647, %v1399
        %vm1723 = vcmp.le.f32.partialorder %v1722, 0.7853982
        %vm1724 = vcmp.lt.s32.totalorder %v1399, 0
        %v1725 = vand.u32 %v1399, 2139095040
        %v1726 = vshrl.u32 %v1725, 23
        %v1727 = vsub.s32 %v1726, 127
        %v1728 = vand.u32 2147483647, %v1399
        %v1729 = vand.u32 %v1728, 8388607
        %v1730 = vor.u32 %v1729, 8388608
        %v1731 = vsub.s32 0, %v1730
        %v1732 = vadd.s32 %v1727, 1
        %vm1733 = vcmp.gt.s32.totalorder %v1732, 0
        %v1734 = vsel %vm1733, %v1732, 0
        %v1735 = vshrl.u32 %v1734, 5
        %v1736 = vand.u32 %v1734, 31
        %v1737 = vsub.s32 32, %v1736
        %v1738 = vshrl.u32 683565275, %v1737
        %v1739 = vshll.u32 683565275, %v1736
        %v1740 = vshrl.u32 2475754826, %v1737
        %v1741 = vor.u32 %v1739, %v1740
        %v1742 = vshll.u32 2475754826, %v1736
        %v1743 = vshrl.u32 2131351028, %v1737
        %v1744 = vor.u32 %v1742, %v1743
        %v1745 = vshll.u32 2131351028, %v1736
        %v1746 = vshrl.u32 2102212464, %v1737
        %v1747 = vor.u32 %v1745, %v1746
        %v1748 = vshll.u32 2102212464, %v1736
        %v1749 = vshrl.u32 920167782, %v1737
        %v1750 = vor.u32 %v1748, %v1749
        %v1751 = vshll.u32 920167782, %v1736
        %v1752 = vshrl.u32 1326507024, %v1737
        %v1753 = vor.u32 %v1751, %v1752
        %vm1754 = vcmp.lt.s32.totalorder %v1735, 1
        %vm1755 = vcmp.lt.s32.totalorder %v1735, 2
        %vm1756 = vcmp.lt.s32.totalorder %v1735, 3
        %vm1757 = vcmp.lt.s32.totalorder %v1735, 4
        %v1758 = vsel %vm1754, %v1738, %v1741
        %v1759 = vsel %vm1757, %v1747, 2102212464
        %v1760 = vsel %vm1756, %v1744, %v1759
        %v1761 = vsel %vm1755, %v1758, %v1760
        %v1762 = vsel %vm1754, %v1741, %v1744
        %v1763 = vsel %vm1757, %v1750, 920167782
        %v1764 = vsel %vm1756, %v1747, %v1763
        %v1765 = vsel %vm1755, %v1762, %v1764
        %v1766 = vsel %vm1754, %v1744, %v1747
        %v1767 = vsel %vm1757, %v1753, 1326507024
        %v1768 = vsel %vm1756, %v1750, %v1767
        %v1769 = vsel %vm1755, %v1766, %v1768
        %v1770 = vshll.u32 %v1730, 8
        %v1771 = vmul.u32.u64.compose %v1770, %v1769
        %v1772 = vextract.low.u32 %v1771
        %v1773 = vextract.high.u32 %v1771
        %v1774 = vmul.u32.u64.compose %v1770, %v1765
        %v1775 = vextract.low.u32 %v1774
        %v1776 = vextract.high.u32 %v1774
        %v1777 = vmul.u32 %v1770, %v1761
        %v1778 = vadd.s32 %v1773, %v1775
        %vm1779 = vc.u32 %v1773, %v1775
        %v1780 = vadd.s32 %v1776, 1
        %v1781 = vsel %vm1779, %v1780, %v1776
        %v1782 = vadd.s32 %v1777, %v1781
        %v1783 = vadd.s32 %v1782, 536870912
        %v1784 = vshrl.u32 %v1783, 30
        %v1785 = vshll.u32 %v1784, 30
        %v1786 = vsub.s32 %v1782, %v1785
        %vm1787 = vcmp.lt.s32.totalorder %v1786, 0
        %v1788 = vsub.s32 0, %v1786
        %v1789 = vsel %vm1787, %v1788, %v1786
        %v1790 = vclz %v1789
        %v1791 = vsub.s32 %v1790, 2
        %vm1792 = vcmp.gt.s32.totalorder 0, %v1791
        %v1793 = vsel %vm1792, 0, %v1791
        %v1794 = vsub.s32 32, %v1793
        %v1795 = vshll.u32 %v1786, %v1793
        %v1796 = vshrl.u32 %v1778, %v1794
        %v1797 = vor.u32 %v1795, %v1796
        %v1798 = vsub.s32 4294967266, %v1793
        %v1799 = vadd.s32 %v1798, 127
        %v1800 = vshll.u32 %v1799, 23
        %v1801 = vor.u32 4788187, %v1800
        %v1802 = vand.u32 2147483647, %v1801
        %v1804 = vcvt.s32.f32 %v1797
        %v1805 = vmul.f32 %v1804, %v1802
        %v1806 = vxor.u32 %v1805, 2147483648
        %v1807 = vsel %vm1724, %v1806, %v1805
        %v1808 = vsub.s32 4, %v1784
        %v1809 = vsel %vm1724, %v1808, %v1784
        %v1810 = vsel %vm1723, %v1399, %v1807
        %v1811 = vsel %vm1723, 0, %v1809
        %v1812 = vcosq.f32.pop %v1810
        %v1813 = vsinq.f32.pop %v1810
        %vm1814 = vweird.f32 %v1399
        %v1815 = vand.u32 %v1811, 3
        %vm1816 = vcmp.lt.s32.totalorder %v1815, 2
        %vm1817 = vcmp.eq.s32.totalorder %v1815, 0
        %v1818 = vxor.u32 %v1813, 2147483648
        %v1819 = vsel %vm1817, %v1812, %v1818
        %vm1820 = vcmp.eq.s32.totalorder %v1815, 2
        %v1821 = vxor.u32 %v1812, 2147483648
        %v1822 = vsel %vm1820, %v1821, %v1813
        %v1823 = vsel %vm1816, %v1819, %v1822
        %v1824 = vsel %vm1814, nan, %v1823
        %v1825 = vsub.f32 %v1617, %v1721
        %v1826 = vsub.f32 %v1618, %v1824
        %v1827 = vmul.f32 %v1825, %v1407
        %v1828 = vmul.f32 %v1826, %v1408
        %v1829 = vmul.f32 %v1407, 3.0
        %v1830 = vmul.f32 %v1408, 3.0
        %v1831 = vmul.f32 %v1829, %v1827
        %v1832 = vmul.f32 %v1830, %v1828
        %v1833 = vsub.f32 %v1831, %v1617
        %v1834 = vsub.f32 %v1832, %v1618
        %v1835 = vmul.f32 %v1407, 5.0
        %v1836 = vmul.f32 %v1408, 5.0
        %v1837 = vmul.f32 %v1835, %v1833
        %v1838 = vmul.f32 %v1836, %v1834
        %v1839 = vsub.f32 %v1837, %v1827
        %v1840 = vsub.f32 %v1838, %v1828
        %s1841 = scalar_lea.vmem %s2, 24
        %v1842 = vld [vmem:[%s1841] sm:$0x3f]
        %1844 = vset.pattern.permute.xlu0 0
        %1845 = vperm.xlu0 %1844, %v1842
        %v1846 = vpop.permute.xlu0 %1845
        %v1848 = vmul.f32 %v1839, %v1846
        %v1849 = vmul.f32 %v1840, %v1846
        %v1850 = vmul.f32 %v1848, %v236
        %v1851 = vmul.f32 %v1849, %v240
        %s1852 = scalar_lea.vmem %s185, 48 [#allocation2]
        %1853 = vst [vmem:[%s1852] sm:$0x3f] %v1850
        %1854 = vst [vmem:[%s1852 + $0x8] sm:$0x3f] %v1851
        %s1855 = scalar_lea.vmem %s0, 32
        %v1856 = vld [vmem:[%s1855] sm:$0x3f]
        %1858 = vset.pattern.permute.xlu0 0
        %1859 = vperm.xlu0 %1858, %v1856
        %v1860 = vpop.permute.xlu0 %1859
        %v1862 = vmul.f32 %v214, %v1860
        %v1863 = vmul.f32 %v218, %v1860
        %s1864 = scalar_lea.vmem %s1, 32
        %v1865 = vld [vmem:[%s1864] sm:$0x3f]
        %1867 = vset.pattern.permute.xlu0 0
        %1868 = vperm.xlu0 %1867, %v1865
        %v1869 = vpop.permute.xlu0 %1868
        %v1871 = vmul.f32 %v225, %v1869
        %v1872 = vmul.f32 %v229, %v1869
        %v1873 = vand.u32 2147483647, %v1862
        %vm1874 = vcmp.le.f32.partialorder %v1873, 0.7853982
        %vm1875 = vcmp.lt.s32.totalorder %v1862, 0
        %v1876 = vand.u32 %v1862, 2139095040
        %v1877 = vshrl.u32 %v1876, 23
        %v1878 = vsub.s32 %v1877, 127
        %v1879 = vand.u32 2147483647, %v1862
        %v1880 = vand.u32 %v1879, 8388607
        %v1881 = vor.u32 %v1880, 8388608
        %v1882 = vsub.s32 0, %v1881
        %v1883 = vadd.s32 %v1878, 1
        %vm1884 = vcmp.gt.s32.totalorder %v1883, 0
        %v1885 = vsel %vm1884, %v1883, 0
        %v1886 = vshrl.u32 %v1885, 5
        %v1887 = vand.u32 %v1885, 31
        %v1888 = vsub.s32 32, %v1887
        %v1889 = vshrl.u32 683565275, %v1888
        %v1890 = vshll.u32 683565275, %v1887
        %v1891 = vshrl.u32 2475754826, %v1888
        %v1892 = vor.u32 %v1890, %v1891
        %v1893 = vshll.u32 2475754826, %v1887
        %v1894 = vshrl.u32 2131351028, %v1888
        %v1895 = vor.u32 %v1893, %v1894
        %v1896 = vshll.u32 2131351028, %v1887
        %v1897 = vshrl.u32 2102212464, %v1888
        %v1898 = vor.u32 %v1896, %v1897
        %v1899 = vshll.u32 2102212464, %v1887
        %v1900 = vshrl.u32 920167782, %v1888
        %v1901 = vor.u32 %v1899, %v1900
        %v1902 = vshll.u32 920167782, %v1887
        %v1903 = vshrl.u32 1326507024, %v1888
        %v1904 = vor.u32 %v1902, %v1903
        %vm1905 = vcmp.lt.s32.totalorder %v1886, 1
        %vm1906 = vcmp.lt.s32.totalorder %v1886, 2
        %vm1907 = vcmp.lt.s32.totalorder %v1886, 3
        %vm1908 = vcmp.lt.s32.totalorder %v1886, 4
        %v1909 = vsel %vm1905, %v1889, %v1892
        %v1910 = vsel %vm1908, %v1898, 2102212464
        %v1911 = vsel %vm1907, %v1895, %v1910
        %v1912 = vsel %vm1906, %v1909, %v1911
        %v1913 = vsel %vm1905, %v1892, %v1895
        %v1914 = vsel %vm1908, %v1901, 920167782
        %v1915 = vsel %vm1907, %v1898, %v1914
        %v1916 = vsel %vm1906, %v1913, %v1915
        %v1917 = vsel %vm1905, %v1895, %v1898
        %v1918 = vsel %vm1908, %v1904, 1326507024
        %v1919 = vsel %vm1907, %v1901, %v1918
        %v1920 = vsel %vm1906, %v1917, %v1919
        %v1921 = vshll.u32 %v1881, 8
        %v1922 = vmul.u32.u64.compose %v1921, %v1920
        %v1923 = vextract.low.u32 %v1922
        %v1924 = vextract.high.u32 %v1922
        %v1925 = vmul.u32.u64.compose %v1921, %v1916
        %v1926 = vextract.low.u32 %v1925
        %v1927 = vextract.high.u32 %v1925
        %v1928 = vmul.u32 %v1921, %v1912
        %v1929 = vadd.s32 %v1924, %v1926
        %vm1930 = vc.u32 %v1924, %v1926
        %v1931 = vadd.s32 %v1927, 1
        %v1932 = vsel %vm1930, %v1931, %v1927
        %v1933 = vadd.s32 %v1928, %v1932
        %v1934 = vadd.s32 %v1933, 536870912
        %v1935 = vshrl.u32 %v1934, 30
        %v1936 = vshll.u32 %v1935, 30
        %v1937 = vsub.s32 %v1933, %v1936
        %vm1938 = vcmp.lt.s32.totalorder %v1937, 0
        %v1939 = vsub.s32 0, %v1937
        %v1940 = vsel %vm1938, %v1939, %v1937
        %v1941 = vclz %v1940
        %v1942 = vsub.s32 %v1941, 2
        %vm1943 = vcmp.gt.s32.totalorder 0, %v1942
        %v1944 = vsel %vm1943, 0, %v1942
        %v1945 = vsub.s32 32, %v1944
        %v1946 = vshll.u32 %v1937, %v1944
        %v1947 = vshrl.u32 %v1929, %v1945
        %v1948 = vor.u32 %v1946, %v1947
        %v1949 = vsub.s32 4294967266, %v1944
        %v1950 = vadd.s32 %v1949, 127
        %v1951 = vshll.u32 %v1950, 23
        %v1952 = vor.u32 4788187, %v1951
        %v1953 = vand.u32 2147483647, %v1952
        %v1955 = vcvt.s32.f32 %v1948
        %v1956 = vmul.f32 %v1955, %v1953
        %v1957 = vxor.u32 %v1956, 2147483648
        %v1958 = vsel %vm1875, %v1957, %v1956
        %v1959 = vsub.s32 4, %v1935
        %v1960 = vsel %vm1875, %v1959, %v1935
        %v1961 = vsel %vm1874, %v1862, %v1958
        %v1962 = vsel %vm1874, 0, %v1960
        %v1963 = vcosq.f32.pop %v1961
        %v1964 = vsinq.f32.pop %v1961
        %vm1965 = vweird.f32 %v1862
        %v1966 = vadd.s32 %v1962, 3
        %v1967 = vand.u32 %v1966, 3
        %vm1968 = vcmp.lt.s32.totalorder %v1967, 2
        %vm1969 = vcmp.eq.s32.totalorder %v1967, 0
        %v1970 = vxor.u32 %v1964, 2147483648
        %v1971 = vsel %vm1969, %v1963, %v1970
        %vm1972 = vcmp.eq.s32.totalorder %v1967, 2
        %v1973 = vxor.u32 %v1963, 2147483648
        %v1974 = vsel %vm1972, %v1973, %v1964
        %v1975 = vsel %vm1968, %v1971, %v1974
        %v1976 = vsel %vm1965, nan, %v1975
        %v1977 = vand.u32 2147483647, %v1863
        %vm1978 = vcmp.le.f32.partialorder %v1977, 0.7853982
        %vm1979 = vcmp.lt.s32.totalorder %v1863, 0
        %v1980 = vand.u32 %v1863, 2139095040
        %v1981 = vshrl.u32 %v1980, 23
        %v1982 = vsub.s32 %v1981, 127
        %v1983 = vand.u32 2147483647, %v1863
        %v1984 = vand.u32 %v1983, 8388607
        %v1985 = vor.u32 %v1984, 8388608
        %v1986 = vsub.s32 0, %v1985
        %v1987 = vadd.s32 %v1982, 1
        %vm1988 = vcmp.gt.s32.totalorder %v1987, 0
        %v1989 = vsel %vm1988, %v1987, 0
        %v1990 = vshrl.u32 %v1989, 5
        %v1991 = vand.u32 %v1989, 31
        %v1992 = vsub.s32 32, %v1991
        %v1993 = vshrl.u32 683565275, %v1992
        %v1994 = vshll.u32 683565275, %v1991
        %v1995 = vshrl.u32 2475754826, %v1992
        %v1996 = vor.u32 %v1994, %v1995
        %v1997 = vshll.u32 2475754826, %v1991
        %v1998 = vshrl.u32 2131351028, %v1992
        %v1999 = vor.u32 %v1997, %v1998
        %v2000 = vshll.u32 2131351028, %v1991
        %v2001 = vshrl.u32 2102212464, %v1992
        %v2002 = vor.u32 %v2000, %v2001
        %v2003 = vshll.u32 2102212464, %v1991
        %v2004 = vshrl.u32 920167782, %v1992
        %v2005 = vor.u32 %v2003, %v2004
        %v2006 = vshll.u32 920167782, %v1991
        %v2007 = vshrl.u32 1326507024, %v1992
        %v2008 = vor.u32 %v2006, %v2007
        %vm2009 = vcmp.lt.s32.totalorder %v1990, 1
        %vm2010 = vcmp.lt.s32.totalorder %v1990, 2
        %vm2011 = vcmp.lt.s32.totalorder %v1990, 3
        %vm2012 = vcmp.lt.s32.totalorder %v1990, 4
        %v2013 = vsel %vm2009, %v1993, %v1996
        %v2014 = vsel %vm2012, %v2002, 2102212464
        %v2015 = vsel %vm2011, %v1999, %v2014
        %v2016 = vsel %vm2010, %v2013, %v2015
        %v2017 = vsel %vm2009, %v1996, %v1999
        %v2018 = vsel %vm2012, %v2005, 920167782
        %v2019 = vsel %vm2011, %v2002, %v2018
        %v2020 = vsel %vm2010, %v2017, %v2019
        %v2021 = vsel %vm2009, %v1999, %v2002
        %v2022 = vsel %vm2012, %v2008, 1326507024
        %v2023 = vsel %vm2011, %v2005, %v2022
        %v2024 = vsel %vm2010, %v2021, %v2023
        %v2025 = vshll.u32 %v1985, 8
        %v2026 = vmul.u32.u64.compose %v2025, %v2024
        %v2027 = vextract.low.u32 %v2026
        %v2028 = vextract.high.u32 %v2026
        %v2029 = vmul.u32.u64.compose %v2025, %v2020
        %v2030 = vextract.low.u32 %v2029
        %v2031 = vextract.high.u32 %v2029
        %v2032 = vmul.u32 %v2025, %v2016
        %v2033 = vadd.s32 %v2028, %v2030
        %vm2034 = vc.u32 %v2028, %v2030
        %v2035 = vadd.s32 %v2031, 1
        %v2036 = vsel %vm2034, %v2035, %v2031
        %v2037 = vadd.s32 %v2032, %v2036
        %v2038 = vadd.s32 %v2037, 536870912
        %v2039 = vshrl.u32 %v2038, 30
        %v2040 = vshll.u32 %v2039, 30
        %v2041 = vsub.s32 %v2037, %v2040
        %vm2042 = vcmp.lt.s32.totalorder %v2041, 0
        %v2043 = vsub.s32 0, %v2041
        %v2044 = vsel %vm2042, %v2043, %v2041
        %v2045 = vclz %v2044
        %v2046 = vsub.s32 %v2045, 2
        %vm2047 = vcmp.gt.s32.totalorder 0, %v2046
        %v2048 = vsel %vm2047, 0, %v2046
        %v2049 = vsub.s32 32, %v2048
        %v2050 = vshll.u32 %v2041, %v2048
        %v2051 = vshrl.u32 %v2033, %v2049
        %v2052 = vor.u32 %v2050, %v2051
        %v2053 = vsub.s32 4294967266, %v2048
        %v2054 = vadd.s32 %v2053, 127
        %v2055 = vshll.u32 %v2054, 23
        %v2056 = vor.u32 4788187, %v2055
        %v2057 = vand.u32 2147483647, %v2056
        %v2059 = vcvt.s32.f32 %v2052
        %v2060 = vmul.f32 %v2059, %v2057
        %v2061 = vxor.u32 %v2060, 2147483648
        %v2062 = vsel %vm1979, %v2061, %v2060
        %v2063 = vsub.s32 4, %v2039
        %v2064 = vsel %vm1979, %v2063, %v2039
        %v2065 = vsel %vm1978, %v1863, %v2062
        %v2066 = vsel %vm1978, 0, %v2064
        %v2067 = vcosq.f32.pop %v2065
        %v2068 = vsinq.f32.pop %v2065
        %vm2069 = vweird.f32 %v1863
        %v2070 = vadd.s32 %v2066, 3
        %v2071 = vand.u32 %v2070, 3
        %vm2072 = vcmp.lt.s32.totalorder %v2071, 2
        %vm2073 = vcmp.eq.s32.totalorder %v2071, 0
        %v2074 = vxor.u32 %v2068, 2147483648
        %v2075 = vsel %vm2073, %v2067, %v2074
        %vm2076 = vcmp.eq.s32.totalorder %v2071, 2
        %v2077 = vxor.u32 %v2067, 2147483648
        %v2078 = vsel %vm2076, %v2077, %v2068
        %v2079 = vsel %vm2072, %v2075, %v2078
        %v2080 = vsel %vm2069, nan, %v2079
        %v2081 = vmul.f32 %v1976, %v1871
        %v2082 = vmul.f32 %v2080, %v1872
        %v2083 = vand.u32 2147483647, %v1862
        %vm2084 = vcmp.le.f32.partialorder %v2083, 0.7853982
        %vm2085 = vcmp.lt.s32.totalorder %v1862, 0
        %v2086 = vand.u32 %v1862, 2139095040
        %v2087 = vshrl.u32 %v2086, 23
        %v2088 = vsub.s32 %v2087, 127
        %v2089 = vand.u32 2147483647, %v1862
        %v2090 = vand.u32 %v2089, 8388607
        %v2091 = vor.u32 %v2090, 8388608
        %v2092 = vsub.s32 0, %v2091
        %v2093 = vadd.s32 %v2088, 1
        %vm2094 = vcmp.gt.s32.totalorder %v2093, 0
        %v2095 = vsel %vm2094, %v2093, 0
        %v2096 = vshrl.u32 %v2095, 5
        %v2097 = vand.u32 %v2095, 31
        %v2098 = vsub.s32 32, %v2097
        %v2099 = vshrl.u32 683565275, %v2098
        %v2100 = vshll.u32 683565275, %v2097
        %v2101 = vshrl.u32 2475754826, %v2098
        %v2102 = vor.u32 %v2100, %v2101
        %v2103 = vshll.u32 2475754826, %v2097
        %v2104 = vshrl.u32 2131351028, %v2098
        %v2105 = vor.u32 %v2103, %v2104
        %v2106 = vshll.u32 2131351028, %v2097
        %v2107 = vshrl.u32 2102212464, %v2098
        %v2108 = vor.u32 %v2106, %v2107
        %v2109 = vshll.u32 2102212464, %v2097
        %v2110 = vshrl.u32 920167782, %v2098
        %v2111 = vor.u32 %v2109, %v2110
        %v2112 = vshll.u32 920167782, %v2097
        %v2113 = vshrl.u32 1326507024, %v2098
        %v2114 = vor.u32 %v2112, %v2113
        %vm2115 = vcmp.lt.s32.totalorder %v2096, 1
        %vm2116 = vcmp.lt.s32.totalorder %v2096, 2
        %vm2117 = vcmp.lt.s32.totalorder %v2096, 3
        %vm2118 = vcmp.lt.s32.totalorder %v2096, 4
        %v2119 = vsel %vm2115, %v2099, %v2102
        %v2120 = vsel %vm2118, %v2108, 2102212464
        %v2121 = vsel %vm2117, %v2105, %v2120
        %v2122 = vsel %vm2116, %v2119, %v2121
        %v2123 = vsel %vm2115, %v2102, %v2105
        %v2124 = vsel %vm2118, %v2111, 920167782
        %v2125 = vsel %vm2117, %v2108, %v2124
        %v2126 = vsel %vm2116, %v2123, %v2125
        %v2127 = vsel %vm2115, %v2105, %v2108
        %v2128 = vsel %vm2118, %v2114, 1326507024
        %v2129 = vsel %vm2117, %v2111, %v2128
        %v2130 = vsel %vm2116, %v2127, %v2129
        %v2131 = vshll.u32 %v2091, 8
        %v2132 = vmul.u32.u64.compose %v2131, %v2130
        %v2133 = vextract.low.u32 %v2132
        %v2134 = vextract.high.u32 %v2132
        %v2135 = vmul.u32.u64.compose %v2131, %v2126
        %v2136 = vextract.low.u32 %v2135
        %v2137 = vextract.high.u32 %v2135
        %v2138 = vmul.u32 %v2131, %v2122
        %v2139 = vadd.s32 %v2134, %v2136
        %vm2140 = vc.u32 %v2134, %v2136
        %v2141 = vadd.s32 %v2137, 1
        %v2142 = vsel %vm2140, %v2141, %v2137
        %v2143 = vadd.s32 %v2138, %v2142
        %v2144 = vadd.s32 %v2143, 536870912
        %v2145 = vshrl.u32 %v2144, 30
        %v2146 = vshll.u32 %v2145, 30
        %v2147 = vsub.s32 %v2143, %v2146
        %vm2148 = vcmp.lt.s32.totalorder %v2147, 0
        %v2149 = vsub.s32 0, %v2147
        %v2150 = vsel %vm2148, %v2149, %v2147
        %v2151 = vclz %v2150
        %v2152 = vsub.s32 %v2151, 2
        %vm2153 = vcmp.gt.s32.totalorder 0, %v2152
        %v2154 = vsel %vm2153, 0, %v2152
        %v2155 = vsub.s32 32, %v2154
        %v2156 = vshll.u32 %v2147, %v2154
        %v2157 = vshrl.u32 %v2139, %v2155
        %v2158 = vor.u32 %v2156, %v2157
        %v2159 = vsub.s32 4294967266, %v2154
        %v2160 = vadd.s32 %v2159, 127
        %v2161 = vshll.u32 %v2160, 23
        %v2162 = vor.u32 4788187, %v2161
        %v2163 = vand.u32 2147483647, %v2162
        %v2165 = vcvt.s32.f32 %v2158
        %v2166 = vmul.f32 %v2165, %v2163
        %v2167 = vxor.u32 %v2166, 2147483648
        %v2168 = vsel %vm2085, %v2167, %v2166
        %v2169 = vsub.s32 4, %v2145
        %v2170 = vsel %vm2085, %v2169, %v2145
        %v2171 = vsel %vm2084, %v1862, %v2168
        %v2172 = vsel %vm2084, 0, %v2170
        %v2173 = vcosq.f32.pop %v2171
        %v2174 = vsinq.f32.pop %v2171
        %vm2175 = vweird.f32 %v1862
        %v2176 = vand.u32 %v2172, 3
        %vm2177 = vcmp.lt.s32.totalorder %v2176, 2
        %vm2178 = vcmp.eq.s32.totalorder %v2176, 0
        %v2179 = vxor.u32 %v2174, 2147483648
        %v2180 = vsel %vm2178, %v2173, %v2179
        %vm2181 = vcmp.eq.s32.totalorder %v2176, 2
        %v2182 = vxor.u32 %v2173, 2147483648
        %v2183 = vsel %vm2181, %v2182, %v2174
        %v2184 = vsel %vm2177, %v2180, %v2183
        %v2185 = vsel %vm2175, nan, %v2184
        %v2186 = vand.u32 2147483647, %v1863
        %vm2187 = vcmp.le.f32.partialorder %v2186, 0.7853982
        %vm2188 = vcmp.lt.s32.totalorder %v1863, 0
        %v2189 = vand.u32 %v1863, 2139095040
        %v2190 = vshrl.u32 %v2189, 23
        %v2191 = vsub.s32 %v2190, 127
        %v2192 = vand.u32 2147483647, %v1863
        %v2193 = vand.u32 %v2192, 8388607
        %v2194 = vor.u32 %v2193, 8388608
        %v2195 = vsub.s32 0, %v2194
        %v2196 = vadd.s32 %v2191, 1
        %vm2197 = vcmp.gt.s32.totalorder %v2196, 0
        %v2198 = vsel %vm2197, %v2196, 0
        %v2199 = vshrl.u32 %v2198, 5
        %v2200 = vand.u32 %v2198, 31
        %v2201 = vsub.s32 32, %v2200
        %v2202 = vshrl.u32 683565275, %v2201
        %v2203 = vshll.u32 683565275, %v2200
        %v2204 = vshrl.u32 2475754826, %v2201
        %v2205 = vor.u32 %v2203, %v2204
        %v2206 = vshll.u32 2475754826, %v2200
        %v2207 = vshrl.u32 2131351028, %v2201
        %v2208 = vor.u32 %v2206, %v2207
        %v2209 = vshll.u32 2131351028, %v2200
        %v2210 = vshrl.u32 2102212464, %v2201
        %v2211 = vor.u32 %v2209, %v2210
        %v2212 = vshll.u32 2102212464, %v2200
        %v2213 = vshrl.u32 920167782, %v2201
        %v2214 = vor.u32 %v2212, %v2213
        %v2215 = vshll.u32 920167782, %v2200
        %v2216 = vshrl.u32 1326507024, %v2201
        %v2217 = vor.u32 %v2215, %v2216
        %vm2218 = vcmp.lt.s32.totalorder %v2199, 1
        %vm2219 = vcmp.lt.s32.totalorder %v2199, 2
        %vm2220 = vcmp.lt.s32.totalorder %v2199, 3
        %vm2221 = vcmp.lt.s32.totalorder %v2199, 4
        %v2222 = vsel %vm2218, %v2202, %v2205
        %v2223 = vsel %vm2221, %v2211, 2102212464
        %v2224 = vsel %vm2220, %v2208, %v2223
        %v2225 = vsel %vm2219, %v2222, %v2224
        %v2226 = vsel %vm2218, %v2205, %v2208
        %v2227 = vsel %vm2221, %v2214, 920167782
        %v2228 = vsel %vm2220, %v2211, %v2227
        %v2229 = vsel %vm2219, %v2226, %v2228
        %v2230 = vsel %vm2218, %v2208, %v2211
        %v2231 = vsel %vm2221, %v2217, 1326507024
        %v2232 = vsel %vm2220, %v2214, %v2231
        %v2233 = vsel %vm2219, %v2230, %v2232
        %v2234 = vshll.u32 %v2194, 8
        %v2235 = vmul.u32.u64.compose %v2234, %v2233
        %v2236 = vextract.low.u32 %v2235
        %v2237 = vextract.high.u32 %v2235
        %v2238 = vmul.u32.u64.compose %v2234, %v2229
        %v2239 = vextract.low.u32 %v2238
        %v2240 = vextract.high.u32 %v2238
        %v2241 = vmul.u32 %v2234, %v2225
        %v2242 = vadd.s32 %v2237, %v2239
        %vm2243 = vc.u32 %v2237, %v2239
        %v2244 = vadd.s32 %v2240, 1
        %v2245 = vsel %vm2243, %v2244, %v2240
        %v2246 = vadd.s32 %v2241, %v2245
        %v2247 = vadd.s32 %v2246, 536870912
        %v2248 = vshrl.u32 %v2247, 30
        %v2249 = vshll.u32 %v2248, 30
        %v2250 = vsub.s32 %v2246, %v2249
        %vm2251 = vcmp.lt.s32.totalorder %v2250, 0
        %v2252 = vsub.s32 0, %v2250
        %v2253 = vsel %vm2251, %v2252, %v2250
        %v2254 = vclz %v2253
        %v2255 = vsub.s32 %v2254, 2
        %vm2256 = vcmp.gt.s32.totalorder 0, %v2255
        %v2257 = vsel %vm2256, 0, %v2255
        %v2258 = vsub.s32 32, %v2257
        %v2259 = vshll.u32 %v2250, %v2257
        %v2260 = vshrl.u32 %v2242, %v2258
        %v2261 = vor.u32 %v2259, %v2260
        %v2262 = vsub.s32 4294967266, %v2257
        %v2263 = vadd.s32 %v2262, 127
        %v2264 = vshll.u32 %v2263, 23
        %v2265 = vor.u32 4788187, %v2264
        %v2266 = vand.u32 2147483647, %v2265
        %v2268 = vcvt.s32.f32 %v2261
        %v2269 = vmul.f32 %v2268, %v2266
        %v2270 = vxor.u32 %v2269, 2147483648
        %v2271 = vsel %vm2188, %v2270, %v2269
        %v2272 = vsub.s32 4, %v2248
        %v2273 = vsel %vm2188, %v2272, %v2248
        %v2274 = vsel %vm2187, %v1863, %v2271
        %v2275 = vsel %vm2187, 0, %v2273
        %v2276 = vcosq.f32.pop %v2274
        %v2277 = vsinq.f32.pop %v2274
        %vm2278 = vweird.f32 %v1863
        %v2279 = vand.u32 %v2275, 3
        %vm2280 = vcmp.lt.s32.totalorder %v2279, 2
        %vm2281 = vcmp.eq.s32.totalorder %v2279, 0
        %v2282 = vxor.u32 %v2277, 2147483648
        %v2283 = vsel %vm2281, %v2276, %v2282
        %vm2284 = vcmp.eq.s32.totalorder %v2279, 2
        %v2285 = vxor.u32 %v2276, 2147483648
        %v2286 = vsel %vm2284, %v2285, %v2277
        %v2287 = vsel %vm2280, %v2283, %v2286
        %v2288 = vsel %vm2278, nan, %v2287
        %v2289 = vsub.f32 %v2081, %v2185
        %v2290 = vsub.f32 %v2082, %v2288
        %v2291 = vmul.f32 %v2289, %v1871
        %v2292 = vmul.f32 %v2290, %v1872
        %v2293 = vmul.f32 %v1871, 3.0
        %v2294 = vmul.f32 %v1872, 3.0
        %v2295 = vmul.f32 %v2293, %v2291
        %v2296 = vmul.f32 %v2294, %v2292
        %v2297 = vsub.f32 %v2295, %v2081
        %v2298 = vsub.f32 %v2296, %v2082
        %v2299 = vmul.f32 %v1871, 5.0
        %v2300 = vmul.f32 %v1872, 5.0
        %v2301 = vmul.f32 %v2299, %v2297
        %v2302 = vmul.f32 %v2300, %v2298
        %v2303 = vsub.f32 %v2301, %v2291
        %v2304 = vsub.f32 %v2302, %v2292
        %v2305 = vmul.f32 %v1871, 7.0
        %v2306 = vmul.f32 %v1872, 7.0
        %v2307 = vmul.f32 %v2305, %v2303
        %v2308 = vmul.f32 %v2306, %v2304
        %v2309 = vsub.f32 %v2307, %v2297
        %v2310 = vsub.f32 %v2308, %v2298
        %s2311 = scalar_lea.vmem %s2, 32
        %v2312 = vld [vmem:[%s2311] sm:$0x3f]
        %2314 = vset.pattern.permute.xlu0 0
        %2315 = vperm.xlu0 %2314, %v2312
        %v2316 = vpop.permute.xlu0 %2315
        %v2318 = vmul.f32 %v2309, %v2316
        %v2319 = vmul.f32 %v2310, %v2316
        %v2320 = vmul.f32 %v2318, %v236
        %v2321 = vmul.f32 %v2319, %v240
        %s2322 = scalar_lea.vmem %s185, 64 [#allocation2]
        %2323 = vst [vmem:[%s2322] sm:$0x3f] %v2320
        %2324 = vst [vmem:[%s2322 + $0x8] sm:$0x3f] %v2321
        %s2325 = scalar_lea.vmem %s0, 40
        %v2326 = vld [vmem:[%s2325] sm:$0x3f]
        %2328 = vset.pattern.permute.xlu0 0
        %2329 = vperm.xlu0 %2328, %v2326
        %v2330 = vpop.permute.xlu0 %2329
        %v2332 = vmul.f32 %v214, %v2330
        %v2333 = vmul.f32 %v218, %v2330
        %s2334 = scalar_lea.vmem %s1, 40
        %v2335 = vld [vmem:[%s2334] sm:$0x3f]
        %2337 = vset.pattern.permute.xlu0 0
        %2338 = vperm.xlu0 %2337, %v2335
        %v2339 = vpop.permute.xlu0 %2338
        %v2341 = vmul.f32 %v225, %v2339
        %v2342 = vmul.f32 %v229, %v2339
        %v2343 = vand.u32 2147483647, %v2332
        %vm2344 = vcmp.le.f32.partialorder %v2343, 0.7853982
        %vm2345 = vcmp.lt.s32.totalorder %v2332, 0
        %v2346 = vand.u32 %v2332, 2139095040
        %v2347 = vshrl.u32 %v2346, 23
        %v2348 = vsub.s32 %v2347, 127
        %v2349 = vand.u32 2147483647, %v2332
        %v2350 = vand.u32 %v2349, 8388607
        %v2351 = vor.u32 %v2350, 8388608
        %v2352 = vsub.s32 0, %v2351
        %v2353 = vadd.s32 %v2348, 1
        %vm2354 = vcmp.gt.s32.totalorder %v2353, 0
        %v2355 = vsel %vm2354, %v2353, 0
        %v2356 = vshrl.u32 %v2355, 5
        %v2357 = vand.u32 %v2355, 31
        %v2358 = vsub.s32 32, %v2357
        %v2359 = vshrl.u32 683565275, %v2358
        %v2360 = vshll.u32 683565275, %v2357
        %v2361 = vshrl.u32 2475754826, %v2358
        %v2362 = vor.u32 %v2360, %v2361
        %v2363 = vshll.u32 2475754826, %v2357
        %v2364 = vshrl.u32 2131351028, %v2358
        %v2365 = vor.u32 %v2363, %v2364
        %v2366 = vshll.u32 2131351028, %v2357
        %v2367 = vshrl.u32 2102212464, %v2358
        %v2368 = vor.u32 %v2366, %v2367
        %v2369 = vshll.u32 2102212464, %v2357
        %v2370 = vshrl.u32 920167782, %v2358
        %v2371 = vor.u32 %v2369, %v2370
        %v2372 = vshll.u32 920167782, %v2357
        %v2373 = vshrl.u32 1326507024, %v2358
        %v2374 = vor.u32 %v2372, %v2373
        %vm2375 = vcmp.lt.s32.totalorder %v2356, 1
        %vm2376 = vcmp.lt.s32.totalorder %v2356, 2
        %vm2377 = vcmp.lt.s32.totalorder %v2356, 3
        %vm2378 = vcmp.lt.s32.totalorder %v2356, 4
        %v2379 = vsel %vm2375, %v2359, %v2362
        %v2380 = vsel %vm2378, %v2368, 2102212464
        %v2381 = vsel %vm2377, %v2365, %v2380
        %v2382 = vsel %vm2376, %v2379, %v2381
        %v2383 = vsel %vm2375, %v2362, %v2365
        %v2384 = vsel %vm2378, %v2371, 920167782
        %v2385 = vsel %vm2377, %v2368, %v2384
        %v2386 = vsel %vm2376, %v2383, %v2385
        %v2387 = vsel %vm2375, %v2365, %v2368
        %v2388 = vsel %vm2378, %v2374, 1326507024
        %v2389 = vsel %vm2377, %v2371, %v2388
        %v2390 = vsel %vm2376, %v2387, %v2389
        %v2391 = vshll.u32 %v2351, 8
        %v2392 = vmul.u32.u64.compose %v2391, %v2390
        %v2393 = vextract.low.u32 %v2392
        %v2394 = vextract.high.u32 %v2392
        %v2395 = vmul.u32.u64.compose %v2391, %v2386
        %v2396 = vextract.low.u32 %v2395
        %v2397 = vextract.high.u32 %v2395
        %v2398 = vmul.u32 %v2391, %v2382
        %v2399 = vadd.s32 %v2394, %v2396
        %vm2400 = vc.u32 %v2394, %v2396
        %v2401 = vadd.s32 %v2397, 1
        %v2402 = vsel %vm2400, %v2401, %v2397
        %v2403 = vadd.s32 %v2398, %v2402
        %v2404 = vadd.s32 %v2403, 536870912
        %v2405 = vshrl.u32 %v2404, 30
        %v2406 = vshll.u32 %v2405, 30
        %v2407 = vsub.s32 %v2403, %v2406
        %vm2408 = vcmp.lt.s32.totalorder %v2407, 0
        %v2409 = vsub.s32 0, %v2407
        %v2410 = vsel %vm2408, %v2409, %v2407
        %v2411 = vclz %v2410
        %v2412 = vsub.s32 %v2411, 2
        %vm2413 = vcmp.gt.s32.totalorder 0, %v2412
        %v2414 = vsel %vm2413, 0, %v2412
        %v2415 = vsub.s32 32, %v2414
        %v2416 = vshll.u32 %v2407, %v2414
        %v2417 = vshrl.u32 %v2399, %v2415
        %v2418 = vor.u32 %v2416, %v2417
        %v2419 = vsub.s32 4294967266, %v2414
        %v2420 = vadd.s32 %v2419, 127
        %v2421 = vshll.u32 %v2420, 23
        %v2422 = vor.u32 4788187, %v2421
        %v2423 = vand.u32 2147483647, %v2422
        %v2425 = vcvt.s32.f32 %v2418
        %v2426 = vmul.f32 %v2425, %v2423
        %v2427 = vxor.u32 %v2426, 2147483648
        %v2428 = vsel %vm2345, %v2427, %v2426
        %v2429 = vsub.s32 4, %v2405
        %v2430 = vsel %vm2345, %v2429, %v2405
        %v2431 = vsel %vm2344, %v2332, %v2428
        %v2432 = vsel %vm2344, 0, %v2430
        %v2433 = vcosq.f32.pop %v2431
        %v2434 = vsinq.f32.pop %v2431
        %vm2435 = vweird.f32 %v2332
        %v2436 = vadd.s32 %v2432, 3
        %v2437 = vand.u32 %v2436, 3
        %vm2438 = vcmp.lt.s32.totalorder %v2437, 2
        %vm2439 = vcmp.eq.s32.totalorder %v2437, 0
        %v2440 = vxor.u32 %v2434, 2147483648
        %v2441 = vsel %vm2439, %v2433, %v2440
        %vm2442 = vcmp.eq.s32.totalorder %v2437, 2
        %v2443 = vxor.u32 %v2433, 2147483648
        %v2444 = vsel %vm2442, %v2443, %v2434
        %v2445 = vsel %vm2438, %v2441, %v2444
        %v2446 = vsel %vm2435, nan, %v2445
        %v2447 = vand.u32 2147483647, %v2333
        %vm2448 = vcmp.le.f32.partialorder %v2447, 0.7853982
        %vm2449 = vcmp.lt.s32.totalorder %v2333, 0
        %v2450 = vand.u32 %v2333, 2139095040
        %v2451 = vshrl.u32 %v2450, 23
        %v2452 = vsub.s32 %v2451, 127
        %v2453 = vand.u32 2147483647, %v2333
        %v2454 = vand.u32 %v2453, 8388607
        %v2455 = vor.u32 %v2454, 8388608
        %v2456 = vsub.s32 0, %v2455
        %v2457 = vadd.s32 %v2452, 1
        %vm2458 = vcmp.gt.s32.totalorder %v2457, 0
        %v2459 = vsel %vm2458, %v2457, 0
        %v2460 = vshrl.u32 %v2459, 5
        %v2461 = vand.u32 %v2459, 31
        %v2462 = vsub.s32 32, %v2461
        %v2463 = vshrl.u32 683565275, %v2462
        %v2464 = vshll.u32 683565275, %v2461
        %v2465 = vshrl.u32 2475754826, %v2462
        %v2466 = vor.u32 %v2464, %v2465
        %v2467 = vshll.u32 2475754826, %v2461
        %v2468 = vshrl.u32 2131351028, %v2462
        %v2469 = vor.u32 %v2467, %v2468
        %v2470 = vshll.u32 2131351028, %v2461
        %v2471 = vshrl.u32 2102212464, %v2462
        %v2472 = vor.u32 %v2470, %v2471
        %v2473 = vshll.u32 2102212464, %v2461
        %v2474 = vshrl.u32 920167782, %v2462
        %v2475 = vor.u32 %v2473, %v2474
        %v2476 = vshll.u32 920167782, %v2461
        %v2477 = vshrl.u32 1326507024, %v2462
        %v2478 = vor.u32 %v2476, %v2477
        %vm2479 = vcmp.lt.s32.totalorder %v2460, 1
        %vm2480 = vcmp.lt.s32.totalorder %v2460, 2
        %vm2481 = vcmp.lt.s32.totalorder %v2460, 3
        %vm2482 = vcmp.lt.s32.totalorder %v2460, 4
        %v2483 = vsel %vm2479, %v2463, %v2466
        %v2484 = vsel %vm2482, %v2472, 2102212464
        %v2485 = vsel %vm2481, %v2469, %v2484
        %v2486 = vsel %vm2480, %v2483, %v2485
        %v2487 = vsel %vm2479, %v2466, %v2469
        %v2488 = vsel %vm2482, %v2475, 920167782
        %v2489 = vsel %vm2481, %v2472, %v2488
        %v2490 = vsel %vm2480, %v2487, %v2489
        %v2491 = vsel %vm2479, %v2469, %v2472
        %v2492 = vsel %vm2482, %v2478, 1326507024
        %v2493 = vsel %vm2481, %v2475, %v2492
        %v2494 = vsel %vm2480, %v2491, %v2493
        %v2495 = vshll.u32 %v2455, 8
        %v2496 = vmul.u32.u64.compose %v2495, %v2494
        %v2497 = vextract.low.u32 %v2496
        %v2498 = vextract.high.u32 %v2496
        %v2499 = vmul.u32.u64.compose %v2495, %v2490
        %v2500 = vextract.low.u32 %v2499
        %v2501 = vextract.high.u32 %v2499
        %v2502 = vmul.u32 %v2495, %v2486
        %v2503 = vadd.s32 %v2498, %v2500
        %vm2504 = vc.u32 %v2498, %v2500
        %v2505 = vadd.s32 %v2501, 1
        %v2506 = vsel %vm2504, %v2505, %v2501
        %v2507 = vadd.s32 %v2502, %v2506
        %v2508 = vadd.s32 %v2507, 536870912
        %v2509 = vshrl.u32 %v2508, 30
        %v2510 = vshll.u32 %v2509, 30
        %v2511 = vsub.s32 %v2507, %v2510
        %vm2512 = vcmp.lt.s32.totalorder %v2511, 0
        %v2513 = vsub.s32 0, %v2511
        %v2514 = vsel %vm2512, %v2513, %v2511
        %v2515 = vclz %v2514
        %v2516 = vsub.s32 %v2515, 2
        %vm2517 = vcmp.gt.s32.totalorder 0, %v2516
        %v2518 = vsel %vm2517, 0, %v2516
        %v2519 = vsub.s32 32, %v2518
        %v2520 = vshll.u32 %v2511, %v2518
        %v2521 = vshrl.u32 %v2503, %v2519
        %v2522 = vor.u32 %v2520, %v2521
        %v2523 = vsub.s32 4294967266, %v2518
        %v2524 = vadd.s32 %v2523, 127
        %v2525 = vshll.u32 %v2524, 23
        %v2526 = vor.u32 4788187, %v2525
        %v2527 = vand.u32 2147483647, %v2526
        %v2529 = vcvt.s32.f32 %v2522
        %v2530 = vmul.f32 %v2529, %v2527
        %v2531 = vxor.u32 %v2530, 2147483648
        %v2532 = vsel %vm2449, %v2531, %v2530
        %v2533 = vsub.s32 4, %v2509
        %v2534 = vsel %vm2449, %v2533, %v2509
        %v2535 = vsel %vm2448, %v2333, %v2532
        %v2536 = vsel %vm2448, 0, %v2534
        %v2537 = vcosq.f32.pop %v2535
        %v2538 = vsinq.f32.pop %v2535
        %vm2539 = vweird.f32 %v2333
        %v2540 = vadd.s32 %v2536, 3
        %v2541 = vand.u32 %v2540, 3
        %vm2542 = vcmp.lt.s32.totalorder %v2541, 2
        %vm2543 = vcmp.eq.s32.totalorder %v2541, 0
        %v2544 = vxor.u32 %v2538, 2147483648
        %v2545 = vsel %vm2543, %v2537, %v2544
        %vm2546 = vcmp.eq.s32.totalorder %v2541, 2
        %v2547 = vxor.u32 %v2537, 2147483648
        %v2548 = vsel %vm2546, %v2547, %v2538
        %v2549 = vsel %vm2542, %v2545, %v2548
        %v2550 = vsel %vm2539, nan, %v2549
        %v2551 = vmul.f32 %v2446, %v2341
        %v2552 = vmul.f32 %v2550, %v2342
        %v2553 = vand.u32 2147483647, %v2332
        %vm2554 = vcmp.le.f32.partialorder %v2553, 0.7853982
        %vm2555 = vcmp.lt.s32.totalorder %v2332, 0
        %v2556 = vand.u32 %v2332, 2139095040
        %v2557 = vshrl.u32 %v2556, 23
        %v2558 = vsub.s32 %v2557, 127
        %v2559 = vand.u32 2147483647, %v2332
        %v2560 = vand.u32 %v2559, 8388607
        %v2561 = vor.u32 %v2560, 8388608
        %v2562 = vsub.s32 0, %v2561
        %v2563 = vadd.s32 %v2558, 1
        %vm2564 = vcmp.gt.s32.totalorder %v2563, 0
        %v2565 = vsel %vm2564, %v2563, 0
        %v2566 = vshrl.u32 %v2565, 5
        %v2567 = vand.u32 %v2565, 31
        %v2568 = vsub.s32 32, %v2567
        %v2569 = vshrl.u32 683565275, %v2568
        %v2570 = vshll.u32 683565275, %v2567
        %v2571 = vshrl.u32 2475754826, %v2568
        %v2572 = vor.u32 %v2570, %v2571
        %v2573 = vshll.u32 2475754826, %v2567
        %v2574 = vshrl.u32 2131351028, %v2568
        %v2575 = vor.u32 %v2573, %v2574
        %v2576 = vshll.u32 2131351028, %v2567
        %v2577 = vshrl.u32 2102212464, %v2568
        %v2578 = vor.u32 %v2576, %v2577
        %v2579 = vshll.u32 2102212464, %v2567
        %v2580 = vshrl.u32 920167782, %v2568
        %v2581 = vor.u32 %v2579, %v2580
        %v2582 = vshll.u32 920167782, %v2567
        %v2583 = vshrl.u32 1326507024, %v2568
        %v2584 = vor.u32 %v2582, %v2583
        %vm2585 = vcmp.lt.s32.totalorder %v2566, 1
        %vm2586 = vcmp.lt.s32.totalorder %v2566, 2
        %vm2587 = vcmp.lt.s32.totalorder %v2566, 3
        %vm2588 = vcmp.lt.s32.totalorder %v2566, 4
        %v2589 = vsel %vm2585, %v2569, %v2572
        %v2590 = vsel %vm2588, %v2578, 2102212464
        %v2591 = vsel %vm2587, %v2575, %v2590
        %v2592 = vsel %vm2586, %v2589, %v2591
        %v2593 = vsel %vm2585, %v2572, %v2575
        %v2594 = vsel %vm2588, %v2581, 920167782
        %v2595 = vsel %vm2587, %v2578, %v2594
        %v2596 = vsel %vm2586, %v2593, %v2595
        %v2597 = vsel %vm2585, %v2575, %v2578
        %v2598 = vsel %vm2588, %v2584, 1326507024
        %v2599 = vsel %vm2587, %v2581, %v2598
        %v2600 = vsel %vm2586, %v2597, %v2599
        %v2601 = vshll.u32 %v2561, 8
        %v2602 = vmul.u32.u64.compose %v2601, %v2600
        %v2603 = vextract.low.u32 %v2602
        %v2604 = vextract.high.u32 %v2602
        %v2605 = vmul.u32.u64.compose %v2601, %v2596
        %v2606 = vextract.low.u32 %v2605
        %v2607 = vextract.high.u32 %v2605
        %v2608 = vmul.u32 %v2601, %v2592
        %v2609 = vadd.s32 %v2604, %v2606
        %vm2610 = vc.u32 %v2604, %v2606
        %v2611 = vadd.s32 %v2607, 1
        %v2612 = vsel %vm2610, %v2611, %v2607
        %v2613 = vadd.s32 %v2608, %v2612
        %v2614 = vadd.s32 %v2613, 536870912
        %v2615 = vshrl.u32 %v2614, 30
        %v2616 = vshll.u32 %v2615, 30
        %v2617 = vsub.s32 %v2613, %v2616
        %vm2618 = vcmp.lt.s32.totalorder %v2617, 0
        %v2619 = vsub.s32 0, %v2617
        %v2620 = vsel %vm2618, %v2619, %v2617
        %v2621 = vclz %v2620
        %v2622 = vsub.s32 %v2621, 2
        %vm2623 = vcmp.gt.s32.totalorder 0, %v2622
        %v2624 = vsel %vm2623, 0, %v2622
        %v2625 = vsub.s32 32, %v2624
        %v2626 = vshll.u32 %v2617, %v2624
        %v2627 = vshrl.u32 %v2609, %v2625
        %v2628 = vor.u32 %v2626, %v2627
        %v2629 = vsub.s32 4294967266, %v2624
        %v2630 = vadd.s32 %v2629, 127
        %v2631 = vshll.u32 %v2630, 23
        %v2632 = vor.u32 4788187, %v2631
        %v2633 = vand.u32 2147483647, %v2632
        %v2635 = vcvt.s32.f32 %v2628
        %v2636 = vmul.f32 %v2635, %v2633
        %v2637 = vxor.u32 %v2636, 2147483648
        %v2638 = vsel %vm2555, %v2637, %v2636
        %v2639 = vsub.s32 4, %v2615
        %v2640 = vsel %vm2555, %v2639, %v2615
        %v2641 = vsel %vm2554, %v2332, %v2638
        %v2642 = vsel %vm2554, 0, %v2640
        %v2643 = vcosq.f32.pop %v2641
        %v2644 = vsinq.f32.pop %v2641
        %vm2645 = vweird.f32 %v2332
        %v2646 = vand.u32 %v2642, 3
        %vm2647 = vcmp.lt.s32.totalorder %v2646, 2
        %vm2648 = vcmp.eq.s32.totalorder %v2646, 0
        %v2649 = vxor.u32 %v2644, 2147483648
        %v2650 = vsel %vm2648, %v2643, %v2649
        %vm2651 = vcmp.eq.s32.totalorder %v2646, 2
        %v2652 = vxor.u32 %v2643, 2147483648
        %v2653 = vsel %vm2651, %v2652, %v2644
        %v2654 = vsel %vm2647, %v2650, %v2653
        %v2655 = vsel %vm2645, nan, %v2654
        %v2656 = vand.u32 2147483647, %v2333
        %vm2657 = vcmp.le.f32.partialorder %v2656, 0.7853982
        %vm2658 = vcmp.lt.s32.totalorder %v2333, 0
        %v2659 = vand.u32 %v2333, 2139095040
        %v2660 = vshrl.u32 %v2659, 23
        %v2661 = vsub.s32 %v2660, 127
        %v2662 = vand.u32 2147483647, %v2333
        %v2663 = vand.u32 %v2662, 8388607
        %v2664 = vor.u32 %v2663, 8388608
        %v2665 = vsub.s32 0, %v2664
        %v2666 = vadd.s32 %v2661, 1
        %vm2667 = vcmp.gt.s32.totalorder %v2666, 0
        %v2668 = vsel %vm2667, %v2666, 0
        %v2669 = vshrl.u32 %v2668, 5
        %v2670 = vand.u32 %v2668, 31
        %v2671 = vsub.s32 32, %v2670
        %v2672 = vshrl.u32 683565275, %v2671
        %v2673 = vshll.u32 683565275, %v2670
        %v2674 = vshrl.u32 2475754826, %v2671
        %v2675 = vor.u32 %v2673, %v2674
        %v2676 = vshll.u32 2475754826, %v2670
        %v2677 = vshrl.u32 2131351028, %v2671
        %v2678 = vor.u32 %v2676, %v2677
        %v2679 = vshll.u32 2131351028, %v2670
        %v2680 = vshrl.u32 2102212464, %v2671
        %v2681 = vor.u32 %v2679, %v2680
        %v2682 = vshll.u32 2102212464, %v2670
        %v2683 = vshrl.u32 920167782, %v2671
        %v2684 = vor.u32 %v2682, %v2683
        %v2685 = vshll.u32 920167782, %v2670
        %v2686 = vshrl.u32 1326507024, %v2671
        %v2687 = vor.u32 %v2685, %v2686
        %vm2688 = vcmp.lt.s32.totalorder %v2669, 1
        %vm2689 = vcmp.lt.s32.totalorder %v2669, 2
        %vm2690 = vcmp.lt.s32.totalorder %v2669, 3
        %vm2691 = vcmp.lt.s32.totalorder %v2669, 4
        %v2692 = vsel %vm2688, %v2672, %v2675
        %v2693 = vsel %vm2691, %v2681, 2102212464
        %v2694 = vsel %vm2690, %v2678, %v2693
        %v2695 = vsel %vm2689, %v2692, %v2694
        %v2696 = vsel %vm2688, %v2675, %v2678
        %v2697 = vsel %vm2691, %v2684, 920167782
        %v2698 = vsel %vm2690, %v2681, %v2697
        %v2699 = vsel %vm2689, %v2696, %v2698
        %v2700 = vsel %vm2688, %v2678, %v2681
        %v2701 = vsel %vm2691, %v2687, 1326507024
        %v2702 = vsel %vm2690, %v2684, %v2701
        %v2703 = vsel %vm2689, %v2700, %v2702
        %v2704 = vshll.u32 %v2664, 8
        %v2705 = vmul.u32.u64.compose %v2704, %v2703
        %v2706 = vextract.low.u32 %v2705
        %v2707 = vextract.high.u32 %v2705
        %v2708 = vmul.u32.u64.compose %v2704, %v2699
        %v2709 = vextract.low.u32 %v2708
        %v2710 = vextract.high.u32 %v2708
        %v2711 = vmul.u32 %v2704, %v2695
        %v2712 = vadd.s32 %v2707, %v2709
        %vm2713 = vc.u32 %v2707, %v2709
        %v2714 = vadd.s32 %v2710, 1
        %v2715 = vsel %vm2713, %v2714, %v2710
        %v2716 = vadd.s32 %v2711, %v2715
        %v2717 = vadd.s32 %v2716, 536870912
        %v2718 = vshrl.u32 %v2717, 30
        %v2719 = vshll.u32 %v2718, 30
        %v2720 = vsub.s32 %v2716, %v2719
        %vm2721 = vcmp.lt.s32.totalorder %v2720, 0
        %v2722 = vsub.s32 0, %v2720
        %v2723 = vsel %vm2721, %v2722, %v2720
        %v2724 = vclz %v2723
        %v2725 = vsub.s32 %v2724, 2
        %vm2726 = vcmp.gt.s32.totalorder 0, %v2725
        %v2727 = vsel %vm2726, 0, %v2725
        %v2728 = vsub.s32 32, %v2727
        %v2729 = vshll.u32 %v2720, %v2727
        %v2730 = vshrl.u32 %v2712, %v2728
        %v2731 = vor.u32 %v2729, %v2730
        %v2732 = vsub.s32 4294967266, %v2727
        %v2733 = vadd.s32 %v2732, 127
        %v2734 = vshll.u32 %v2733, 23
        %v2735 = vor.u32 4788187, %v2734
        %v2736 = vand.u32 2147483647, %v2735
        %v2738 = vcvt.s32.f32 %v2731
        %v2739 = vmul.f32 %v2738, %v2736
        %v2740 = vxor.u32 %v2739, 2147483648
        %v2741 = vsel %vm2658, %v2740, %v2739
        %v2742 = vsub.s32 4, %v2718
        %v2743 = vsel %vm2658, %v2742, %v2718
        %v2744 = vsel %vm2657, %v2333, %v2741
        %v2745 = vsel %vm2657, 0, %v2743
        %v2746 = vcosq.f32.pop %v2744
        %v2747 = vsinq.f32.pop %v2744
        %vm2748 = vweird.f32 %v2333
        %v2749 = vand.u32 %v2745, 3
        %vm2750 = vcmp.lt.s32.totalorder %v2749, 2
        %vm2751 = vcmp.eq.s32.totalorder %v2749, 0
        %v2752 = vxor.u32 %v2747, 2147483648
        %v2753 = vsel %vm2751, %v2746, %v2752
        %vm2754 = vcmp.eq.s32.totalorder %v2749, 2
        %v2755 = vxor.u32 %v2746, 2147483648
        %v2756 = vsel %vm2754, %v2755, %v2747
        %v2757 = vsel %vm2750, %v2753, %v2756
        %v2758 = vsel %vm2748, nan, %v2757
        %v2759 = vsub.f32 %v2551, %v2655
        %v2760 = vsub.f32 %v2552, %v2758
        %v2761 = vmul.f32 %v2759, %v2341
        %v2762 = vmul.f32 %v2760, %v2342
        %v2763 = vmul.f32 %v2341, 3.0
        %v2764 = vmul.f32 %v2342, 3.0
        %v2765 = vmul.f32 %v2763, %v2761
        %v2766 = vmul.f32 %v2764, %v2762
        %v2767 = vsub.f32 %v2765, %v2551
        %v2768 = vsub.f32 %v2766, %v2552
        %v2769 = vmul.f32 %v2341, 5.0
        %v2770 = vmul.f32 %v2342, 5.0
        %v2771 = vmul.f32 %v2769, %v2767
        %v2772 = vmul.f32 %v2770, %v2768
        %v2773 = vsub.f32 %v2771, %v2761
        %v2774 = vsub.f32 %v2772, %v2762
        %v2775 = vmul.f32 %v2341, 7.0
        %v2776 = vmul.f32 %v2342, 7.0
        %v2777 = vmul.f32 %v2775, %v2773
        %v2778 = vmul.f32 %v2776, %v2774
        %v2779 = vsub.f32 %v2777, %v2767
        %v2780 = vsub.f32 %v2778, %v2768
        %v2781 = vmul.f32 %v2341, 9.0
        %v2782 = vmul.f32 %v2342, 9.0
        %v2783 = vmul.f32 %v2781, %v2779
        %v2784 = vmul.f32 %v2782, %v2780
        %v2785 = vsub.f32 %v2783, %v2773
        %v2786 = vsub.f32 %v2784, %v2774
        %s2787 = scalar_lea.vmem %s2, 40
        %v2788 = vld [vmem:[%s2787] sm:$0x3f]
        %2790 = vset.pattern.permute.xlu0 0
        %2791 = vperm.xlu0 %2790, %v2788
        %v2792 = vpop.permute.xlu0 %2791
        %v2794 = vmul.f32 %v2785, %v2792
        %v2795 = vmul.f32 %v2786, %v2792
        %v2796 = vmul.f32 %v2794, %v236
        %v2797 = vmul.f32 %v2795, %v240
        %s2798 = scalar_lea.vmem %s185, 80 [#allocation2]
        %2799 = vst [vmem:[%s2798] sm:$0x3f] %v2796
        %2800 = vst [vmem:[%s2798 + $0x8] sm:$0x3f] %v2797
        %s2801 = scalar_lea.vmem %s0, 48
        %v2802 = vld [vmem:[%s2801] sm:$0x3f]
        %2804 = vset.pattern.permute.xlu0 0
        %2805 = vperm.xlu0 %2804, %v2802
        %v2806 = vpop.permute.xlu0 %2805
        %v2808 = vmul.f32 %v214, %v2806
        %v2809 = vmul.f32 %v218, %v2806
        %s2810 = scalar_lea.vmem %s1, 48
        %v2811 = vld [vmem:[%s2810] sm:$0x3f]
        %2813 = vset.pattern.permute.xlu0 0
        %2814 = vperm.xlu0 %2813, %v2811
        %v2815 = vpop.permute.xlu0 %2814
        %v2817 = vmul.f32 %v225, %v2815
        %v2818 = vmul.f32 %v229, %v2815
        %v2819 = vand.u32 2147483647, %v2808
        %vm2820 = vcmp.le.f32.partialorder %v2819, 0.7853982
        %vm2821 = vcmp.lt.s32.totalorder %v2808, 0
        %v2822 = vand.u32 %v2808, 2139095040
        %v2823 = vshrl.u32 %v2822, 23
        %v2824 = vsub.s32 %v2823, 127
        %v2825 = vand.u32 2147483647, %v2808
        %v2826 = vand.u32 %v2825, 8388607
        %v2827 = vor.u32 %v2826, 8388608
        %v2828 = vsub.s32 0, %v2827
        %v2829 = vadd.s32 %v2824, 1
        %vm2830 = vcmp.gt.s32.totalorder %v2829, 0
        %v2831 = vsel %vm2830, %v2829, 0
        %v2832 = vshrl.u32 %v2831, 5
        %v2833 = vand.u32 %v2831, 31
        %v2834 = vsub.s32 32, %v2833
        %v2835 = vshrl.u32 683565275, %v2834
        %v2836 = vshll.u32 683565275, %v2833
        %v2837 = vshrl.u32 2475754826, %v2834
        %v2838 = vor.u32 %v2836, %v2837
        %v2839 = vshll.u32 2475754826, %v2833
        %v2840 = vshrl.u32 2131351028, %v2834
        %v2841 = vor.u32 %v2839, %v2840
        %v2842 = vshll.u32 2131351028, %v2833
        %v2843 = vshrl.u32 2102212464, %v2834
        %v2844 = vor.u32 %v2842, %v2843
        %v2845 = vshll.u32 2102212464, %v2833
        %v2846 = vshrl.u32 920167782, %v2834
        %v2847 = vor.u32 %v2845, %v2846
        %v2848 = vshll.u32 920167782, %v2833
        %v2849 = vshrl.u32 1326507024, %v2834
        %v2850 = vor.u32 %v2848, %v2849
        %vm2851 = vcmp.lt.s32.totalorder %v2832, 1
        %vm2852 = vcmp.lt.s32.totalorder %v2832, 2
        %vm2853 = vcmp.lt.s32.totalorder %v2832, 3
        %vm2854 = vcmp.lt.s32.totalorder %v2832, 4
        %v2855 = vsel %vm2851, %v2835, %v2838
        %v2856 = vsel %vm2854, %v2844, 2102212464
        %v2857 = vsel %vm2853, %v2841, %v2856
        %v2858 = vsel %vm2852, %v2855, %v2857
        %v2859 = vsel %vm2851, %v2838, %v2841
        %v2860 = vsel %vm2854, %v2847, 920167782
        %v2861 = vsel %vm2853, %v2844, %v2860
        %v2862 = vsel %vm2852, %v2859, %v2861
        %v2863 = vsel %vm2851, %v2841, %v2844
        %v2864 = vsel %vm2854, %v2850, 1326507024
        %v2865 = vsel %vm2853, %v2847, %v2864
        %v2866 = vsel %vm2852, %v2863, %v2865
        %v2867 = vshll.u32 %v2827, 8
        %v2868 = vmul.u32.u64.compose %v2867, %v2866
        %v2869 = vextract.low.u32 %v2868
        %v2870 = vextract.high.u32 %v2868
        %v2871 = vmul.u32.u64.compose %v2867, %v2862
        %v2872 = vextract.low.u32 %v2871
        %v2873 = vextract.high.u32 %v2871
        %v2874 = vmul.u32 %v2867, %v2858
        %v2875 = vadd.s32 %v2870, %v2872
        %vm2876 = vc.u32 %v2870, %v2872
        %v2877 = vadd.s32 %v2873, 1
        %v2878 = vsel %vm2876, %v2877, %v2873
        %v2879 = vadd.s32 %v2874, %v2878
        %v2880 = vadd.s32 %v2879, 536870912
        %v2881 = vshrl.u32 %v2880, 30
        %v2882 = vshll.u32 %v2881, 30
        %v2883 = vsub.s32 %v2879, %v2882
        %vm2884 = vcmp.lt.s32.totalorder %v2883, 0
        %v2885 = vsub.s32 0, %v2883
        %v2886 = vsel %vm2884, %v2885, %v2883
        %v2887 = vclz %v2886
        %v2888 = vsub.s32 %v2887, 2
        %vm2889 = vcmp.gt.s32.totalorder 0, %v2888
        %v2890 = vsel %vm2889, 0, %v2888
        %v2891 = vsub.s32 32, %v2890
        %v2892 = vshll.u32 %v2883, %v2890
        %v2893 = vshrl.u32 %v2875, %v2891
        %v2894 = vor.u32 %v2892, %v2893
        %v2895 = vsub.s32 4294967266, %v2890
        %v2896 = vadd.s32 %v2895, 127
        %v2897 = vshll.u32 %v2896, 23
        %v2898 = vor.u32 4788187, %v2897
        %v2899 = vand.u32 2147483647, %v2898
        %v2901 = vcvt.s32.f32 %v2894
        %v2902 = vmul.f32 %v2901, %v2899
        %v2903 = vxor.u32 %v2902, 2147483648
        %v2904 = vsel %vm2821, %v2903, %v2902
        %v2905 = vsub.s32 4, %v2881
        %v2906 = vsel %vm2821, %v2905, %v2881
        %v2907 = vsel %vm2820, %v2808, %v2904
        %v2908 = vsel %vm2820, 0, %v2906
        %v2909 = vcosq.f32.pop %v2907
        %v2910 = vsinq.f32.pop %v2907
        %vm2911 = vweird.f32 %v2808
        %v2912 = vadd.s32 %v2908, 3
        %v2913 = vand.u32 %v2912, 3
        %vm2914 = vcmp.lt.s32.totalorder %v2913, 2
        %vm2915 = vcmp.eq.s32.totalorder %v2913, 0
        %v2916 = vxor.u32 %v2910, 2147483648
        %v2917 = vsel %vm2915, %v2909, %v2916
        %vm2918 = vcmp.eq.s32.totalorder %v2913, 2
        %v2919 = vxor.u32 %v2909, 2147483648
        %v2920 = vsel %vm2918, %v2919, %v2910
        %v2921 = vsel %vm2914, %v2917, %v2920
        %v2922 = vsel %vm2911, nan, %v2921
        %v2923 = vand.u32 2147483647, %v2809
        %vm2924 = vcmp.le.f32.partialorder %v2923, 0.7853982
        %vm2925 = vcmp.lt.s32.totalorder %v2809, 0
        %v2926 = vand.u32 %v2809, 2139095040
        %v2927 = vshrl.u32 %v2926, 23
        %v2928 = vsub.s32 %v2927, 127
        %v2929 = vand.u32 2147483647, %v2809
        %v2930 = vand.u32 %v2929, 8388607
        %v2931 = vor.u32 %v2930, 8388608
        %v2932 = vsub.s32 0, %v2931
        %v2933 = vadd.s32 %v2928, 1
        %vm2934 = vcmp.gt.s32.totalorder %v2933, 0
        %v2935 = vsel %vm2934, %v2933, 0
        %v2936 = vshrl.u32 %v2935, 5
        %v2937 = vand.u32 %v2935, 31
        %v2938 = vsub.s32 32, %v2937
        %v2939 = vshrl.u32 683565275, %v2938
        %v2940 = vshll.u32 683565275, %v2937
        %v2941 = vshrl.u32 2475754826, %v2938
        %v2942 = vor.u32 %v2940, %v2941
        %v2943 = vshll.u32 2475754826, %v2937
        %v2944 = vshrl.u32 2131351028, %v2938
        %v2945 = vor.u32 %v2943, %v2944
        %v2946 = vshll.u32 2131351028, %v2937
        %v2947 = vshrl.u32 2102212464, %v2938
        %v2948 = vor.u32 %v2946, %v2947
        %v2949 = vshll.u32 2102212464, %v2937
        %v2950 = vshrl.u32 920167782, %v2938
        %v2951 = vor.u32 %v2949, %v2950
        %v2952 = vshll.u32 920167782, %v2937
        %v2953 = vshrl.u32 1326507024, %v2938
        %v2954 = vor.u32 %v2952, %v2953
        %vm2955 = vcmp.lt.s32.totalorder %v2936, 1
        %vm2956 = vcmp.lt.s32.totalorder %v2936, 2
        %vm2957 = vcmp.lt.s32.totalorder %v2936, 3
        %vm2958 = vcmp.lt.s32.totalorder %v2936, 4
        %v2959 = vsel %vm2955, %v2939, %v2942
        %v2960 = vsel %vm2958, %v2948, 2102212464
        %v2961 = vsel %vm2957, %v2945, %v2960
        %v2962 = vsel %vm2956, %v2959, %v2961
        %v2963 = vsel %vm2955, %v2942, %v2945
        %v2964 = vsel %vm2958, %v2951, 920167782
        %v2965 = vsel %vm2957, %v2948, %v2964
        %v2966 = vsel %vm2956, %v2963, %v2965
        %v2967 = vsel %vm2955, %v2945, %v2948
        %v2968 = vsel %vm2958, %v2954, 1326507024
        %v2969 = vsel %vm2957, %v2951, %v2968
        %v2970 = vsel %vm2956, %v2967, %v2969
        %v2971 = vshll.u32 %v2931, 8
        %v2972 = vmul.u32.u64.compose %v2971, %v2970
        %v2973 = vextract.low.u32 %v2972
        %v2974 = vextract.high.u32 %v2972
        %v2975 = vmul.u32.u64.compose %v2971, %v2966
        %v2976 = vextract.low.u32 %v2975
        %v2977 = vextract.high.u32 %v2975
        %v2978 = vmul.u32 %v2971, %v2962
        %v2979 = vadd.s32 %v2974, %v2976
        %vm2980 = vc.u32 %v2974, %v2976
        %v2981 = vadd.s32 %v2977, 1
        %v2982 = vsel %vm2980, %v2981, %v2977
        %v2983 = vadd.s32 %v2978, %v2982
        %v2984 = vadd.s32 %v2983, 536870912
        %v2985 = vshrl.u32 %v2984, 30
        %v2986 = vshll.u32 %v2985, 30
        %v2987 = vsub.s32 %v2983, %v2986
        %vm2988 = vcmp.lt.s32.totalorder %v2987, 0
        %v2989 = vsub.s32 0, %v2987
        %v2990 = vsel %vm2988, %v2989, %v2987
        %v2991 = vclz %v2990
        %v2992 = vsub.s32 %v2991, 2
        %vm2993 = vcmp.gt.s32.totalorder 0, %v2992
        %v2994 = vsel %vm2993, 0, %v2992
        %v2995 = vsub.s32 32, %v2994
        %v2996 = vshll.u32 %v2987, %v2994
        %v2997 = vshrl.u32 %v2979, %v2995
        %v2998 = vor.u32 %v2996, %v2997
        %v2999 = vsub.s32 4294967266, %v2994
        %v3000 = vadd.s32 %v2999, 127
        %v3001 = vshll.u32 %v3000, 23
        %v3002 = vor.u32 4788187, %v3001
        %v3003 = vand.u32 2147483647, %v3002
        %v3005 = vcvt.s32.f32 %v2998
        %v3006 = vmul.f32 %v3005, %v3003
        %v3007 = vxor.u32 %v3006, 2147483648
        %v3008 = vsel %vm2925, %v3007, %v3006
        %v3009 = vsub.s32 4, %v2985
        %v3010 = vsel %vm2925, %v3009, %v2985
        %v3011 = vsel %vm2924, %v2809, %v3008
        %v3012 = vsel %vm2924, 0, %v3010
        %v3013 = vcosq.f32.pop %v3011
        %v3014 = vsinq.f32.pop %v3011
        %vm3015 = vweird.f32 %v2809
        %v3016 = vadd.s32 %v3012, 3
        %v3017 = vand.u32 %v3016, 3
        %vm3018 = vcmp.lt.s32.totalorder %v3017, 2
        %vm3019 = vcmp.eq.s32.totalorder %v3017, 0
        %v3020 = vxor.u32 %v3014, 2147483648
        %v3021 = vsel %vm3019, %v3013, %v3020
        %vm3022 = vcmp.eq.s32.totalorder %v3017, 2
        %v3023 = vxor.u32 %v3013, 2147483648
        %v3024 = vsel %vm3022, %v3023, %v3014
        %v3025 = vsel %vm3018, %v3021, %v3024
        %v3026 = vsel %vm3015, nan, %v3025
        %v3027 = vmul.f32 %v2922, %v2817
        %v3028 = vmul.f32 %v3026, %v2818
        %v3029 = vand.u32 2147483647, %v2808
        %vm3030 = vcmp.le.f32.partialorder %v3029, 0.7853982
        %vm3031 = vcmp.lt.s32.totalorder %v2808, 0
        %v3032 = vand.u32 %v2808, 2139095040
        %v3033 = vshrl.u32 %v3032, 23
        %v3034 = vsub.s32 %v3033, 127
        %v3035 = vand.u32 2147483647, %v2808
        %v3036 = vand.u32 %v3035, 8388607
        %v3037 = vor.u32 %v3036, 8388608
        %v3038 = vsub.s32 0, %v3037
        %v3039 = vadd.s32 %v3034, 1
        %vm3040 = vcmp.gt.s32.totalorder %v3039, 0
        %v3041 = vsel %vm3040, %v3039, 0
        %v3042 = vshrl.u32 %v3041, 5
        %v3043 = vand.u32 %v3041, 31
        %v3044 = vsub.s32 32, %v3043
        %v3045 = vshrl.u32 683565275, %v3044
        %v3046 = vshll.u32 683565275, %v3043
        %v3047 = vshrl.u32 2475754826, %v3044
        %v3048 = vor.u32 %v3046, %v3047
        %v3049 = vshll.u32 2475754826, %v3043
        %v3050 = vshrl.u32 2131351028, %v3044
        %v3051 = vor.u32 %v3049, %v3050
        %v3052 = vshll.u32 2131351028, %v3043
        %v3053 = vshrl.u32 2102212464, %v3044
        %v3054 = vor.u32 %v3052, %v3053
        %v3055 = vshll.u32 2102212464, %v3043
        %v3056 = vshrl.u32 920167782, %v3044
        %v3057 = vor.u32 %v3055, %v3056
        %v3058 = vshll.u32 920167782, %v3043
        %v3059 = vshrl.u32 1326507024, %v3044
        %v3060 = vor.u32 %v3058, %v3059
        %vm3061 = vcmp.lt.s32.totalorder %v3042, 1
        %vm3062 = vcmp.lt.s32.totalorder %v3042, 2
        %vm3063 = vcmp.lt.s32.totalorder %v3042, 3
        %vm3064 = vcmp.lt.s32.totalorder %v3042, 4
        %v3065 = vsel %vm3061, %v3045, %v3048
        %v3066 = vsel %vm3064, %v3054, 2102212464
        %v3067 = vsel %vm3063, %v3051, %v3066
        %v3068 = vsel %vm3062, %v3065, %v3067
        %v3069 = vsel %vm3061, %v3048, %v3051
        %v3070 = vsel %vm3064, %v3057, 920167782
        %v3071 = vsel %vm3063, %v3054, %v3070
        %v3072 = vsel %vm3062, %v3069, %v3071
        %v3073 = vsel %vm3061, %v3051, %v3054
        %v3074 = vsel %vm3064, %v3060, 1326507024
        %v3075 = vsel %vm3063, %v3057, %v3074
        %v3076 = vsel %vm3062, %v3073, %v3075
        %v3077 = vshll.u32 %v3037, 8
        %v3078 = vmul.u32.u64.compose %v3077, %v3076
        %v3079 = vextract.low.u32 %v3078
        %v3080 = vextract.high.u32 %v3078
        %v3081 = vmul.u32.u64.compose %v3077, %v3072
        %v3082 = vextract.low.u32 %v3081
        %v3083 = vextract.high.u32 %v3081
        %v3084 = vmul.u32 %v3077, %v3068
        %v3085 = vadd.s32 %v3080, %v3082
        %vm3086 = vc.u32 %v3080, %v3082
        %v3087 = vadd.s32 %v3083, 1
        %v3088 = vsel %vm3086, %v3087, %v3083
        %v3089 = vadd.s32 %v3084, %v3088
        %v3090 = vadd.s32 %v3089, 536870912
        %v3091 = vshrl.u32 %v3090, 30
        %v3092 = vshll.u32 %v3091, 30
        %v3093 = vsub.s32 %v3089, %v3092
        %vm3094 = vcmp.lt.s32.totalorder %v3093, 0
        %v3095 = vsub.s32 0, %v3093
        %v3096 = vsel %vm3094, %v3095, %v3093
        %v3097 = vclz %v3096
        %v3098 = vsub.s32 %v3097, 2
        %vm3099 = vcmp.gt.s32.totalorder 0, %v3098
        %v3100 = vsel %vm3099, 0, %v3098
        %v3101 = vsub.s32 32, %v3100
        %v3102 = vshll.u32 %v3093, %v3100
        %v3103 = vshrl.u32 %v3085, %v3101
        %v3104 = vor.u32 %v3102, %v3103
        %v3105 = vsub.s32 4294967266, %v3100
        %v3106 = vadd.s32 %v3105, 127
        %v3107 = vshll.u32 %v3106, 23
        %v3108 = vor.u32 4788187, %v3107
        %v3109 = vand.u32 2147483647, %v3108
        %v3111 = vcvt.s32.f32 %v3104
        %v3112 = vmul.f32 %v3111, %v3109
        %v3113 = vxor.u32 %v3112, 2147483648
        %v3114 = vsel %vm3031, %v3113, %v3112
        %v3115 = vsub.s32 4, %v3091
        %v3116 = vsel %vm3031, %v3115, %v3091
        %v3117 = vsel %vm3030, %v2808, %v3114
        %v3118 = vsel %vm3030, 0, %v3116
        %v3119 = vcosq.f32.pop %v3117
        %v3120 = vsinq.f32.pop %v3117
        %vm3121 = vweird.f32 %v2808
        %v3122 = vand.u32 %v3118, 3
        %vm3123 = vcmp.lt.s32.totalorder %v3122, 2
        %vm3124 = vcmp.eq.s32.totalorder %v3122, 0
        %v3125 = vxor.u32 %v3120, 2147483648
        %v3126 = vsel %vm3124, %v3119, %v3125
        %vm3127 = vcmp.eq.s32.totalorder %v3122, 2
        %v3128 = vxor.u32 %v3119, 2147483648
        %v3129 = vsel %vm3127, %v3128, %v3120
        %v3130 = vsel %vm3123, %v3126, %v3129
        %v3131 = vsel %vm3121, nan, %v3130
        %v3132 = vand.u32 2147483647, %v2809
        %vm3133 = vcmp.le.f32.partialorder %v3132, 0.7853982
        %vm3134 = vcmp.lt.s32.totalorder %v2809, 0
        %v3135 = vand.u32 %v2809, 2139095040
        %v3136 = vshrl.u32 %v3135, 23
        %v3137 = vsub.s32 %v3136, 127
        %v3138 = vand.u32 2147483647, %v2809
        %v3139 = vand.u32 %v3138, 8388607
        %v3140 = vor.u32 %v3139, 8388608
        %v3141 = vsub.s32 0, %v3140
        %v3142 = vadd.s32 %v3137, 1
        %vm3143 = vcmp.gt.s32.totalorder %v3142, 0
        %v3144 = vsel %vm3143, %v3142, 0
        %v3145 = vshrl.u32 %v3144, 5
        %v3146 = vand.u32 %v3144, 31
        %v3147 = vsub.s32 32, %v3146
        %v3148 = vshrl.u32 683565275, %v3147
        %v3149 = vshll.u32 683565275, %v3146
        %v3150 = vshrl.u32 2475754826, %v3147
        %v3151 = vor.u32 %v3149, %v3150
        %v3152 = vshll.u32 2475754826, %v3146
        %v3153 = vshrl.u32 2131351028, %v3147
        %v3154 = vor.u32 %v3152, %v3153
        %v3155 = vshll.u32 2131351028, %v3146
        %v3156 = vshrl.u32 2102212464, %v3147
        %v3157 = vor.u32 %v3155, %v3156
        %v3158 = vshll.u32 2102212464, %v3146
        %v3159 = vshrl.u32 920167782, %v3147
        %v3160 = vor.u32 %v3158, %v3159
        %v3161 = vshll.u32 920167782, %v3146
        %v3162 = vshrl.u32 1326507024, %v3147
        %v3163 = vor.u32 %v3161, %v3162
        %vm3164 = vcmp.lt.s32.totalorder %v3145, 1
        %vm3165 = vcmp.lt.s32.totalorder %v3145, 2
        %vm3166 = vcmp.lt.s32.totalorder %v3145, 3
        %vm3167 = vcmp.lt.s32.totalorder %v3145, 4
        %v3168 = vsel %vm3164, %v3148, %v3151
        %v3169 = vsel %vm3167, %v3157, 2102212464
        %v3170 = vsel %vm3166, %v3154, %v3169
        %v3171 = vsel %vm3165, %v3168, %v3170
        %v3172 = vsel %vm3164, %v3151, %v3154
        %v3173 = vsel %vm3167, %v3160, 920167782
        %v3174 = vsel %vm3166, %v3157, %v3173
        %v3175 = vsel %vm3165, %v3172, %v3174
        %v3176 = vsel %vm3164, %v3154, %v3157
        %v3177 = vsel %vm3167, %v3163, 1326507024
        %v3178 = vsel %vm3166, %v3160, %v3177
        %v3179 = vsel %vm3165, %v3176, %v3178
        %v3180 = vshll.u32 %v3140, 8
        %v3181 = vmul.u32.u64.compose %v3180, %v3179
        %v3182 = vextract.low.u32 %v3181
        %v3183 = vextract.high.u32 %v3181
        %v3184 = vmul.u32.u64.compose %v3180, %v3175
        %v3185 = vextract.low.u32 %v3184
        %v3186 = vextract.high.u32 %v3184
        %v3187 = vmul.u32 %v3180, %v3171
        %v3188 = vadd.s32 %v3183, %v3185
        %vm3189 = vc.u32 %v3183, %v3185
        %v3190 = vadd.s32 %v3186, 1
        %v3191 = vsel %vm3189, %v3190, %v3186
        %v3192 = vadd.s32 %v3187, %v3191
        %v3193 = vadd.s32 %v3192, 536870912
        %v3194 = vshrl.u32 %v3193, 30
        %v3195 = vshll.u32 %v3194, 30
        %v3196 = vsub.s32 %v3192, %v3195
        %vm3197 = vcmp.lt.s32.totalorder %v3196, 0
        %v3198 = vsub.s32 0, %v3196
        %v3199 = vsel %vm3197, %v3198, %v3196
        %v3200 = vclz %v3199
        %v3201 = vsub.s32 %v3200, 2
        %vm3202 = vcmp.gt.s32.totalorder 0, %v3201
        %v3203 = vsel %vm3202, 0, %v3201
        %v3204 = vsub.s32 32, %v3203
        %v3205 = vshll.u32 %v3196, %v3203
        %v3206 = vshrl.u32 %v3188, %v3204
        %v3207 = vor.u32 %v3205, %v3206
        %v3208 = vsub.s32 4294967266, %v3203
        %v3209 = vadd.s32 %v3208, 127
        %v3210 = vshll.u32 %v3209, 23
        %v3211 = vor.u32 4788187, %v3210
        %v3212 = vand.u32 2147483647, %v3211
        %v3214 = vcvt.s32.f32 %v3207
        %v3215 = vmul.f32 %v3214, %v3212
        %v3216 = vxor.u32 %v3215, 2147483648
        %v3217 = vsel %vm3134, %v3216, %v3215
        %v3218 = vsub.s32 4, %v3194
        %v3219 = vsel %vm3134, %v3218, %v3194
        %v3220 = vsel %vm3133, %v2809, %v3217
        %v3221 = vsel %vm3133, 0, %v3219
        %v3222 = vcosq.f32.pop %v3220
        %v3223 = vsinq.f32.pop %v3220
        %vm3224 = vweird.f32 %v2809
        %v3225 = vand.u32 %v3221, 3
        %vm3226 = vcmp.lt.s32.totalorder %v3225, 2
        %vm3227 = vcmp.eq.s32.totalorder %v3225, 0
        %v3228 = vxor.u32 %v3223, 2147483648
        %v3229 = vsel %vm3227, %v3222, %v3228
        %vm3230 = vcmp.eq.s32.totalorder %v3225, 2
        %v3231 = vxor.u32 %v3222, 2147483648
        %v3232 = vsel %vm3230, %v3231, %v3223
        %v3233 = vsel %vm3226, %v3229, %v3232
        %v3234 = vsel %vm3224, nan, %v3233
        %v3235 = vsub.f32 %v3027, %v3131
        %v3236 = vsub.f32 %v3028, %v3234
        %v3237 = vmul.f32 %v3235, %v2817
        %v3238 = vmul.f32 %v3236, %v2818
        %v3239 = vmul.f32 %v2817, 3.0
        %v3240 = vmul.f32 %v2818, 3.0
        %v3241 = vmul.f32 %v3239, %v3237
        %v3242 = vmul.f32 %v3240, %v3238
        %v3243 = vsub.f32 %v3241, %v3027
        %v3244 = vsub.f32 %v3242, %v3028
        %v3245 = vmul.f32 %v2817, 5.0
        %v3246 = vmul.f32 %v2818, 5.0
        %v3247 = vmul.f32 %v3245, %v3243
        %v3248 = vmul.f32 %v3246, %v3244
        %v3249 = vsub.f32 %v3247, %v3237
        %v3250 = vsub.f32 %v3248, %v3238
        %v3251 = vmul.f32 %v2817, 7.0
        %v3252 = vmul.f32 %v2818, 7.0
        %v3253 = vmul.f32 %v3251, %v3249
        %v3254 = vmul.f32 %v3252, %v3250
        %v3255 = vsub.f32 %v3253, %v3243
        %v3256 = vsub.f32 %v3254, %v3244
        %v3257 = vmul.f32 %v2817, 9.0
        %v3258 = vmul.f32 %v2818, 9.0
        %v3259 = vmul.f32 %v3257, %v3255
        %v3260 = vmul.f32 %v3258, %v3256
        %v3261 = vsub.f32 %v3259, %v3249
        %v3262 = vsub.f32 %v3260, %v3250
        %v3263 = vmul.f32 %v2817, 11.0
        %v3264 = vmul.f32 %v2818, 11.0
        %v3265 = vmul.f32 %v3263, %v3261
        %v3266 = vmul.f32 %v3264, %v3262
        %v3267 = vsub.f32 %v3265, %v3255
        %v3268 = vsub.f32 %v3266, %v3256
        %s3269 = scalar_lea.vmem %s2, 48
        %v3270 = vld [vmem:[%s3269] sm:$0x3f]
        %3272 = vset.pattern.permute.xlu0 0
        %3273 = vperm.xlu0 %3272, %v3270
        %v3274 = vpop.permute.xlu0 %3273
        %v3276 = vmul.f32 %v3267, %v3274
        %v3277 = vmul.f32 %v3268, %v3274
        %v3278 = vmul.f32 %v3276, %v236
        %v3279 = vmul.f32 %v3277, %v240
        %s3280 = scalar_lea.vmem %s185, 96 [#allocation2]
        %3281 = vst [vmem:[%s3280] sm:$0x3f] %v3278
        %3282 = vst [vmem:[%s3280 + $0x8] sm:$0x3f] %v3279
        %s3283 = sand.u32 %s112, 1
        %s3284 = sand.u32 %s112, 1
        %s3285 = smul.addr %s3284, 112
        %s3286 = scalar_lea.vmem [#allocation2], %s3285
        // Predicated region
        $region37: #{tpu_custom_call.1} parent=35 // pred_check
          %p3287 = pneg %p122
        $region38: #{tpu_custom_call.1} parent=35 // pred_check_branch
          %3289 = sbr.rel (%p3287) target = $region40
        $region39: #{tpu_custom_call.1} parent=35 // pred_region
          %s3290 = smul.u32 2, %s15
          %s3291 = smul.addr %s3290, 8
          %s3292 = scalar_lea.vmem %s4, %s3291
          // Predicated region
          $region41: #{tpu_custom_call.1} parent=39 // pred_check
            _
          $region42: #{tpu_custom_call.1} parent=39 // pred_check_branch
            %3294 = sbr.rel (0) target = $region44
          $region43: #{tpu_custom_call.1} parent=39 // pred_region
            // Predicated region
            $region45: #{tpu_custom_call.1} parent=43 // pred_check
              _
            $region46: #{tpu_custom_call.1} parent=43 // pred_check_branch
              %3296 = sbr.rel (0) target = $region48
            $region47: #{tpu_custom_call.1} parent=43 // pred_region
              loop: start=0, step=1, limit=1
              $region49: #{tpu_custom_call.1} parent=47 // loop_pre_header
                _
              $region50: #{tpu_custom_call.1} parent=47 // loop_header
                %s3298 = sphi 0, %s3302
                %p3299 = scmp.ge.s32.totalorder %s3298, 1
                %s3303 = sphi %s3286, %s3286
                %s3304 = sphi %s3292, %s3292
              $region51: #{tpu_custom_call.1} parent=47 // loop_header_branch
                %3301 = sbr.rel (%p3299) target = $region55
              $region52: #{tpu_custom_call.1} parent=47 // loop_body
                %v3305 = vld [vmem:[%s3303] sm:$0xff]
                %3306 = vst [vmem:[%s3304] sm:$0xff] %v3305
                %v3307 = vld [vmem:[%s3303 + $0x8] sm:$0xff]
                %3308 = vst [vmem:[%s3304 + $0x8] sm:$0xff] %v3307
                %v3309 = vld [vmem:[%s3303 + $0x10] sm:$0xff]
                %3310 = vst [vmem:[%s3304 + $0x20] sm:$0xff] %v3309
                %v3311 = vld [vmem:[%s3303 + $0x18] sm:$0xff]
                %3312 = vst [vmem:[%s3304 + $0x28] sm:$0xff] %v3311
                %v3313 = vld [vmem:[%s3303 + $0x20] sm:$0xff]
                %3314 = vst [vmem:[%s3304 + $0x40] sm:$0xff] %v3313
                %v3315 = vld [vmem:[%s3303 + $0x28] sm:$0xff]
                %3316 = vst [vmem:[%s3304 + $0x48] sm:$0xff] %v3315
                %v3317 = vld [vmem:[%s3303 + $0x30] sm:$0xff]
                %3318 = vst [vmem:[%s3304 + $0x60] sm:$0xff] %v3317
                %v3319 = vld [vmem:[%s3303 + $0x38] sm:$0xff]
                %3320 = vst [vmem:[%s3304 + $0x68] sm:$0xff] %v3319
                %v3321 = vld [vmem:[%s3303 + $0x40] sm:$0xff]
                %3322 = vst [vmem:[%s3304 + $0x80] sm:$0xff] %v3321
                %v3323 = vld [vmem:[%s3303 + $0x48] sm:$0xff]
                %3324 = vst [vmem:[%s3304 + $0x88] sm:$0xff] %v3323
                %v3325 = vld [vmem:[%s3303 + $0x50] sm:$0xff]
                %3326 = vst [vmem:[%s3304 + $0xa0] sm:$0xff] %v3325
                %v3327 = vld [vmem:[%s3303 + $0x58] sm:$0xff]
                %3328 = vst [vmem:[%s3304 + $0xa8] sm:$0xff] %v3327
                %v3329 = vld [vmem:[%s3303 + $0x60] sm:$0xff]
                %3330 = vst [vmem:[%s3304 + $0xc0] sm:$0xff] %v3329
                %v3331 = vld [vmem:[%s3303 + $0x68] sm:$0xff]
                %3332 = vst [vmem:[%s3304 + $0xc8] sm:$0xff] %v3331
              $region53: #{tpu_custom_call.1} parent=47 // loop_footer
                %s3302 = sadd.s32 1, %s3298
              $region54: #{tpu_custom_call.1} parent=47 // loop_footer_branch
                %3297 = sbr.rel target = $region50
              $region55: #{tpu_custom_call.1} parent=47 // loop_exit
                _
            $region48: #{tpu_custom_call.1} parent=43 // pred_fallthru
              _
            // Predicated region
            $region56: #{tpu_custom_call.1} parent=43 // pred_check
              _
            $region57: #{tpu_custom_call.1} parent=43 // pred_check_branch
              %3334 = sbr.rel target = $region59
            $region58: #{tpu_custom_call.1} parent=43 // pred_region
              _
            $region59: #{tpu_custom_call.1} parent=43 // pred_fallthru
              _
          $region44: #{tpu_custom_call.1} parent=39 // pred_fallthru
            _
          %3335 = vnop
        $region40: #{tpu_custom_call.1} parent=35 // pred_fallthru
          _
      $region36: #{tpu_custom_call.1} parent=5 // pred_fallthru
        _
      %p3336 = scmp.le.s32.totalorder 2, %s10
      // Predicated region
      $region60: #{tpu_custom_call.1} parent=5 // pred_check
        %p3337 = pneg %p3336
      $region61: #{tpu_custom_call.1} parent=5 // pred_check_branch
        %3339 = sbr.rel (%p3337) target = $region63
      $region62: #{tpu_custom_call.1} parent=5 // pred_region
        %s3340 = ssub.s32 %s10, 2
        // Predicated region
        $region64: #{tpu_custom_call.1} parent=62 // pred_check
          %p3341 = pneg %p128
        $region65: #{tpu_custom_call.1} parent=62 // pred_check_branch
          %3343 = sbr.rel (%p3341) target = $region67
        $region66: #{tpu_custom_call.1} parent=62 // pred_region
          %s3344 = sand.u32 %s113, 1
          %s3345 = sand.u32 %s113, 1
          %s3346 = smul.addr %s3345, 112
          %s3347 = scalar_lea.vmem [#allocation2], %s3346
        $region67: #{tpu_custom_call.1} parent=62 // pred_fallthru
          _
      $region63: #{tpu_custom_call.1} parent=5 // pred_fallthru
        _
    $region6: #{tpu_custom_call.1} parent=1 // loop_footer
      %s14 = sadd.s32 1, %s10
    $region7: #{tpu_custom_call.1} parent=1 // loop_footer_branch
      %9 = sbr.rel target = $region3
    $region8: #{tpu_custom_call.1} parent=1 // loop_exit
      _

</llo_original>
